<compile_context>
chip_gen: v7x
topology: tpu7x:2x2x1
jax: 0.10.0
libtpu: 0.0.40
codegen_flags: <defaults>
</compile_context>

<pallas_src>
import functools

import numpy as np
import jax
import jax.numpy as jnp
from jax import lax
from jax.experimental import pallas as pl
from jax.experimental.pallas import tpu as pltpu

# Dimensions implied by the PyTorch module (its Linear is sized by probing L=54).
L_IN, C_IN, K = 54, 5, 3
C1, C2 = 16, 32
L1 = L_IN - K + 1          # 52 after conv1
P1 = L1 // 2               # 26 after pool1
L2 = P1 - K + 1            # 24 after conv2
P2 = L2 // 2               # 12 after pool2
FLAT = C2 * P2             # 384 flattened features (PyTorch order: c*P2 + l)
FC_H = 32
KD1 = C_IN * L_IN          # 270  conv1 unfolded contraction (c*L_IN + t)
M1 = L1 * C1               # 832  conv1 unfolded rows
M2 = L2 * C2               # 768  conv2 unfolded rows
KD2 = P1 * C1              # 416  conv2 unfolded contraction (p*C1 + c)
M1H = M1 // 2              # 416  even/odd half split of conv1 rows
M2H = M2 // 2              # 384  even/odd half split of conv2 rows
S_ROWS = M2H // 2          # 192  rows per conv2 band strip
S_COLS = 208               # contraction window per conv2 strip (covers the 48-wide band)
W2_OFF = (0, 192, 16, 208) # 16-aligned sublane offsets into pooled-conv1 per strip
BN_EPS = 1e-5


def cnn_kernel(x_ref, w1_ref, w2a_ref, w2b_ref, w2c_ref, w2d_ref, wf1_ref, pp_ref, o_ref):
    x = x_ref[...]                                   # (TB, 270) bf16 -> straight to MXU

    shift1 = pp_ref[:, 0:1]                          # (832, 1)  conv1 bias + BN1 shift
    s2a = pp_ref[0:S_ROWS, 1:2]                      # (192, 1)  conv2 bias + BN2 shift (q<6)
    s2b = pp_ref[S_ROWS:M2H, 1:2]                    # (192, 1)  same values, q>=6 rows
    bfc1 = pp_ref[0:FC_H, 2:3]                       # (32, 1)   fc1 bias
    wfc2 = pp_ref[0:FC_H, 3:4]                       # (32, 1)   fc2 weight vector
    bfc2 = pp_ref[FC_H:FC_H + 1, 3:4]                # (1, 1)    fc2 bias

    dn_rT = (((1,), (1,)), ((), ()))                 # contract last dims (w @ x.T)
    dn = (((1,), (0,)), ((), ()))                    # standard (M,K) @ (K,N)

    # Conv1 (+bias, BN, ReLU): Toeplitz-unfolded bf16 matmul, BN scale folded in rows.
    # Rows are pre-ordered [even output positions | odd output positions], each half
    # ordered p*C1+o, so MaxPool1d(2,2) is an aligned split + elementwise max.
    h = lax.dot_general(w1_ref[...], x, dn_rT,
                        preferred_element_type=jnp.float32)           # (832, TB) f32
    h = jnp.maximum(h + shift1, 0.0)
    # Dropout(0.5): identity in eval mode. Post-pool ReLU is a no-op on >=0 values.
    h1 = jnp.maximum(h[:M1H], h[M1H:]).astype(jnp.bfloat16)           # (416, TB) p*C1+c

    # Conv2 (+bias, BN, ReLU, MaxPool) as 4 banded strips: each (192, 208) strip only
    # reads a 208-row window of h1 (the Toeplitz has just 48 nonzeros per row).
    strips = (w2a_ref, w2b_ref, w2c_ref, w2d_ref)
    ga, gb, gc, gd = [
        lax.dot_general(w[...], h1[off:off + S_COLS], dn,
                        preferred_element_type=jnp.float32)           # (192, TB) f32
        for w, off in zip(strips, W2_OFF)
    ]
    # ga/gb are even output positions (q in [0,6)/[6,12)), gc/gd the matching odd ones.
    p_lo = jnp.maximum(jnp.maximum(ga, gc) + s2a, 0.0).astype(jnp.bfloat16)
    p_hi = jnp.maximum(jnp.maximum(gb, gd) + s2b, 0.0).astype(jnp.bfloat16)
    g2 = jnp.concatenate([p_lo, p_hi], axis=0)                        # (384, TB) l*C2+c

    # Linear(384, 32) + ReLU (fc1 columns pre-permuted to the l*C2+c row order).
    f = lax.dot_general(wf1_ref[...], g2, dn,
                        preferred_element_type=jnp.float32)           # (32, TB)
    f = jnp.maximum(f + bfc1, 0.0)
    # Dropout(0.5): identity in eval mode.

    # Linear(32, 1) + ReLU as VPU multiply + sublane reduction; lane-dense output.
    y = jnp.sum(f * wfc2, axis=0, keepdims=True) + bfc2               # (1, TB)
    o_ref[...] = jnp.maximum(y, 0.0)


def _round_up(x, m):
    return (x + m - 1) // m * m


def _default_tile(B):
    # >=2 grid steps once B > 128 (lets v7x's 2 TensorCores split the work); cap at
    # 512 to stay well inside v7x's 64 MiB VMEM.  On 128 MiB parts (v5e/v6e) callers
    # may pass block_b=1024/2048 for large-B throughput.
    half = -(-B // 2)
    return max(128, min(512, _round_up(half, 128)))


@functools.partial(jax.jit, static_argnames=("block_b",))
def cnn_forward(x_ncl, kparams, *, block_b=None):
    """x_ncl: (B, 5, 54) float, PyTorch NCL layout.  Returns (B, 1) float32."""
    B = x_ncl.shape[0]
    # Free metadata reshape (no HBM transpose); bf16 halves the per-sample DMA and is
    # the native MXU operand dtype.
    x2 = x_ncl.reshape(B, KD1).astype(jnp.bfloat16)
    tb = block_b if block_b is not None else _default_tile(B)
    assert tb % 128 == 0
    bp = _round_up(B, tb)
    if bp != B:                                   # tail tile handling
        x2 = jnp.pad(x2, ((0, bp - B), (0, 0)))
    out = pl.pallas_call(
        cnn_kernel,
        out_shape=jax.ShapeDtypeStruct((1, bp), jnp.float32),
        grid=(bp // tb,),
        in_specs=[
            pl.BlockSpec((tb, KD1), lambda i: (i, 0)),        # x: tiled over batch
            pl.BlockSpec((M1, KD1), lambda i: (0, 0)),        # weights pinned resident
            pl.BlockSpec((S_ROWS, S_COLS), lambda i: (0, 0)),
            pl.BlockSpec((S_ROWS, S_COLS), lambda i: (0, 0)),
            pl.BlockSpec((S_ROWS, S_COLS), lambda i: (0, 0)),
            pl.BlockSpec((S_ROWS, S_COLS), lambda i: (0, 0)),
            pl.BlockSpec((FC_H, FLAT), lambda i: (0, 0)),
            pl.BlockSpec((M1, 4), lambda i: (0, 0)),          # packed small params (f32)
        ],
        out_specs=pl.BlockSpec((1, tb), lambda i: (0, i)),    # lane-dense output block
        compiler_params=pltpu.CompilerParams(
            dimension_semantics=("parallel",),                # v7x: 2 TCs split tiles
            vmem_limit_bytes=32 * 1024 * 1024),
    )(x2, kparams["w1u"], kparams["w2a"], kparams["w2b"], kparams["w2c"],
      kparams["w2d"], kparams["wf1"], kparams["pp"])
    return out[0, :B].reshape(B, 1)


def init_raw_params(key):
    """PyTorch-layout parameters (deterministic, eval-mode BN stats)."""
    ks = jax.random.split(key, 16)

    def unif(k, shape, fan_in):
        b = 1.0 / float(np.sqrt(fan_in))
        return jax.random.uniform(k, shape, jnp.float32, -b, b)

    def bn(kg, kb, km, kv, c):
        return (jax.random.uniform(kg, (c,), jnp.float32, 0.5, 1.5),   # gamma
                jax.random.uniform(kb, (c,), jnp.float32, -0.1, 0.1),  # beta
                0.1 * jax.random.normal(km, (c,), jnp.float32),        # running mean
                jax.random.uniform(kv, (c,), jnp.float32, 0.5, 1.5))   # running var

    return dict(
        w1=unif(ks[0], (C1, C_IN, K), C_IN * K), b1=unif(ks[1], (C1,), C_IN * K),
        w2=unif(ks[2], (C2, C1, K), C1 * K),     b2=unif(ks[3], (C2,), C1 * K),
        bn1=bn(ks[4], ks[5], ks[6], ks[7], C1),
        bn2=bn(ks[8], ks[9], ks[10], ks[11], C2),
        wf1=unif(ks[12], (FC_H, FLAT), FLAT),    bf1=unif(ks[13], (FC_H,), FLAT),
        wf2=unif(ks[14], (1, FC_H), FC_H),       bf2=unif(ks[15], (1,), FC_H))


def pack_params(raw):
    """Fold BN + biases, Toeplitz-unfold convs with even/odd row reorder (for the
    split-max pooling) and cut the conv2 band strips.  MXU operands stored bf16."""
    w1 = np.asarray(raw["w1"], np.float32); b1 = np.asarray(raw["b1"], np.float32)
    w2 = np.asarray(raw["w2"], np.float32); b2 = np.asarray(raw["b2"], np.float32)
    g1, bt1, m1, v1 = [np.asarray(t, np.float32) for t in raw["bn1"]]
    g2, bt2, m2, v2 = [np.asarray(t, np.float32) for t in raw["bn2"]]
    s1 = g1 / np.sqrt(v1 + BN_EPS); sh1 = bt1 - m1 * s1 + b1 * s1
    s2 = g2 / np.sqrt(v2 + BN_EPS); sh2 = bt2 - m2 * s2 + b2 * s2
    w1s = w1 * s1[:, None, None]          # BN scale folded into conv weights
    w2s = w2 * s2[:, None, None]

    # conv1: rows [even l | odd l], each half ordered p*C1+o; column c*L_IN + (l+k).
    w1u = np.zeros((M1, KD1), np.float32)
    for p in range(P1):
        for par, base in ((0, 0), (1, M1H)):
            l = 2 * p + par
            for k in range(K):
                for c in range(C_IN):
                    w1u[base + p * C1: base + (p + 1) * C1, c * L_IN + l + k] = w1s[:, c, k]

    # conv2: rows [even l | odd l], each half ordered q*C2+o; column (l+k)*C1 + c.
    w2u = np.zeros((M2, KD2), np.float32)
    for q in range(P2):
        for par, base in ((0, 0), (1, M2H)):
            l = 2 * q + par
            for k in range(K):
                w2u[base + q * C2: base + (q + 1) * C2,
                    (l + k) * C1: (l + k + 1) * C1] = w2s[:, :, k]

    # Band strips: (rows, h1-column window) pairs A=even q<6, B=even q>=6,
    # C=odd q<6, D=odd q>=6.  Verify the windows cover every nonzero.
    row_starts = (0, S_ROWS, M2H, M2H + S_ROWS)
    covered = np.zeros_like(w2u, dtype=bool)
    strips = []
    for r0, c0 in zip(row_starts, W2_OFF):
        covered[r0:r0 + S_ROWS, c0:c0 + S_COLS] = True
        strips.append(w2u[r0:r0 + S_ROWS, c0:c0 + S_COLS])
    assert not np.any(w2u[~covered]), "conv2 band windows miss nonzeros"
    w2a, w2b, w2c, w2d = strips

    # fc1: permute columns from PyTorch flatten order (c*P2 + l) to kernel (l*C2 + c).
    wf1 = np.asarray(raw["wf1"], np.float32)
    wf1p = wf1.reshape(FC_H, C2, P2).transpose(0, 2, 1).reshape(FC_H, FLAT)

    pp = np.zeros((M1, 4), np.float32)
    pp[:, 0] = np.tile(sh1, L1)           # channel-cyclic: valid for reordered rows
    pp[:M2, 1] = np.tile(sh2, L2)
    pp[:FC_H, 2] = np.asarray(raw["bf1"], np.float32)
    pp[:FC_H, 3] = np.asarray(raw["wf2"], np.float32).reshape(FC_H)
    pp[FC_H, 3] = float(np.asarray(raw["bf2"], np.float32).reshape(-1)[0])

    bf = jnp.bfloat16
    return dict(w1u=jnp.asarray(w1u, bf),
                w2a=jnp.asarray(w2a, bf), w2b=jnp.asarray(w2b, bf),
                w2c=jnp.asarray(w2c, bf), w2d=jnp.asarray(w2d, bf),
                wf1=jnp.asarray(wf1p, bf), pp=jnp.asarray(pp))


def reference_forward(x_ncl, raw):
    """Pure-JAX eval-mode reference mirroring the PyTorch module."""
    def conv(z, w, b):
        lo = z.shape[2] - K + 1
        cols = jnp.stack([z[:, :, k:k + lo] for k in range(K)], axis=-1)
        return jnp.einsum('bclk,ock->bol', cols, w) + b[None, :, None]

    def bn(z, p):
        g, bta, m, v = p
        s = g / jnp.sqrt(v + BN_EPS)
        return z * s[None, :, None] + (bta - m * s)[None, :, None]

    z = jnp.maximum(bn(conv(x_ncl, raw["w1"], raw["b1"]), raw["bn1"]), 0.0)
    z = jnp.maximum(z.reshape(z.shape[0], C1, P1, 2).max(-1), 0.0)
    z = jnp.maximum(bn(conv(z, raw["w2"], raw["b2"]), raw["bn2"]), 0.0)
    z = jnp.maximum(z.reshape(z.shape[0], C2, P2, 2).max(-1), 0.0)
    z = z.reshape(z.shape[0], FLAT)                      # Flatten: c*P2 + l
    z = jnp.maximum(z @ raw["wf1"].T + raw["bf1"], 0.0)
    z = jnp.maximum(z @ raw["wf2"].T + raw["bf2"], 0.0)
    return z


if __name__ == "__main__":
    key = jax.random.PRNGKey(0)
    kx, kparam = jax.random.split(key)
    B = 130                                     # small; exercises 2 batch tiles + tail pad
    x = jax.random.normal(kx, (B, C_IN, L_IN), jnp.float32)   # (B, 5, 54) PyTorch NCL
    raw = init_raw_params(kparam)
    kparams = pack_params(raw)

    y = cnn_forward(x, kparams, block_b=128)
    jax.block_until_ready(y)
    assert y.shape == (B, 1) and y.dtype == jnp.float32

    # Correctness check against a pure-JAX f32 reference on the bf16-rounded input the
    # kernel consumes (tolerance absorbs the bf16 weight/activation rounding of the
    # MXU-native path; packing/ordering bugs would show up as O(1) errors).
    x_bf = x.astype(jnp.bfloat16).astype(jnp.float32)
    y_ref = reference_forward(x_bf, raw)
    max_err = float(jnp.max(jnp.abs(y - y_ref)))
    assert bool(jnp.allclose(y, y_ref, rtol=2e-1, atol=6e-2)), f"max abs err {max_err}"
    print("KERNEL_OK")
</pallas_src>

<mosaic_0001>
module attributes {stable_mosaic.version = 11 : i64} {
  func.func @cnn_kernel(%arg0: i32, %arg1: memref<128x270xbf16, #tpu.memory_space<vmem>>, %arg2: memref<832x270xbf16, #tpu.memory_space<vmem>>, %arg3: memref<192x208xbf16, #tpu.memory_space<vmem>>, %arg4: memref<192x208xbf16, #tpu.memory_space<vmem>>, %arg5: memref<192x208xbf16, #tpu.memory_space<vmem>>, %arg6: memref<192x208xbf16, #tpu.memory_space<vmem>>, %arg7: memref<32x384xbf16, #tpu.memory_space<vmem>>, %arg8: memref<832x4xf32, #tpu.memory_space<vmem>>, %arg9: memref<1x128xf32, #tpu.memory_space<vmem>>) attributes {dimension_semantics = [#tpu.dimension_semantics<parallel>], iteration_bounds = array<i64: 2>, scalar_prefetch = 0 : i64, scratch_operands = 0 : i64, tpu.core_type = #tpu.core_type<tc>, window_params = [{transform_indices = @transform_0, window_bounds = array<i64: 128, 270>}, {pipeline_mode = #tpu.pipeline_mode<synchronous>, transform_indices = @transform_1, window_bounds = array<i64: 832, 270>}, {pipeline_mode = #tpu.pipeline_mode<synchronous>, transform_indices = @transform_2, window_bounds = array<i64: 192, 208>}, {pipeline_mode = #tpu.pipeline_mode<synchronous>, transform_indices = @transform_3, window_bounds = array<i64: 192, 208>}, {pipeline_mode = #tpu.pipeline_mode<synchronous>, transform_indices = @transform_4, window_bounds = array<i64: 192, 208>}, {pipeline_mode = #tpu.pipeline_mode<synchronous>, transform_indices = @transform_5, window_bounds = array<i64: 192, 208>}, {pipeline_mode = #tpu.pipeline_mode<synchronous>, transform_indices = @transform_6, window_bounds = array<i64: 32, 384>}, {pipeline_mode = #tpu.pipeline_mode<synchronous>, transform_indices = @transform_7, window_bounds = array<i64: 832, 4>}, {transform_indices = @transform_8, window_bounds = array<i64: 1, 128>}]} {
    %c0 = arith.constant 0 : index
    %c0_0 = arith.constant 0 : index
    %0 = vector.load %arg1[%c0, %c0_0] : memref<128x270xbf16, #tpu.memory_space<vmem>>, vector<128x270xbf16>
    %c0_1 = arith.constant 0 : index
    %c0_2 = arith.constant 0 : index
    %1 = vector.load %arg8[%c0_1, %c0_2] : memref<832x4xf32, #tpu.memory_space<vmem>>, vector<832x1xf32>
    %c0_3 = arith.constant 0 : index
    %c1 = arith.constant 1 : index
    %2 = vector.load %arg8[%c0_3, %c1] : memref<832x4xf32, #tpu.memory_space<vmem>>, vector<192x1xf32>
    %c192 = arith.constant 192 : index
    %c1_4 = arith.constant 1 : index
    %3 = vector.load %arg8[%c192, %c1_4] : memref<832x4xf32, #tpu.memory_space<vmem>>, vector<192x1xf32>
    %c0_5 = arith.constant 0 : index
    %c2 = arith.constant 2 : index
    %4 = vector.load %arg8[%c0_5, %c2] : memref<832x4xf32, #tpu.memory_space<vmem>>, vector<32x1xf32>
    %c0_6 = arith.constant 0 : index
    %c3 = arith.constant 3 : index
    %5 = vector.load %arg8[%c0_6, %c3] : memref<832x4xf32, #tpu.memory_space<vmem>>, vector<32x1xf32>
    %c32 = arith.constant 32 : index
    %c3_7 = arith.constant 3 : index
    %6 = vector.load %arg8[%c32, %c3_7] : memref<832x4xf32, #tpu.memory_space<vmem>>, vector<1x1xf32>
    %c0_8 = arith.constant 0 : index
    %c0_9 = arith.constant 0 : index
    %7 = vector.load %arg2[%c0_8, %c0_9] : memref<832x270xbf16, #tpu.memory_space<vmem>>, vector<832x270xbf16>
    %cst = arith.constant dense<0.000000e+00> : vector<832x128xf32>
    %8 = tpu.matmul %7, %0, %cst {dimension_numbers = #tpu.dot_dimension_numbers<[1], [1], [0], [0], [0, 0, 1, 0], [], []>} : vector<832x270xbf16>, vector<128x270xbf16>, vector<832x128xf32> -> vector<832x128xf32>
    %9 = vector.broadcast %1 : vector<832x1xf32> to vector<832x128xf32>
    %10 = arith.addf %8, %9 : vector<832x128xf32>
    %cst_10 = arith.constant 0.000000e+00 : f32
    %11 = vector.broadcast %cst_10 : f32 to vector<832x128xf32>
    %12 = arith.maximumf %10, %11 : vector<832x128xf32>
    %13 = vector.extract_strided_slice %12 {offsets = [0, 0], sizes = [416, 128], strides = [1, 1]} : vector<832x128xf32> to vector<416x128xf32>
    %14 = vector.extract_strided_slice %12 {offsets = [416, 0], sizes = [416, 128], strides = [1, 1]} : vector<832x128xf32> to vector<416x128xf32>
    %15 = arith.maximumf %13, %14 : vector<416x128xf32>
    %16 = arith.truncf %15 : vector<416x128xf32> to vector<416x128xbf16>
    %c0_11 = arith.constant 0 : index
    %c0_12 = arith.constant 0 : index
    %17 = vector.load %arg3[%c0_11, %c0_12] : memref<192x208xbf16, #tpu.memory_space<vmem>>, vector<192x208xbf16>
    %18 = vector.extract_strided_slice %16 {offsets = [0, 0], sizes = [208, 128], strides = [1, 1]} : vector<416x128xbf16> to vector<208x128xbf16>
    %cst_13 = arith.constant dense<0.000000e+00> : vector<192x128xf32>
    %19 = tpu.matmul %17, %18, %cst_13 {dimension_numbers = #tpu.dot_dimension_numbers<[1], [0], [0], [1], [0, 0, 1, 1], [], []>} : vector<192x208xbf16>, vector<208x128xbf16>, vector<192x128xf32> -> vector<192x128xf32>
    %c0_14 = arith.constant 0 : index
    %c0_15 = arith.constant 0 : index
    %20 = vector.load %arg4[%c0_14, %c0_15] : memref<192x208xbf16, #tpu.memory_space<vmem>>, vector<192x208xbf16>
    %21 = vector.extract_strided_slice %16 {offsets = [192, 0], sizes = [208, 128], strides = [1, 1]} : vector<416x128xbf16> to vector<208x128xbf16>
    %cst_16 = arith.constant dense<0.000000e+00> : vector<192x128xf32>
    %22 = tpu.matmul %20, %21, %cst_16 {dimension_numbers = #tpu.dot_dimension_numbers<[1], [0], [0], [1], [0, 0, 1, 1], [], []>} : vector<192x208xbf16>, vector<208x128xbf16>, vector<192x128xf32> -> vector<192x128xf32>
    %c0_17 = arith.constant 0 : index
    %c0_18 = arith.constant 0 : index
    %23 = vector.load %arg5[%c0_17, %c0_18] : memref<192x208xbf16, #tpu.memory_space<vmem>>, vector<192x208xbf16>
    %24 = vector.extract_strided_slice %16 {offsets = [16, 0], sizes = [208, 128], strides = [1, 1]} : vector<416x128xbf16> to vector<208x128xbf16>
    %cst_19 = arith.constant dense<0.000000e+00> : vector<192x128xf32>
    %25 = tpu.matmul %23, %24, %cst_19 {dimension_numbers = #tpu.dot_dimension_numbers<[1], [0], [0], [1], [0, 0, 1, 1], [], []>} : vector<192x208xbf16>, vector<208x128xbf16>, vector<192x128xf32> -> vector<192x128xf32>
    %c0_20 = arith.constant 0 : index
    %c0_21 = arith.constant 0 : index
    %26 = vector.load %arg6[%c0_20, %c0_21] : memref<192x208xbf16, #tpu.memory_space<vmem>>, vector<192x208xbf16>
    %27 = vector.extract_strided_slice %16 {offsets = [208, 0], sizes = [208, 128], strides = [1, 1]} : vector<416x128xbf16> to vector<208x128xbf16>
    %cst_22 = arith.constant dense<0.000000e+00> : vector<192x128xf32>
    %28 = tpu.matmul %26, %27, %cst_22 {dimension_numbers = #tpu.dot_dimension_numbers<[1], [0], [0], [1], [0, 0, 1, 1], [], []>} : vector<192x208xbf16>, vector<208x128xbf16>, vector<192x128xf32> -> vector<192x128xf32>
    %29 = arith.maximumf %19, %25 : vector<192x128xf32>
    %30 = vector.broadcast %2 : vector<192x1xf32> to vector<192x128xf32>
    %31 = arith.addf %29, %30 : vector<192x128xf32>
    %cst_23 = arith.constant 0.000000e+00 : f32
    %32 = vector.broadcast %cst_23 : f32 to vector<192x128xf32>
    %33 = arith.maximumf %31, %32 : vector<192x128xf32>
    %34 = arith.truncf %33 : vector<192x128xf32> to vector<192x128xbf16>
    %35 = arith.maximumf %22, %28 : vector<192x128xf32>
    %36 = vector.broadcast %3 : vector<192x1xf32> to vector<192x128xf32>
    %37 = arith.addf %35, %36 : vector<192x128xf32>
    %cst_24 = arith.constant 0.000000e+00 : f32
    %38 = vector.broadcast %cst_24 : f32 to vector<192x128xf32>
    %39 = arith.maximumf %37, %38 : vector<192x128xf32>
    %40 = arith.truncf %39 : vector<192x128xf32> to vector<192x128xbf16>
    %41 = tpu.concatenate %34, %40 in 0 : vector<192x128xbf16>, vector<192x128xbf16> -> vector<384x128xbf16>
    %c0_25 = arith.constant 0 : index
    %c0_26 = arith.constant 0 : index
    %42 = vector.load %arg7[%c0_25, %c0_26] : memref<32x384xbf16, #tpu.memory_space<vmem>>, vector<32x384xbf16>
    %cst_27 = arith.constant dense<0.000000e+00> : vector<32x128xf32>
    %43 = tpu.matmul %42, %41, %cst_27 {dimension_numbers = #tpu.dot_dimension_numbers<[1], [0], [0], [1], [0, 0, 1, 1], [], []>} : vector<32x384xbf16>, vector<384x128xbf16>, vector<32x128xf32> -> vector<32x128xf32>
    %44 = vector.broadcast %4 : vector<32x1xf32> to vector<32x128xf32>
    %45 = arith.addf %43, %44 : vector<32x128xf32>
    %cst_28 = arith.constant 0.000000e+00 : f32
    %46 = vector.broadcast %cst_28 : f32 to vector<32x128xf32>
    %47 = arith.maximumf %45, %46 : vector<32x128xf32>
    %48 = vector.broadcast %5 : vector<32x1xf32> to vector<32x128xf32>
    %49 = arith.mulf %47, %48 : vector<32x128xf32>
    %cst_29 = arith.constant dense<0.000000e+00> : vector<128xf32>
    %50 = vector.multi_reduction <add>, %49, %cst_29 [0] : vector<32x128xf32> to vector<128xf32>
    %51 = vector.shape_cast %50 : vector<128xf32> to vector<1x128xf32>
    %52 = vector.broadcast %6 : vector<1x1xf32> to vector<1x128xf32>
    %53 = arith.addf %51, %52 : vector<1x128xf32>
    %cst_30 = arith.constant 0.000000e+00 : f32
    %54 = vector.broadcast %cst_30 : f32 to vector<1x128xf32>
    %55 = arith.maximumf %53, %54 : vector<1x128xf32>
    %c0_31 = arith.constant 0 : index
    %c0_32 = arith.constant 0 : index
    %56 = vector.load %arg9[%c0_31, %c0_32] : memref<1x128xf32, #tpu.memory_space<vmem>>, vector<1x128xf32>
    tpu.vector_store %arg9[%c0_31, %c0_32], %55 {strides = array<i32>} : memref<1x128xf32, #tpu.memory_space<vmem>>, vector<1x128xf32>,
    return
  }
  func.func @transform_0(%arg0: i32) -> (i32, i32) {
    %c0_i32 = arith.constant 0 : i32
    %c0_i32_0 = arith.constant 0 : i32
    return %arg0, %c0_i32 : i32, i32
  }
  func.func @transform_1(%arg0: i32) -> (i32, i32) {
    %c0_i32 = arith.constant 0 : i32
    %c0_i32_0 = arith.constant 0 : i32
    %c0_i32_1 = arith.constant 0 : i32
    return %c0_i32, %c0_i32_0 : i32, i32
  }
  func.func @transform_2(%arg0: i32) -> (i32, i32) {
    %c0_i32 = arith.constant 0 : i32
    %c0_i32_0 = arith.constant 0 : i32
    %c0_i32_1 = arith.constant 0 : i32
    return %c0_i32, %c0_i32_0 : i32, i32
  }
  func.func @transform_3(%arg0: i32) -> (i32, i32) {
    %c0_i32 = arith.constant 0 : i32
    %c0_i32_0 = arith.constant 0 : i32
    %c0_i32_1 = arith.constant 0 : i32
    return %c0_i32, %c0_i32_0 : i32, i32
  }
  func.func @transform_4(%arg0: i32) -> (i32, i32) {
    %c0_i32 = arith.constant 0 : i32
    %c0_i32_0 = arith.constant 0 : i32
    %c0_i32_1 = arith.constant 0 : i32
    return %c0_i32, %c0_i32_0 : i32, i32
  }
  func.func @transform_5(%arg0: i32) -> (i32, i32) {
    %c0_i32 = arith.constant 0 : i32
    %c0_i32_0 = arith.constant 0 : i32
    %c0_i32_1 = arith.constant 0 : i32
    return %c0_i32, %c0_i32_0 : i32, i32
  }
  func.func @transform_6(%arg0: i32) -> (i32, i32) {
    %c0_i32 = arith.constant 0 : i32
    %c0_i32_0 = arith.constant 0 : i32
    %c0_i32_1 = arith.constant 0 : i32
    return %c0_i32, %c0_i32_0 : i32, i32
  }
  func.func @transform_7(%arg0: i32) -> (i32, i32) {
    %c0_i32 = arith.constant 0 : i32
    %c0_i32_0 = arith.constant 0 : i32
    %c0_i32_1 = arith.constant 0 : i32
    return %c0_i32, %c0_i32_0 : i32, i32
  }
  func.func @transform_8(%arg0: i32) -> (i32, i32) {
    %c0_i32 = arith.constant 0 : i32
    %c0_i32_0 = arith.constant 0 : i32
    return %c0_i32, %arg0 : i32, i32
  }
}

</mosaic_0001>

<llo_original>
// kernel: cnn_forward.1
$region0: #{cnn_forward.1}
  #allocation0 [shape = 'u32[]', space=smem, size = 0x4, offset = 0x4, fixed_abs, tag = 'smem constant byte address 0x4 - core index']
  #allocation1 [shape = 'u32[144,128]{1,0:T(1,128)}', space=vmem, size = 0x12000, scoped, tag = 'internal scratch']
  %s0 = inlined_call_operand.vmem [shape: bf16[256,270], index: 0, kind: input, shape index: {}]
  %s1 = inlined_call_operand.vmem [shape: bf16[832,270], index: 1, kind: input, shape index: {}]
  %s2 = inlined_call_operand.vmem [shape: bf16[192,208], index: 2, kind: input, shape index: {}]
  %s3 = inlined_call_operand.vmem [shape: bf16[192,208], index: 3, kind: input, shape index: {}]
  %s4 = inlined_call_operand.vmem [shape: bf16[192,208], index: 4, kind: input, shape index: {}]
  %s5 = inlined_call_operand.vmem [shape: bf16[192,208], index: 5, kind: input, shape index: {}]
  %s6 = inlined_call_operand.vmem [shape: bf16[32,384], index: 6, kind: input, shape index: {}]
  %s7 = inlined_call_operand.vmem [shape: f32[832,4], index: 7, kind: input, shape index: {}]
  %s8 = inlined_call_operand.vmem [shape: f32[1,256], index: 8, kind: output, shape index: {}]
  %s9 = sld [smem:[#allocation0]]
  $region65: #{cnn_forward.1} parent=0
    _
  %s11 = ssub.s32 1, %s9
  %s12 = scalar_select 0, %s11, %s9
  loop: start=0, step=1, limit=4
  $region2: #{cnn_forward.1} parent=0 // loop_pre_header
    _
  $region3: #{cnn_forward.1} parent=0 // loop_header
    %s14 = sphi 0, %s18
    %p15 = scmp.ge.s32.totalorder %s14, 4
    %s24 = sphi 0, %s26
    %s27 = sphi 0, %s24
    %s28 = sphi 0, %s27
    %s44 = sphi 0, %s28
    %s48 = sphi 0, %s48
    %s50 = sphi 0, %s48
    %s51 = sphi 0, %s50
    %s65 = sphi 0, %s51
    %s69 = sphi 0, %s69
    %s71 = sphi 0, %s69
    %s72 = sphi 0, %s71
    %s86 = sphi 0, %s72
    %s90 = sphi 0, %s90
    %s92 = sphi 0, %s90
    %s93 = sphi 0, %s92
    %s107 = sphi 0, %s93
    %s111 = sphi 0, %s111
    %s113 = sphi 0, %s111
    %s114 = sphi 0, %s113
    %s128 = sphi 0, %s114
    %s132 = sphi 0, %s132
    %s134 = sphi 0, %s132
    %s135 = sphi 0, %s134
    %s149 = sphi 0, %s135
    %s153 = sphi 0, %s153
    %s155 = sphi 0, %s153
    %s156 = sphi 0, %s155
    %s170 = sphi 0, %s156
    %s174 = sphi 0, %s174
    %s176 = sphi 0, %s174
    %s177 = sphi 0, %s176
    %s191 = sphi 0, %s177
    %s197 = sphi 0, %s199
    %s200 = sphi 0, %s197
    %s201 = sphi 0, %s200
    %s217 = sphi 0, %s201
  $region4: #{cnn_forward.1} parent=0 // loop_header_branch
    %17 = sbr.rel (%p15) target = $region8
  $region5: #{cnn_forward.1} parent=0 // loop_body
    %s19 = ssub.s32 %s14, 1
    %s20 = ssub.s32 %s14, 2
    %s21 = sadd.s32 %s14, 1
    %s22 = ssub.s32 %s14, %s21
    %p23 = scmp.eq.s32.totalorder %s22, 0
    %s25 = sadd.s32 %s24, 1
    %s26 = scalar_select %p23, %s24, %s25
    %p29 = pneg %p23
    %p30 = scmp.eq.s32.totalorder %s14, 1
    %p31 = por %p29, %p30
    %p32 = scmp.ne.s32.totalorder %s24, %s27
    %p33 = scmp.eq.s32.totalorder %s14, 0
    %p34 = por %p32, %p33
    %p35 = scmp.ne.s32.totalorder %s24, %s27
    %p36 = scmp.eq.s32.totalorder %s19, 1
    %p37 = por %p35, %p36
    %p38 = scmp.ne.s32.totalorder %s27, %s28
    %p39 = scmp.eq.s32.totalorder %s19, 0
    %p40 = por %p38, %p39
    %p41 = scmp.ne.s32.totalorder %s27, %s28
    %p42 = scmp.eq.s32.totalorder %s20, 1
    %p43 = por %p41, %p42
    %p45 = scmp.ne.s32.totalorder %s28, %s44
    %p46 = scmp.eq.s32.totalorder %s20, 0
    %p47 = por %p45, %p46
    %s49 = sadd.s32 %s48, 1
    %p52 = scmp.eq.s32.totalorder %s14, 1
    %p53 = scmp.ne.s32.totalorder %s48, %s50
    %p54 = scmp.eq.s32.totalorder %s14, 0
    %p55 = por %p53, %p54
    %p56 = scmp.ne.s32.totalorder %s48, %s50
    %p57 = scmp.eq.s32.totalorder %s19, 1
    %p58 = por %p56, %p57
    %p59 = scmp.ne.s32.totalorder %s50, %s51
    %p60 = scmp.eq.s32.totalorder %s19, 0
    %p61 = por %p59, %p60
    %p62 = scmp.ne.s32.totalorder %s50, %s51
    %p63 = scmp.eq.s32.totalorder %s20, 1
    %p64 = por %p62, %p63
    %p66 = scmp.ne.s32.totalorder %s51, %s65
    %p67 = scmp.eq.s32.totalorder %s20, 0
    %p68 = por %p66, %p67
    %s70 = sadd.s32 %s69, 1
    %p73 = scmp.eq.s32.totalorder %s14, 1
    %p74 = scmp.ne.s32.totalorder %s69, %s71
    %p75 = scmp.eq.s32.totalorder %s14, 0
    %p76 = por %p74, %p75
    %p77 = scmp.ne.s32.totalorder %s69, %s71
    %p78 = scmp.eq.s32.totalorder %s19, 1
    %p79 = por %p77, %p78
    %p80 = scmp.ne.s32.totalorder %s71, %s72
    %p81 = scmp.eq.s32.totalorder %s19, 0
    %p82 = por %p80, %p81
    %p83 = scmp.ne.s32.totalorder %s71, %s72
    %p84 = scmp.eq.s32.totalorder %s20, 1
    %p85 = por %p83, %p84
    %p87 = scmp.ne.s32.totalorder %s72, %s86
    %p88 = scmp.eq.s32.totalorder %s20, 0
    %p89 = por %p87, %p88
    %s91 = sadd.s32 %s90, 1
    %p94 = scmp.eq.s32.totalorder %s14, 1
    %p95 = scmp.ne.s32.totalorder %s90, %s92
    %p96 = scmp.eq.s32.totalorder %s14, 0
    %p97 = por %p95, %p96
    %p98 = scmp.ne.s32.totalorder %s90, %s92
    %p99 = scmp.eq.s32.totalorder %s19, 1
    %p100 = por %p98, %p99
    %p101 = scmp.ne.s32.totalorder %s92, %s93
    %p102 = scmp.eq.s32.totalorder %s19, 0
    %p103 = por %p101, %p102
    %p104 = scmp.ne.s32.totalorder %s92, %s93
    %p105 = scmp.eq.s32.totalorder %s20, 1
    %p106 = por %p104, %p105
    %p108 = scmp.ne.s32.totalorder %s93, %s107
    %p109 = scmp.eq.s32.totalorder %s20, 0
    %p110 = por %p108, %p109
    %s112 = sadd.s32 %s111, 1
    %p115 = scmp.eq.s32.totalorder %s14, 1
    %p116 = scmp.ne.s32.totalorder %s111, %s113
    %p117 = scmp.eq.s32.totalorder %s14, 0
    %p118 = por %p116, %p117
    %p119 = scmp.ne.s32.totalorder %s111, %s113
    %p120 = scmp.eq.s32.totalorder %s19, 1
    %p121 = por %p119, %p120
    %p122 = scmp.ne.s32.totalorder %s113, %s114
    %p123 = scmp.eq.s32.totalorder %s19, 0
    %p124 = por %p122, %p123
    %p125 = scmp.ne.s32.totalorder %s113, %s114
    %p126 = scmp.eq.s32.totalorder %s20, 1
    %p127 = por %p125, %p126
    %p129 = scmp.ne.s32.totalorder %s114, %s128
    %p130 = scmp.eq.s32.totalorder %s20, 0
    %p131 = por %p129, %p130
    %s133 = sadd.s32 %s132, 1
    %p136 = scmp.eq.s32.totalorder %s14, 1
    %p137 = scmp.ne.s32.totalorder %s132, %s134
    %p138 = scmp.eq.s32.totalorder %s14, 0
    %p139 = por %p137, %p138
    %p140 = scmp.ne.s32.totalorder %s132, %s134
    %p141 = scmp.eq.s32.totalorder %s19, 1
    %p142 = por %p140, %p141
    %p143 = scmp.ne.s32.totalorder %s134, %s135
    %p144 = scmp.eq.s32.totalorder %s19, 0
    %p145 = por %p143, %p144
    %p146 = scmp.ne.s32.totalorder %s134, %s135
    %p147 = scmp.eq.s32.totalorder %s20, 1
    %p148 = por %p146, %p147
    %p150 = scmp.ne.s32.totalorder %s135, %s149
    %p151 = scmp.eq.s32.totalorder %s20, 0
    %p152 = por %p150, %p151
    %s154 = sadd.s32 %s153, 1
    %p157 = scmp.eq.s32.totalorder %s14, 1
    %p158 = scmp.ne.s32.totalorder %s153, %s155
    %p159 = scmp.eq.s32.totalorder %s14, 0
    %p160 = por %p158, %p159
    %p161 = scmp.ne.s32.totalorder %s153, %s155
    %p162 = scmp.eq.s32.totalorder %s19, 1
    %p163 = por %p161, %p162
    %p164 = scmp.ne.s32.totalorder %s155, %s156
    %p165 = scmp.eq.s32.totalorder %s19, 0
    %p166 = por %p164, %p165
    %p167 = scmp.ne.s32.totalorder %s155, %s156
    %p168 = scmp.eq.s32.totalorder %s20, 1
    %p169 = por %p167, %p168
    %p171 = scmp.ne.s32.totalorder %s156, %s170
    %p172 = scmp.eq.s32.totalorder %s20, 0
    %p173 = por %p171, %p172
    %s175 = sadd.s32 %s174, 1
    %p178 = scmp.eq.s32.totalorder %s14, 1
    %p179 = scmp.ne.s32.totalorder %s174, %s176
    %p180 = scmp.eq.s32.totalorder %s14, 0
    %p181 = por %p179, %p180
    %p182 = scmp.ne.s32.totalorder %s174, %s176
    %p183 = scmp.eq.s32.totalorder %s19, 1
    %p184 = por %p182, %p183
    %p185 = scmp.ne.s32.totalorder %s176, %s177
    %p186 = scmp.eq.s32.totalorder %s19, 0
    %p187 = por %p185, %p186
    %p188 = scmp.ne.s32.totalorder %s176, %s177
    %p189 = scmp.eq.s32.totalorder %s20, 1
    %p190 = por %p188, %p189
    %p192 = scmp.ne.s32.totalorder %s177, %s191
    %p193 = scmp.eq.s32.totalorder %s20, 0
    %p194 = por %p192, %p193
    %s195 = ssub.s32 %s14, %s21
    %p196 = scmp.eq.s32.totalorder %s195, 0
    %s198 = sadd.s32 %s197, 1
    %s199 = scalar_select %p196, %s197, %s198
    %p202 = pneg %p196
    %p203 = scmp.eq.s32.totalorder %s14, 1
    %p204 = por %p202, %p203
    %p205 = scmp.ne.s32.totalorder %s197, %s200
    %p206 = scmp.eq.s32.totalorder %s14, 0
    %p207 = por %p205, %p206
    %p208 = scmp.ne.s32.totalorder %s197, %s200
    %p209 = scmp.eq.s32.totalorder %s19, 1
    %p210 = por %p208, %p209
    %p211 = scmp.ne.s32.totalorder %s200, %s201
    %p212 = scmp.eq.s32.totalorder %s19, 0
    %p213 = por %p211, %p212
    %p214 = scmp.ne.s32.totalorder %s200, %s201
    %p215 = scmp.eq.s32.totalorder %s20, 1
    %p216 = por %p214, %p215
    %p218 = scmp.ne.s32.totalorder %s201, %s217
    %p219 = scmp.eq.s32.totalorder %s20, 0
    %p220 = por %p218, %p219
    %p221 = scmp.le.s32.totalorder 1, %s14
    %p222 = scmp.lt.s32.totalorder %s14, 3
    %p223 = pnand %p221, %p222
    %p224 = pneg %p223
    // Predicated region
    $region9: #{cnn_forward.1} parent=5 // pred_check
      _
    $region10: #{cnn_forward.1} parent=5 // pred_check_branch
      %226 = sbr.rel (%p223) target = $region12
    $region11: #{cnn_forward.1} parent=5 // pred_region
      %s227 = ssub.s32 %s14, 1
      // Predicated region
      $region13: #{cnn_forward.1} parent=11 // pred_check
        %p228 = pneg %p61
      $region14: #{cnn_forward.1} parent=11 // pred_check_branch
        %230 = sbr.rel (%p228) target = $region16
      $region15: #{cnn_forward.1} parent=11 // pred_region
        _
      $region16: #{cnn_forward.1} parent=11 // pred_fallthru
        _
      // Predicated region
      $region17: #{cnn_forward.1} parent=11 // pred_check
        %p231 = pneg %p82
      $region18: #{cnn_forward.1} parent=11 // pred_check_branch
        %233 = sbr.rel (%p231) target = $region20
      $region19: #{cnn_forward.1} parent=11 // pred_region
        _
      $region20: #{cnn_forward.1} parent=11 // pred_fallthru
        _
      // Predicated region
      $region21: #{cnn_forward.1} parent=11 // pred_check
        %p234 = pneg %p103
      $region22: #{cnn_forward.1} parent=11 // pred_check_branch
        %236 = sbr.rel (%p234) target = $region24
      $region23: #{cnn_forward.1} parent=11 // pred_region
        _
      $region24: #{cnn_forward.1} parent=11 // pred_fallthru
        _
      // Predicated region
      $region25: #{cnn_forward.1} parent=11 // pred_check
        %p237 = pneg %p124
      $region26: #{cnn_forward.1} parent=11 // pred_check_branch
        %239 = sbr.rel (%p237) target = $region28
      $region27: #{cnn_forward.1} parent=11 // pred_region
        _
      $region28: #{cnn_forward.1} parent=11 // pred_fallthru
        _
      // Predicated region
      $region29: #{cnn_forward.1} parent=11 // pred_check
        %p240 = pneg %p145
      $region30: #{cnn_forward.1} parent=11 // pred_check_branch
        %242 = sbr.rel (%p240) target = $region32
      $region31: #{cnn_forward.1} parent=11 // pred_region
        _
      $region32: #{cnn_forward.1} parent=11 // pred_fallthru
        _
      // Predicated region
      $region33: #{cnn_forward.1} parent=11 // pred_check
        %p243 = pneg %p166
      $region34: #{cnn_forward.1} parent=11 // pred_check_branch
        %245 = sbr.rel (%p243) target = $region36
      $region35: #{cnn_forward.1} parent=11 // pred_region
        _
      $region36: #{cnn_forward.1} parent=11 // pred_fallthru
        _
      // Predicated region
      $region37: #{cnn_forward.1} parent=11 // pred_check
        %p246 = pneg %p187
      $region38: #{cnn_forward.1} parent=11 // pred_check_branch
        %248 = sbr.rel (%p246) target = $region40
      $region39: #{cnn_forward.1} parent=11 // pred_region
        _
      $region40: #{cnn_forward.1} parent=11 // pred_fallthru
        _
    $region12: #{cnn_forward.1} parent=5 // pred_fallthru
      _
    %p249 = scmp.lt.s32.totalorder %s14, 2
    // Predicated region
    $region41: #{cnn_forward.1} parent=5 // pred_check
      %p250 = pneg %p249
    $region42: #{cnn_forward.1} parent=5 // pred_check_branch
      %252 = sbr.rel (%p250) target = $region44
    $region43: #{cnn_forward.1} parent=5 // pred_region
      // Predicated region
      $region45: #{cnn_forward.1} parent=43 // pred_check
        %p253 = pneg %p34
      $region46: #{cnn_forward.1} parent=43 // pred_check_branch
        %255 = sbr.rel (%p253) target = $region48
      $region47: #{cnn_forward.1} parent=43 // pred_region
        %s256 = smul.u32 16, %s14
        %p257 = scmp.lt.s32.totalorder %s256, 31
        %s258 = scalar_select %p257, %s256, 31
        %s259 = smul.addr %s258, 3
        %s260 = smul.addr %s259, 4
        %s261 = scalar_lea.vmem %s0, %s260
        %s262 = smul.u32 16, %s14
      $region48: #{cnn_forward.1} parent=43 // pred_fallthru
        _
    $region44: #{cnn_forward.1} parent=5 // pred_fallthru
      _
    %p263 = scmp.le.s32.totalorder 1, %s14
    %p264 = scmp.lt.s32.totalorder %s14, 3
    %p265 = pnand %p263, %p264
    %p266 = pneg %p265
    // Predicated region
    $region49: #{cnn_forward.1} parent=5 // pred_check
      _
    $region50: #{cnn_forward.1} parent=5 // pred_check_branch
      %268 = sbr.rel (%p265) target = $region52
    $region51: #{cnn_forward.1} parent=5 // pred_region
      %s269 = ssub.s32 %s14, 1
      %s270 = smul.u32 16, %s19
      %p271 = scmp.lt.s32.totalorder %s270, 31
      %s272 = scalar_select %p271, %s270, 31
      %s273 = smul.addr %s272, 3
      %s274 = smul.addr %s273, 4
      %s275 = scalar_lea.vmem %s0, %s274
      %p276 = pneg %p40
      %p277 = pneg %p37
      %p278 = pneg %p61
      %p279 = pneg %p58
      %p280 = pneg %p82
      %p281 = pneg %p79
      %p282 = pneg %p103
      %p283 = pneg %p100
      %p284 = pneg %p124
      %p285 = pneg %p121
      %p286 = pneg %p145
      %p287 = pneg %p142
      %p288 = pneg %p166
      %p289 = pneg %p163
      %p290 = pneg %p187
      %p291 = pneg %p184
      %p292 = pneg %p213
      %p293 = pneg %p210
      %p294 = scmp.lt.s32.totalorder %s19, 1
      %s295 = scalar_select %p294, %s19, 1
      %s296 = scalar_lea.vmem %s8, %s295
      %s297 = smul.u32 16, %s19
      %p298 = scmp.lt.s32.totalorder %s297, 31
      %s299 = scalar_select %p298, %s297, 31
      %s300 = smul.addr %s299, 3
      %s301 = smul.addr %s300, 4
      %s302 = scalar_lea.vmem %s0, %s301
      %s303 = smul.u32 16, %s19
      %p304 = scmp.lt.s32.totalorder %s19, 1
      %s305 = scalar_select %p304, %s19, 1
      %s306 = scalar_lea.vmem %s8, %s305
      %v308 = vld [vmem:[%s302] sm:$0xff]
      %v309 = vld [vmem:[%s302 + $0x8] sm:$0xf]
      %v310 = vld [vmem:[%s302 + $0xc] sm:$0xff]
      %v311 = vld [vmem:[%s302 + $0x14] sm:$0xf]
      %v312 = vld [vmem:[%s302 + $0x18] sm:$0xff]
      %v313 = vld [vmem:[%s302 + $0x20] sm:$0xf]
      %v314 = vld [vmem:[%s302 + $0x24] sm:$0xff]
      %v315 = vld [vmem:[%s302 + $0x2c] sm:$0xf]
      %v316 = vld [vmem:[%s302 + $0x30] sm:$0xff]
      %v317 = vld [vmem:[%s302 + $0x38] sm:$0xf]
      %v318 = vld [vmem:[%s302 + $0x3c] sm:$0xff]
      %v319 = vld [vmem:[%s302 + $0x44] sm:$0xf]
      %v320 = vld [vmem:[%s302 + $0x48] sm:$0xff]
      %v321 = vld [vmem:[%s302 + $0x50] sm:$0xf]
      %v322 = vld [vmem:[%s302 + $0x54] sm:$0xff]
      %v323 = vld [vmem:[%s302 + $0x5c] sm:$0xf]
      %v324 = vld [vmem:[%s302 + $0x60] sm:$0xff]
      %v325 = vld [vmem:[%s302 + $0x68] sm:$0xf]
      %v326 = vld [vmem:[%s302 + $0x6c] sm:$0xff]
      %v327 = vld [vmem:[%s302 + $0x74] sm:$0xf]
      %v328 = vld [vmem:[%s302 + $0x78] sm:$0xff]
      %v329 = vld [vmem:[%s302 + $0x80] sm:$0xf]
      %v330 = vld [vmem:[%s302 + $0x84] sm:$0xff]
      %v331 = vld [vmem:[%s302 + $0x8c] sm:$0xf]
      %v332 = vld [vmem:[%s302 + $0x90] sm:$0xff]
      %v333 = vld [vmem:[%s302 + $0x98] sm:$0xf]
      %v334 = vld [vmem:[%s302 + $0x9c] sm:$0xff]
      %v335 = vld [vmem:[%s302 + $0xa4] sm:$0xf]
      %v336 = vld [vmem:[%s302 + $0xa8] sm:$0xff]
      %v337 = vld [vmem:[%s302 + $0xb0] sm:$0xf]
      %v338 = vld [vmem:[%s302 + $0xb4] sm:$0xff]
      %v339 = vld [vmem:[%s302 + $0xbc] sm:$0xf]
      %v340 = vld [vmem:[%s7] sm:$0xff]
      %v341 = vld [vmem:[%s7 + $0x8] sm:$0xff]
      %v342 = vld [vmem:[%s7 + $0x10] sm:$0xff]
      %v343 = vld [vmem:[%s7 + $0x18] sm:$0xff]
      %v344 = vld [vmem:[%s7 + $0x20] sm:$0xff]
      %v345 = vld [vmem:[%s7 + $0x28] sm:$0xff]
      %v346 = vld [vmem:[%s7 + $0x30] sm:$0xff]
      %v347 = vld [vmem:[%s7 + $0x38] sm:$0xff]
      %v348 = vld [vmem:[%s7 + $0x40] sm:$0xff]
      %v349 = vld [vmem:[%s7 + $0x48] sm:$0xff]
      %v350 = vld [vmem:[%s7 + $0x50] sm:$0xff]
      %v351 = vld [vmem:[%s7 + $0x58] sm:$0xff]
      %v352 = vld [vmem:[%s7 + $0x60] sm:$0xff]
      %v353 = vld [vmem:[%s7 + $0x68] sm:$0xff]
      %v354 = vld [vmem:[%s7 + $0x70] sm:$0xff]
      %v355 = vld [vmem:[%s7 + $0x78] sm:$0xff]
      %v356 = vld [vmem:[%s7 + $0x80] sm:$0xff]
      %v357 = vld [vmem:[%s7 + $0x88] sm:$0xff]
      %v358 = vld [vmem:[%s7 + $0x90] sm:$0xff]
      %v359 = vld [vmem:[%s7 + $0x98] sm:$0xff]
      %v360 = vld [vmem:[%s7 + $0xa0] sm:$0xff]
      %v361 = vld [vmem:[%s7 + $0xa8] sm:$0xff]
      %v362 = vld [vmem:[%s7 + $0xb0] sm:$0xff]
      %v363 = vld [vmem:[%s7 + $0xb8] sm:$0xff]
      %v364 = vld [vmem:[%s7 + $0xc0] sm:$0xff]
      %v365 = vld [vmem:[%s7 + $0xc8] sm:$0xff]
      %v366 = vld [vmem:[%s7 + $0xd0] sm:$0xff]
      %v367 = vld [vmem:[%s7 + $0xd8] sm:$0xff]
      %v368 = vld [vmem:[%s7 + $0xe0] sm:$0xff]
      %v369 = vld [vmem:[%s7 + $0xe8] sm:$0xff]
      %v370 = vld [vmem:[%s7 + $0xf0] sm:$0xff]
      %v371 = vld [vmem:[%s7 + $0xf8] sm:$0xff]
      %v372 = vld [vmem:[%s7 + $0x100] sm:$0xff]
      %v373 = vld [vmem:[%s7 + $0x108] sm:$0xff]
      %v374 = vld [vmem:[%s7 + $0x110] sm:$0xff]
      %v375 = vld [vmem:[%s7 + $0x118] sm:$0xff]
      %v376 = vld [vmem:[%s7 + $0x120] sm:$0xff]
      %v377 = vld [vmem:[%s7 + $0x128] sm:$0xff]
      %v378 = vld [vmem:[%s7 + $0x130] sm:$0xff]
      %v379 = vld [vmem:[%s7 + $0x138] sm:$0xff]
      %v380 = vld [vmem:[%s7 + $0x140] sm:$0xff]
      %v381 = vld [vmem:[%s7 + $0x148] sm:$0xff]
      %v382 = vld [vmem:[%s7 + $0x150] sm:$0xff]
      %v383 = vld [vmem:[%s7 + $0x158] sm:$0xff]
      %v384 = vld [vmem:[%s7 + $0x160] sm:$0xff]
      %v385 = vld [vmem:[%s7 + $0x168] sm:$0xff]
      %v386 = vld [vmem:[%s7 + $0x170] sm:$0xff]
      %v387 = vld [vmem:[%s7 + $0x178] sm:$0xff]
      %v388 = vld [vmem:[%s7 + $0x180] sm:$0xff]
      %v389 = vld [vmem:[%s7 + $0x188] sm:$0xff]
      %v390 = vld [vmem:[%s7 + $0x190] sm:$0xff]
      %v391 = vld [vmem:[%s7 + $0x198] sm:$0xff]
      %v392 = vld [vmem:[%s7 + $0x1a0] sm:$0xff]
      %v393 = vld [vmem:[%s7 + $0x1a8] sm:$0xff]
      %v394 = vld [vmem:[%s7 + $0x1b0] sm:$0xff]
      %v395 = vld [vmem:[%s7 + $0x1b8] sm:$0xff]
      %v396 = vld [vmem:[%s7 + $0x1c0] sm:$0xff]
      %v397 = vld [vmem:[%s7 + $0x1c8] sm:$0xff]
      %v398 = vld [vmem:[%s7 + $0x1d0] sm:$0xff]
      %v399 = vld [vmem:[%s7 + $0x1d8] sm:$0xff]
      %v400 = vld [vmem:[%s7 + $0x1e0] sm:$0xff]
      %v401 = vld [vmem:[%s7 + $0x1e8] sm:$0xff]
      %v402 = vld [vmem:[%s7 + $0x1f0] sm:$0xff]
      %v403 = vld [vmem:[%s7 + $0x1f8] sm:$0xff]
      %v404 = vld [vmem:[%s7 + $0x200] sm:$0xff]
      %v405 = vld [vmem:[%s7 + $0x208] sm:$0xff]
      %v406 = vld [vmem:[%s7 + $0x210] sm:$0xff]
      %v407 = vld [vmem:[%s7 + $0x218] sm:$0xff]
      %v408 = vld [vmem:[%s7 + $0x220] sm:$0xff]
      %v409 = vld [vmem:[%s7 + $0x228] sm:$0xff]
      %v410 = vld [vmem:[%s7 + $0x230] sm:$0xff]
      %v411 = vld [vmem:[%s7 + $0x238] sm:$0xff]
      %v412 = vld [vmem:[%s7 + $0x240] sm:$0xff]
      %v413 = vld [vmem:[%s7 + $0x248] sm:$0xff]
      %v414 = vld [vmem:[%s7 + $0x250] sm:$0xff]
      %v415 = vld [vmem:[%s7 + $0x258] sm:$0xff]
      %v416 = vld [vmem:[%s7 + $0x260] sm:$0xff]
      %v417 = vld [vmem:[%s7 + $0x268] sm:$0xff]
      %v418 = vld [vmem:[%s7 + $0x270] sm:$0xff]
      %v419 = vld [vmem:[%s7 + $0x278] sm:$0xff]
      %v420 = vld [vmem:[%s7 + $0x280] sm:$0xff]
      %v421 = vld [vmem:[%s7 + $0x288] sm:$0xff]
      %v422 = vld [vmem:[%s7 + $0x290] sm:$0xff]
      %v423 = vld [vmem:[%s7 + $0x298] sm:$0xff]
      %v424 = vld [vmem:[%s7 + $0x2a0] sm:$0xff]
      %v425 = vld [vmem:[%s7 + $0x2a8] sm:$0xff]
      %v426 = vld [vmem:[%s7 + $0x2b0] sm:$0xff]
      %v427 = vld [vmem:[%s7 + $0x2b8] sm:$0xff]
      %v428 = vld [vmem:[%s7 + $0x2c0] sm:$0xff]
      %v429 = vld [vmem:[%s7 + $0x2c8] sm:$0xff]
      %v430 = vld [vmem:[%s7 + $0x2d0] sm:$0xff]
      %v431 = vld [vmem:[%s7 + $0x2d8] sm:$0xff]
      %v432 = vld [vmem:[%s7 + $0x2e0] sm:$0xff]
      %v433 = vld [vmem:[%s7 + $0x2e8] sm:$0xff]
      %v434 = vld [vmem:[%s7 + $0x2f0] sm:$0xff]
      %v435 = vld [vmem:[%s7 + $0x2f8] sm:$0xff]
      %v436 = vld [vmem:[%s7 + $0x300] sm:$0xff]
      %v437 = vld [vmem:[%s7 + $0x308] sm:$0xff]
      %v438 = vld [vmem:[%s7 + $0x310] sm:$0xff]
      %v439 = vld [vmem:[%s7 + $0x318] sm:$0xff]
      %v440 = vld [vmem:[%s7 + $0x320] sm:$0xff]
      %v441 = vld [vmem:[%s7 + $0x328] sm:$0xff]
      %v442 = vld [vmem:[%s7 + $0x330] sm:$0xff]
      %v443 = vld [vmem:[%s7 + $0x338] sm:$0xff]
      %v444 = vld [vmem:[%s7 + $0x20] sm:$0x1]
      %v445 = vld [vmem:[%s1] sm:$0xff]
      %v446 = vld [vmem:[%s1 + $0x8] sm:$0xf]
      %v447 = vld [vmem:[%s1 + $0xc] sm:$0xff]
      %v448 = vld [vmem:[%s1 + $0x14] sm:$0xf]
      %v449 = vld [vmem:[%s1 + $0x18] sm:$0xff]
      %v450 = vld [vmem:[%s1 + $0x20] sm:$0xf]
      %v451 = vld [vmem:[%s1 + $0x24] sm:$0xff]
      %v452 = vld [vmem:[%s1 + $0x2c] sm:$0xf]
      %v453 = vld [vmem:[%s1 + $0x30] sm:$0xff]
      %v454 = vld [vmem:[%s1 + $0x38] sm:$0xf]
      %v455 = vld [vmem:[%s1 + $0x3c] sm:$0xff]
      %v456 = vld [vmem:[%s1 + $0x44] sm:$0xf]
      %v457 = vld [vmem:[%s1 + $0x48] sm:$0xff]
      %v458 = vld [vmem:[%s1 + $0x50] sm:$0xf]
      %v459 = vld [vmem:[%s1 + $0x54] sm:$0xff]
      %v460 = vld [vmem:[%s1 + $0x5c] sm:$0xf]
      %v461 = vld [vmem:[%s1 + $0x60] sm:$0xff]
      %v462 = vld [vmem:[%s1 + $0x68] sm:$0xf]
      %v463 = vld [vmem:[%s1 + $0x6c] sm:$0xff]
      %v464 = vld [vmem:[%s1 + $0x74] sm:$0xf]
      %v465 = vld [vmem:[%s1 + $0x78] sm:$0xff]
      %v466 = vld [vmem:[%s1 + $0x80] sm:$0xf]
      %v467 = vld [vmem:[%s1 + $0x84] sm:$0xff]
      %v468 = vld [vmem:[%s1 + $0x8c] sm:$0xf]
      %v469 = vld [vmem:[%s1 + $0x90] sm:$0xff]
      %v470 = vld [vmem:[%s1 + $0x98] sm:$0xf]
      %v471 = vld [vmem:[%s1 + $0x9c] sm:$0xff]
      %v472 = vld [vmem:[%s1 + $0xa4] sm:$0xf]
      %v473 = vld [vmem:[%s1 + $0xa8] sm:$0xff]
      %v474 = vld [vmem:[%s1 + $0xb0] sm:$0xf]
      %v475 = vld [vmem:[%s1 + $0xb4] sm:$0xff]
      %v476 = vld [vmem:[%s1 + $0xbc] sm:$0xf]
      %v477 = vld [vmem:[%s1 + $0xc0] sm:$0xff]
      %v478 = vld [vmem:[%s1 + $0xc8] sm:$0xf]
      %v479 = vld [vmem:[%s1 + $0xcc] sm:$0xff]
      %v480 = vld [vmem:[%s1 + $0xd4] sm:$0xf]
      %v481 = vld [vmem:[%s1 + $0xd8] sm:$0xff]
      %v482 = vld [vmem:[%s1 + $0xe0] sm:$0xf]
      %v483 = vld [vmem:[%s1 + $0xe4] sm:$0xff]
      %v484 = vld [vmem:[%s1 + $0xec] sm:$0xf]
      %v485 = vld [vmem:[%s1 + $0xf0] sm:$0xff]
      %v486 = vld [vmem:[%s1 + $0xf8] sm:$0xf]
      %v487 = vld [vmem:[%s1 + $0xfc] sm:$0xff]
      %v488 = vld [vmem:[%s1 + $0x104] sm:$0xf]
      %v489 = vld [vmem:[%s1 + $0x108] sm:$0xff]
      %v490 = vld [vmem:[%s1 + $0x110] sm:$0xf]
      %v491 = vld [vmem:[%s1 + $0x114] sm:$0xff]
      %v492 = vld [vmem:[%s1 + $0x11c] sm:$0xf]
      %v493 = vld [vmem:[%s1 + $0x120] sm:$0xff]
      %v494 = vld [vmem:[%s1 + $0x128] sm:$0xf]
      %v495 = vld [vmem:[%s1 + $0x12c] sm:$0xff]
      %v496 = vld [vmem:[%s1 + $0x134] sm:$0xf]
      %v497 = vld [vmem:[%s1 + $0x138] sm:$0xff]
      %v498 = vld [vmem:[%s1 + $0x140] sm:$0xf]
      %v499 = vld [vmem:[%s1 + $0x144] sm:$0xff]
      %v500 = vld [vmem:[%s1 + $0x14c] sm:$0xf]
      %v501 = vld [vmem:[%s1 + $0x150] sm:$0xff]
      %v502 = vld [vmem:[%s1 + $0x158] sm:$0xf]
      %v503 = vld [vmem:[%s1 + $0x15c] sm:$0xff]
      %v504 = vld [vmem:[%s1 + $0x164] sm:$0xf]
      %v505 = vld [vmem:[%s1 + $0x168] sm:$0xff]
      %v506 = vld [vmem:[%s1 + $0x170] sm:$0xf]
      %v507 = vld [vmem:[%s1 + $0x174] sm:$0xff]
      %v508 = vld [vmem:[%s1 + $0x17c] sm:$0xf]
      %v509 = vld [vmem:[%s1 + $0x180] sm:$0xff]
      %v510 = vld [vmem:[%s1 + $0x188] sm:$0xf]
      %v511 = vld [vmem:[%s1 + $0x18c] sm:$0xff]
      %v512 = vld [vmem:[%s1 + $0x194] sm:$0xf]
      %v513 = vld [vmem:[%s1 + $0x198] sm:$0xff]
      %v514 = vld [vmem:[%s1 + $0x1a0] sm:$0xf]
      %v515 = vld [vmem:[%s1 + $0x1a4] sm:$0xff]
      %v516 = vld [vmem:[%s1 + $0x1ac] sm:$0xf]
      %v517 = vld [vmem:[%s1 + $0x1b0] sm:$0xff]
      %v518 = vld [vmem:[%s1 + $0x1b8] sm:$0xf]
      %v519 = vld [vmem:[%s1 + $0x1bc] sm:$0xff]
      %v520 = vld [vmem:[%s1 + $0x1c4] sm:$0xf]
      %v521 = vld [vmem:[%s1 + $0x1c8] sm:$0xff]
      %v522 = vld [vmem:[%s1 + $0x1d0] sm:$0xf]
      %v523 = vld [vmem:[%s1 + $0x1d4] sm:$0xff]
      %v524 = vld [vmem:[%s1 + $0x1dc] sm:$0xf]
      %v525 = vld [vmem:[%s1 + $0x1e0] sm:$0xff]
      %v526 = vld [vmem:[%s1 + $0x1e8] sm:$0xf]
      %v527 = vld [vmem:[%s1 + $0x1ec] sm:$0xff]
      %v528 = vld [vmem:[%s1 + $0x1f4] sm:$0xf]
      %v529 = vld [vmem:[%s1 + $0x1f8] sm:$0xff]
      %v530 = vld [vmem:[%s1 + $0x200] sm:$0xf]
      %v531 = vld [vmem:[%s1 + $0x204] sm:$0xff]
      %v532 = vld [vmem:[%s1 + $0x20c] sm:$0xf]
      %v533 = vld [vmem:[%s1 + $0x210] sm:$0xff]
      %v534 = vld [vmem:[%s1 + $0x218] sm:$0xf]
      %v535 = vld [vmem:[%s1 + $0x21c] sm:$0xff]
      %v536 = vld [vmem:[%s1 + $0x224] sm:$0xf]
      %v537 = vld [vmem:[%s1 + $0x228] sm:$0xff]
      %v538 = vld [vmem:[%s1 + $0x230] sm:$0xf]
      %v539 = vld [vmem:[%s1 + $0x234] sm:$0xff]
      %v540 = vld [vmem:[%s1 + $0x23c] sm:$0xf]
      %v541 = vld [vmem:[%s1 + $0x240] sm:$0xff]
      %v542 = vld [vmem:[%s1 + $0x248] sm:$0xf]
      %v543 = vld [vmem:[%s1 + $0x24c] sm:$0xff]
      %v544 = vld [vmem:[%s1 + $0x254] sm:$0xf]
      %v545 = vld [vmem:[%s1 + $0x258] sm:$0xff]
      %v546 = vld [vmem:[%s1 + $0x260] sm:$0xf]
      %v547 = vld [vmem:[%s1 + $0x264] sm:$0xff]
      %v548 = vld [vmem:[%s1 + $0x26c] sm:$0xf]
      %v549 = vld [vmem:[%s1 + $0x270] sm:$0xff]
      %v550 = vld [vmem:[%s1 + $0x278] sm:$0xf]
      %v551 = vld [vmem:[%s1 + $0x27c] sm:$0xff]
      %v552 = vld [vmem:[%s1 + $0x284] sm:$0xf]
      %v553 = vld [vmem:[%s1 + $0x288] sm:$0xff]
      %v554 = vld [vmem:[%s1 + $0x290] sm:$0xf]
      %v555 = vld [vmem:[%s1 + $0x294] sm:$0xff]
      %v556 = vld [vmem:[%s1 + $0x29c] sm:$0xf]
      %v557 = vld [vmem:[%s1 + $0x2a0] sm:$0xff]
      %v558 = vld [vmem:[%s1 + $0x2a8] sm:$0xf]
      %v559 = vld [vmem:[%s1 + $0x2ac] sm:$0xff]
      %v560 = vld [vmem:[%s1 + $0x2b4] sm:$0xf]
      %v561 = vld [vmem:[%s1 + $0x2b8] sm:$0xff]
      %v562 = vld [vmem:[%s1 + $0x2c0] sm:$0xf]
      %v563 = vld [vmem:[%s1 + $0x2c4] sm:$0xff]
      %v564 = vld [vmem:[%s1 + $0x2cc] sm:$0xf]
      %v565 = vld [vmem:[%s1 + $0x2d0] sm:$0xff]
      %v566 = vld [vmem:[%s1 + $0x2d8] sm:$0xf]
      %v567 = vld [vmem:[%s1 + $0x2dc] sm:$0xff]
      %v568 = vld [vmem:[%s1 + $0x2e4] sm:$0xf]
      %v569 = vld [vmem:[%s1 + $0x2e8] sm:$0xff]
      %v570 = vld [vmem:[%s1 + $0x2f0] sm:$0xf]
      %v571 = vld [vmem:[%s1 + $0x2f4] sm:$0xff]
      %v572 = vld [vmem:[%s1 + $0x2fc] sm:$0xf]
      %v573 = vld [vmem:[%s1 + $0x300] sm:$0xff]
      %v574 = vld [vmem:[%s1 + $0x308] sm:$0xf]
      %v575 = vld [vmem:[%s1 + $0x30c] sm:$0xff]
      %v576 = vld [vmem:[%s1 + $0x314] sm:$0xf]
      %v577 = vld [vmem:[%s1 + $0x318] sm:$0xff]
      %v578 = vld [vmem:[%s1 + $0x320] sm:$0xf]
      %v579 = vld [vmem:[%s1 + $0x324] sm:$0xff]
      %v580 = vld [vmem:[%s1 + $0x32c] sm:$0xf]
      %v581 = vld [vmem:[%s1 + $0x330] sm:$0xff]
      %v582 = vld [vmem:[%s1 + $0x338] sm:$0xf]
      %v583 = vld [vmem:[%s1 + $0x33c] sm:$0xff]
      %v584 = vld [vmem:[%s1 + $0x344] sm:$0xf]
      %v585 = vld [vmem:[%s1 + $0x348] sm:$0xff]
      %v586 = vld [vmem:[%s1 + $0x350] sm:$0xf]
      %v587 = vld [vmem:[%s1 + $0x354] sm:$0xff]
      %v588 = vld [vmem:[%s1 + $0x35c] sm:$0xf]
      %v589 = vld [vmem:[%s1 + $0x360] sm:$0xff]
      %v590 = vld [vmem:[%s1 + $0x368] sm:$0xf]
      %v591 = vld [vmem:[%s1 + $0x36c] sm:$0xff]
      %v592 = vld [vmem:[%s1 + $0x374] sm:$0xf]
      %v593 = vld [vmem:[%s1 + $0x378] sm:$0xff]
      %v594 = vld [vmem:[%s1 + $0x380] sm:$0xf]
      %v595 = vld [vmem:[%s1 + $0x384] sm:$0xff]
      %v596 = vld [vmem:[%s1 + $0x38c] sm:$0xf]
      %v597 = vld [vmem:[%s1 + $0x390] sm:$0xff]
      %v598 = vld [vmem:[%s1 + $0x398] sm:$0xf]
      %v599 = vld [vmem:[%s1 + $0x39c] sm:$0xff]
      %v600 = vld [vmem:[%s1 + $0x3a4] sm:$0xf]
      %v601 = vld [vmem:[%s1 + $0x3a8] sm:$0xff]
      %v602 = vld [vmem:[%s1 + $0x3b0] sm:$0xf]
      %v603 = vld [vmem:[%s1 + $0x3b4] sm:$0xff]
      %v604 = vld [vmem:[%s1 + $0x3bc] sm:$0xf]
      %v605 = vld [vmem:[%s1 + $0x3c0] sm:$0xff]
      %v606 = vld [vmem:[%s1 + $0x3c8] sm:$0xf]
      %v607 = vld [vmem:[%s1 + $0x3cc] sm:$0xff]
      %v608 = vld [vmem:[%s1 + $0x3d4] sm:$0xf]
      %v609 = vld [vmem:[%s1 + $0x3d8] sm:$0xff]
      %v610 = vld [vmem:[%s1 + $0x3e0] sm:$0xf]
      %v611 = vld [vmem:[%s1 + $0x3e4] sm:$0xff]
      %v612 = vld [vmem:[%s1 + $0x3ec] sm:$0xf]
      %v613 = vld [vmem:[%s1 + $0x3f0] sm:$0xff]
      %v614 = vld [vmem:[%s1 + $0x3f8] sm:$0xf]
      %v615 = vld [vmem:[%s1 + $0x3fc] sm:$0xff]
      %v616 = vld [vmem:[%s1 + $0x404] sm:$0xf]
      %v617 = vld [vmem:[%s1 + $0x408] sm:$0xff]
      %v618 = vld [vmem:[%s1 + $0x410] sm:$0xf]
      %v619 = vld [vmem:[%s1 + $0x414] sm:$0xff]
      %v620 = vld [vmem:[%s1 + $0x41c] sm:$0xf]
      %v621 = vld [vmem:[%s1 + $0x420] sm:$0xff]
      %v622 = vld [vmem:[%s1 + $0x428] sm:$0xf]
      %v623 = vld [vmem:[%s1 + $0x42c] sm:$0xff]
      %v624 = vld [vmem:[%s1 + $0x434] sm:$0xf]
      %v625 = vld [vmem:[%s1 + $0x438] sm:$0xff]
      %v626 = vld [vmem:[%s1 + $0x440] sm:$0xf]
      %v627 = vld [vmem:[%s1 + $0x444] sm:$0xff]
      %v628 = vld [vmem:[%s1 + $0x44c] sm:$0xf]
      %v629 = vld [vmem:[%s1 + $0x450] sm:$0xff]
      %v630 = vld [vmem:[%s1 + $0x458] sm:$0xf]
      %v631 = vld [vmem:[%s1 + $0x45c] sm:$0xff]
      %v632 = vld [vmem:[%s1 + $0x464] sm:$0xf]
      %v633 = vld [vmem:[%s1 + $0x468] sm:$0xff]
      %v634 = vld [vmem:[%s1 + $0x470] sm:$0xf]
      %v635 = vld [vmem:[%s1 + $0x474] sm:$0xff]
      %v636 = vld [vmem:[%s1 + $0x47c] sm:$0xf]
      %v637 = vld [vmem:[%s1 + $0x480] sm:$0xff]
      %v638 = vld [vmem:[%s1 + $0x488] sm:$0xf]
      %v639 = vld [vmem:[%s1 + $0x48c] sm:$0xff]
      %v640 = vld [vmem:[%s1 + $0x494] sm:$0xf]
      %v641 = vld [vmem:[%s1 + $0x498] sm:$0xff]
      %v642 = vld [vmem:[%s1 + $0x4a0] sm:$0xf]
      %v643 = vld [vmem:[%s1 + $0x4a4] sm:$0xff]
      %v644 = vld [vmem:[%s1 + $0x4ac] sm:$0xf]
      %v645 = vld [vmem:[%s1 + $0x4b0] sm:$0xff]
      %v646 = vld [vmem:[%s1 + $0x4b8] sm:$0xf]
      %v647 = vld [vmem:[%s1 + $0x4bc] sm:$0xff]
      %v648 = vld [vmem:[%s1 + $0x4c4] sm:$0xf]
      %v649 = vld [vmem:[%s1 + $0x4c8] sm:$0xff]
      %v650 = vld [vmem:[%s1 + $0x4d0] sm:$0xf]
      %v651 = vld [vmem:[%s1 + $0x4d4] sm:$0xff]
      %v652 = vld [vmem:[%s1 + $0x4dc] sm:$0xf]
      %654 = vset.pattern.permute.xlu0 0
      %655 = vperm.xlu0 %654, %v340
      %v656 = vpop.permute.xlu0 %655
      %659 = vset.pattern.permute.xlu0 0
      %660 = vperm.xlu0 %659, %v341
      %v661 = vpop.permute.xlu0 %660
      %664 = vset.pattern.permute.xlu0 0
      %665 = vperm.xlu0 %664, %v342
      %v666 = vpop.permute.xlu0 %665
      %669 = vset.pattern.permute.xlu0 0
      %670 = vperm.xlu0 %669, %v343
      %v671 = vpop.permute.xlu0 %670
      %674 = vset.pattern.permute.xlu0 0
      %675 = vperm.xlu0 %674, %v344
      %v676 = vpop.permute.xlu0 %675
      %679 = vset.pattern.permute.xlu0 0
      %680 = vperm.xlu0 %679, %v345
      %v681 = vpop.permute.xlu0 %680
      %684 = vset.pattern.permute.xlu0 0
      %685 = vperm.xlu0 %684, %v346
      %v686 = vpop.permute.xlu0 %685
      %689 = vset.pattern.permute.xlu0 0
      %690 = vperm.xlu0 %689, %v347
      %v691 = vpop.permute.xlu0 %690
      %694 = vset.pattern.permute.xlu0 0
      %695 = vperm.xlu0 %694, %v348
      %v696 = vpop.permute.xlu0 %695
      %699 = vset.pattern.permute.xlu0 0
      %700 = vperm.xlu0 %699, %v349
      %v701 = vpop.permute.xlu0 %700
      %704 = vset.pattern.permute.xlu0 0
      %705 = vperm.xlu0 %704, %v350
      %v706 = vpop.permute.xlu0 %705
      %709 = vset.pattern.permute.xlu0 0
      %710 = vperm.xlu0 %709, %v351
      %v711 = vpop.permute.xlu0 %710
      %714 = vset.pattern.permute.xlu0 0
      %715 = vperm.xlu0 %714, %v352
      %v716 = vpop.permute.xlu0 %715
      %719 = vset.pattern.permute.xlu0 0
      %720 = vperm.xlu0 %719, %v353
      %v721 = vpop.permute.xlu0 %720
      %724 = vset.pattern.permute.xlu0 0
      %725 = vperm.xlu0 %724, %v354
      %v726 = vpop.permute.xlu0 %725
      %729 = vset.pattern.permute.xlu0 0
      %730 = vperm.xlu0 %729, %v355
      %v731 = vpop.permute.xlu0 %730
      %734 = vset.pattern.permute.xlu0 0
      %735 = vperm.xlu0 %734, %v356
      %v736 = vpop.permute.xlu0 %735
      %739 = vset.pattern.permute.xlu0 0
      %740 = vperm.xlu0 %739, %v357
      %v741 = vpop.permute.xlu0 %740
      %744 = vset.pattern.permute.xlu0 0
      %745 = vperm.xlu0 %744, %v358
      %v746 = vpop.permute.xlu0 %745
      %749 = vset.pattern.permute.xlu0 0
      %750 = vperm.xlu0 %749, %v359
      %v751 = vpop.permute.xlu0 %750
      %754 = vset.pattern.permute.xlu0 0
      %755 = vperm.xlu0 %754, %v360
      %v756 = vpop.permute.xlu0 %755
      %759 = vset.pattern.permute.xlu0 0
      %760 = vperm.xlu0 %759, %v361
      %v761 = vpop.permute.xlu0 %760
      %764 = vset.pattern.permute.xlu0 0
      %765 = vperm.xlu0 %764, %v362
      %v766 = vpop.permute.xlu0 %765
      %769 = vset.pattern.permute.xlu0 0
      %770 = vperm.xlu0 %769, %v363
      %v771 = vpop.permute.xlu0 %770
      %774 = vset.pattern.permute.xlu0 0
      %775 = vperm.xlu0 %774, %v364
      %v776 = vpop.permute.xlu0 %775
      %779 = vset.pattern.permute.xlu0 0
      %780 = vperm.xlu0 %779, %v365
      %v781 = vpop.permute.xlu0 %780
      %784 = vset.pattern.permute.xlu0 0
      %785 = vperm.xlu0 %784, %v366
      %v786 = vpop.permute.xlu0 %785
      %789 = vset.pattern.permute.xlu0 0
      %790 = vperm.xlu0 %789, %v367
      %v791 = vpop.permute.xlu0 %790
      %794 = vset.pattern.permute.xlu0 0
      %795 = vperm.xlu0 %794, %v368
      %v796 = vpop.permute.xlu0 %795
      %799 = vset.pattern.permute.xlu0 0
      %800 = vperm.xlu0 %799, %v369
      %v801 = vpop.permute.xlu0 %800
      %804 = vset.pattern.permute.xlu0 0
      %805 = vperm.xlu0 %804, %v370
      %v806 = vpop.permute.xlu0 %805
      %809 = vset.pattern.permute.xlu0 0
      %810 = vperm.xlu0 %809, %v371
      %v811 = vpop.permute.xlu0 %810
      %814 = vset.pattern.permute.xlu0 0
      %815 = vperm.xlu0 %814, %v372
      %v816 = vpop.permute.xlu0 %815
      %819 = vset.pattern.permute.xlu0 0
      %820 = vperm.xlu0 %819, %v373
      %v821 = vpop.permute.xlu0 %820
      %824 = vset.pattern.permute.xlu0 0
      %825 = vperm.xlu0 %824, %v374
      %v826 = vpop.permute.xlu0 %825
      %829 = vset.pattern.permute.xlu0 0
      %830 = vperm.xlu0 %829, %v375
      %v831 = vpop.permute.xlu0 %830
      %834 = vset.pattern.permute.xlu0 0
      %835 = vperm.xlu0 %834, %v376
      %v836 = vpop.permute.xlu0 %835
      %839 = vset.pattern.permute.xlu0 0
      %840 = vperm.xlu0 %839, %v377
      %v841 = vpop.permute.xlu0 %840
      %844 = vset.pattern.permute.xlu0 0
      %845 = vperm.xlu0 %844, %v378
      %v846 = vpop.permute.xlu0 %845
      %849 = vset.pattern.permute.xlu0 0
      %850 = vperm.xlu0 %849, %v379
      %v851 = vpop.permute.xlu0 %850
      %854 = vset.pattern.permute.xlu0 0
      %855 = vperm.xlu0 %854, %v380
      %v856 = vpop.permute.xlu0 %855
      %859 = vset.pattern.permute.xlu0 0
      %860 = vperm.xlu0 %859, %v381
      %v861 = vpop.permute.xlu0 %860
      %864 = vset.pattern.permute.xlu0 0
      %865 = vperm.xlu0 %864, %v382
      %v866 = vpop.permute.xlu0 %865
      %869 = vset.pattern.permute.xlu0 0
      %870 = vperm.xlu0 %869, %v383
      %v871 = vpop.permute.xlu0 %870
      %874 = vset.pattern.permute.xlu0 0
      %875 = vperm.xlu0 %874, %v384
      %v876 = vpop.permute.xlu0 %875
      %879 = vset.pattern.permute.xlu0 0
      %880 = vperm.xlu0 %879, %v385
      %v881 = vpop.permute.xlu0 %880
      %884 = vset.pattern.permute.xlu0 0
      %885 = vperm.xlu0 %884, %v386
      %v886 = vpop.permute.xlu0 %885
      %889 = vset.pattern.permute.xlu0 0
      %890 = vperm.xlu0 %889, %v387
      %v891 = vpop.permute.xlu0 %890
      %894 = vset.pattern.permute.xlu0 0
      %895 = vperm.xlu0 %894, %v388
      %v896 = vpop.permute.xlu0 %895
      %899 = vset.pattern.permute.xlu0 0
      %900 = vperm.xlu0 %899, %v389
      %v901 = vpop.permute.xlu0 %900
      %904 = vset.pattern.permute.xlu0 0
      %905 = vperm.xlu0 %904, %v390
      %v906 = vpop.permute.xlu0 %905
      %909 = vset.pattern.permute.xlu0 0
      %910 = vperm.xlu0 %909, %v391
      %v911 = vpop.permute.xlu0 %910
      %914 = vset.pattern.permute.xlu0 0
      %915 = vperm.xlu0 %914, %v392
      %v916 = vpop.permute.xlu0 %915
      %919 = vset.pattern.permute.xlu0 0
      %920 = vperm.xlu0 %919, %v393
      %v921 = vpop.permute.xlu0 %920
      %924 = vset.pattern.permute.xlu0 0
      %925 = vperm.xlu0 %924, %v394
      %v926 = vpop.permute.xlu0 %925
      %929 = vset.pattern.permute.xlu0 0
      %930 = vperm.xlu0 %929, %v395
      %v931 = vpop.permute.xlu0 %930
      %934 = vset.pattern.permute.xlu0 0
      %935 = vperm.xlu0 %934, %v396
      %v936 = vpop.permute.xlu0 %935
      %939 = vset.pattern.permute.xlu0 0
      %940 = vperm.xlu0 %939, %v397
      %v941 = vpop.permute.xlu0 %940
      %944 = vset.pattern.permute.xlu0 0
      %945 = vperm.xlu0 %944, %v398
      %v946 = vpop.permute.xlu0 %945
      %949 = vset.pattern.permute.xlu0 0
      %950 = vperm.xlu0 %949, %v399
      %v951 = vpop.permute.xlu0 %950
      %954 = vset.pattern.permute.xlu0 0
      %955 = vperm.xlu0 %954, %v400
      %v956 = vpop.permute.xlu0 %955
      %959 = vset.pattern.permute.xlu0 0
      %960 = vperm.xlu0 %959, %v401
      %v961 = vpop.permute.xlu0 %960
      %964 = vset.pattern.permute.xlu0 0
      %965 = vperm.xlu0 %964, %v402
      %v966 = vpop.permute.xlu0 %965
      %969 = vset.pattern.permute.xlu0 0
      %970 = vperm.xlu0 %969, %v403
      %v971 = vpop.permute.xlu0 %970
      %974 = vset.pattern.permute.xlu0 0
      %975 = vperm.xlu0 %974, %v404
      %v976 = vpop.permute.xlu0 %975
      %979 = vset.pattern.permute.xlu0 0
      %980 = vperm.xlu0 %979, %v405
      %v981 = vpop.permute.xlu0 %980
      %984 = vset.pattern.permute.xlu0 0
      %985 = vperm.xlu0 %984, %v406
      %v986 = vpop.permute.xlu0 %985
      %989 = vset.pattern.permute.xlu0 0
      %990 = vperm.xlu0 %989, %v407
      %v991 = vpop.permute.xlu0 %990
      %994 = vset.pattern.permute.xlu0 0
      %995 = vperm.xlu0 %994, %v408
      %v996 = vpop.permute.xlu0 %995
      %999 = vset.pattern.permute.xlu0 0
      %1000 = vperm.xlu0 %999, %v409
      %v1001 = vpop.permute.xlu0 %1000
      %1004 = vset.pattern.permute.xlu0 0
      %1005 = vperm.xlu0 %1004, %v410
      %v1006 = vpop.permute.xlu0 %1005
      %1009 = vset.pattern.permute.xlu0 0
      %1010 = vperm.xlu0 %1009, %v411
      %v1011 = vpop.permute.xlu0 %1010
      %1014 = vset.pattern.permute.xlu0 0
      %1015 = vperm.xlu0 %1014, %v412
      %v1016 = vpop.permute.xlu0 %1015
      %1019 = vset.pattern.permute.xlu0 0
      %1020 = vperm.xlu0 %1019, %v413
      %v1021 = vpop.permute.xlu0 %1020
      %1024 = vset.pattern.permute.xlu0 0
      %1025 = vperm.xlu0 %1024, %v414
      %v1026 = vpop.permute.xlu0 %1025
      %1029 = vset.pattern.permute.xlu0 0
      %1030 = vperm.xlu0 %1029, %v415
      %v1031 = vpop.permute.xlu0 %1030
      %1034 = vset.pattern.permute.xlu0 0
      %1035 = vperm.xlu0 %1034, %v416
      %v1036 = vpop.permute.xlu0 %1035
      %1039 = vset.pattern.permute.xlu0 0
      %1040 = vperm.xlu0 %1039, %v417
      %v1041 = vpop.permute.xlu0 %1040
      %1044 = vset.pattern.permute.xlu0 0
      %1045 = vperm.xlu0 %1044, %v418
      %v1046 = vpop.permute.xlu0 %1045
      %1049 = vset.pattern.permute.xlu0 0
      %1050 = vperm.xlu0 %1049, %v419
      %v1051 = vpop.permute.xlu0 %1050
      %1054 = vset.pattern.permute.xlu0 0
      %1055 = vperm.xlu0 %1054, %v420
      %v1056 = vpop.permute.xlu0 %1055
      %1059 = vset.pattern.permute.xlu0 0
      %1060 = vperm.xlu0 %1059, %v421
      %v1061 = vpop.permute.xlu0 %1060
      %1064 = vset.pattern.permute.xlu0 0
      %1065 = vperm.xlu0 %1064, %v422
      %v1066 = vpop.permute.xlu0 %1065
      %1069 = vset.pattern.permute.xlu0 0
      %1070 = vperm.xlu0 %1069, %v423
      %v1071 = vpop.permute.xlu0 %1070
      %1074 = vset.pattern.permute.xlu0 0
      %1075 = vperm.xlu0 %1074, %v424
      %v1076 = vpop.permute.xlu0 %1075
      %1079 = vset.pattern.permute.xlu0 0
      %1080 = vperm.xlu0 %1079, %v425
      %v1081 = vpop.permute.xlu0 %1080
      %1084 = vset.pattern.permute.xlu0 0
      %1085 = vperm.xlu0 %1084, %v426
      %v1086 = vpop.permute.xlu0 %1085
      %1089 = vset.pattern.permute.xlu0 0
      %1090 = vperm.xlu0 %1089, %v427
      %v1091 = vpop.permute.xlu0 %1090
      %1094 = vset.pattern.permute.xlu0 0
      %1095 = vperm.xlu0 %1094, %v428
      %v1096 = vpop.permute.xlu0 %1095
      %1099 = vset.pattern.permute.xlu0 0
      %1100 = vperm.xlu0 %1099, %v429
      %v1101 = vpop.permute.xlu0 %1100
      %1104 = vset.pattern.permute.xlu0 0
      %1105 = vperm.xlu0 %1104, %v430
      %v1106 = vpop.permute.xlu0 %1105
      %1109 = vset.pattern.permute.xlu0 0
      %1110 = vperm.xlu0 %1109, %v431
      %v1111 = vpop.permute.xlu0 %1110
      %1114 = vset.pattern.permute.xlu0 0
      %1115 = vperm.xlu0 %1114, %v432
      %v1116 = vpop.permute.xlu0 %1115
      %1119 = vset.pattern.permute.xlu0 0
      %1120 = vperm.xlu0 %1119, %v433
      %v1121 = vpop.permute.xlu0 %1120
      %1124 = vset.pattern.permute.xlu0 0
      %1125 = vperm.xlu0 %1124, %v434
      %v1126 = vpop.permute.xlu0 %1125
      %1129 = vset.pattern.permute.xlu0 0
      %1130 = vperm.xlu0 %1129, %v435
      %v1131 = vpop.permute.xlu0 %1130
      %1134 = vset.pattern.permute.xlu0 0
      %1135 = vperm.xlu0 %1134, %v436
      %v1136 = vpop.permute.xlu0 %1135
      %1139 = vset.pattern.permute.xlu0 0
      %1140 = vperm.xlu0 %1139, %v437
      %v1141 = vpop.permute.xlu0 %1140
      %1144 = vset.pattern.permute.xlu0 0
      %1145 = vperm.xlu0 %1144, %v438
      %v1146 = vpop.permute.xlu0 %1145
      %1149 = vset.pattern.permute.xlu0 0
      %1150 = vperm.xlu0 %1149, %v439
      %v1151 = vpop.permute.xlu0 %1150
      %1154 = vset.pattern.permute.xlu0 0
      %1155 = vperm.xlu0 %1154, %v440
      %v1156 = vpop.permute.xlu0 %1155
      %1159 = vset.pattern.permute.xlu0 0
      %1160 = vperm.xlu0 %1159, %v441
      %v1161 = vpop.permute.xlu0 %1160
      %1164 = vset.pattern.permute.xlu0 0
      %1165 = vperm.xlu0 %1164, %v442
      %v1166 = vpop.permute.xlu0 %1165
      %1169 = vset.pattern.permute.xlu0 0
      %1170 = vperm.xlu0 %1169, %v443
      %v1171 = vpop.permute.xlu0 %1170
      %v1381 = vunpack.c.l.b16 %v445
      %v1382 = vunpack.c.h.b16 %v445
      %v1383 = vunpack.c.l.b16 %v446
      %v1384 = vunpack.c.l.b16 %v447
      %v1385 = vunpack.c.h.b16 %v447
      %v1386 = vunpack.c.l.b16 %v448
      %v1387 = vunpack.c.l.b16 %v449
      %v1388 = vunpack.c.h.b16 %v449
      %v1389 = vunpack.c.l.b16 %v450
      %v1390 = vunpack.c.l.b16 %v451
      %v1391 = vunpack.c.h.b16 %v451
      %v1392 = vunpack.c.l.b16 %v452
      %v1393 = vunpack.c.l.b16 %v453
      %v1394 = vunpack.c.h.b16 %v453
      %v1395 = vunpack.c.l.b16 %v454
      %v1396 = vunpack.c.l.b16 %v455
      %v1397 = vunpack.c.h.b16 %v455
      %v1398 = vunpack.c.l.b16 %v456
      %v1399 = vunpack.c.l.b16 %v457
      %v1400 = vunpack.c.h.b16 %v457
      %v1401 = vunpack.c.l.b16 %v458
      %v1402 = vunpack.c.l.b16 %v459
      %v1403 = vunpack.c.h.b16 %v459
      %v1404 = vunpack.c.l.b16 %v460
      %v1405 = vunpack.c.l.b16 %v461
      %v1406 = vunpack.c.h.b16 %v461
      %v1407 = vunpack.c.l.b16 %v462
      %v1408 = vunpack.c.l.b16 %v463
      %v1409 = vunpack.c.h.b16 %v463
      %v1410 = vunpack.c.l.b16 %v464
      %v1411 = vunpack.c.l.b16 %v465
      %v1412 = vunpack.c.h.b16 %v465
      %v1413 = vunpack.c.l.b16 %v466
      %v1414 = vunpack.c.l.b16 %v467
      %v1415 = vunpack.c.h.b16 %v467
      %v1416 = vunpack.c.l.b16 %v468
      %v1417 = vunpack.c.l.b16 %v469
      %v1418 = vunpack.c.h.b16 %v469
      %v1419 = vunpack.c.l.b16 %v470
      %v1420 = vunpack.c.l.b16 %v471
      %v1421 = vunpack.c.h.b16 %v471
      %v1422 = vunpack.c.l.b16 %v472
      %v1423 = vunpack.c.l.b16 %v473
      %v1424 = vunpack.c.h.b16 %v473
      %v1425 = vunpack.c.l.b16 %v474
      %v1426 = vunpack.c.l.b16 %v475
      %v1427 = vunpack.c.h.b16 %v475
      %v1428 = vunpack.c.l.b16 %v476
      %v1429 = vunpack.c.l.b16 %v477
      %v1430 = vunpack.c.h.b16 %v477
      %v1431 = vunpack.c.l.b16 %v478
      %v1432 = vunpack.c.l.b16 %v479
      %v1433 = vunpack.c.h.b16 %v479
      %v1434 = vunpack.c.l.b16 %v480
      %v1435 = vunpack.c.l.b16 %v481
      %v1436 = vunpack.c.h.b16 %v481
      %v1437 = vunpack.c.l.b16 %v482
      %v1438 = vunpack.c.l.b16 %v483
      %v1439 = vunpack.c.h.b16 %v483
      %v1440 = vunpack.c.l.b16 %v484
      %v1441 = vunpack.c.l.b16 %v485
      %v1442 = vunpack.c.h.b16 %v485
      %v1443 = vunpack.c.l.b16 %v486
      %v1444 = vunpack.c.l.b16 %v487
      %v1445 = vunpack.c.h.b16 %v487
      %v1446 = vunpack.c.l.b16 %v488
      %v1447 = vunpack.c.l.b16 %v489
      %v1448 = vunpack.c.h.b16 %v489
      %v1449 = vunpack.c.l.b16 %v490
      %v1450 = vunpack.c.l.b16 %v491
      %v1451 = vunpack.c.h.b16 %v491
      %v1452 = vunpack.c.l.b16 %v492
      %v1453 = vunpack.c.l.b16 %v493
      %v1454 = vunpack.c.h.b16 %v493
      %v1455 = vunpack.c.l.b16 %v494
      %v1456 = vunpack.c.l.b16 %v495
      %v1457 = vunpack.c.h.b16 %v495
      %v1458 = vunpack.c.l.b16 %v496
      %v1459 = vunpack.c.l.b16 %v497
      %v1460 = vunpack.c.h.b16 %v497
      %v1461 = vunpack.c.l.b16 %v498
      %v1462 = vunpack.c.l.b16 %v499
      %v1463 = vunpack.c.h.b16 %v499
      %v1464 = vunpack.c.l.b16 %v500
      %v1465 = vunpack.c.l.b16 %v501
      %v1466 = vunpack.c.h.b16 %v501
      %v1467 = vunpack.c.l.b16 %v502
      %v1468 = vunpack.c.l.b16 %v503
      %v1469 = vunpack.c.h.b16 %v503
      %v1470 = vunpack.c.l.b16 %v504
      %v1471 = vunpack.c.l.b16 %v505
      %v1472 = vunpack.c.h.b16 %v505
      %v1473 = vunpack.c.l.b16 %v506
      %v1474 = vunpack.c.l.b16 %v507
      %v1475 = vunpack.c.h.b16 %v507
      %v1476 = vunpack.c.l.b16 %v508
      %v1477 = vunpack.c.l.b16 %v509
      %v1478 = vunpack.c.h.b16 %v509
      %v1479 = vunpack.c.l.b16 %v510
      %v1480 = vunpack.c.l.b16 %v511
      %v1481 = vunpack.c.h.b16 %v511
      %v1482 = vunpack.c.l.b16 %v512
      %v1483 = vunpack.c.l.b16 %v513
      %v1484 = vunpack.c.h.b16 %v513
      %v1485 = vunpack.c.l.b16 %v514
      %v1486 = vunpack.c.l.b16 %v515
      %v1487 = vunpack.c.h.b16 %v515
      %v1488 = vunpack.c.l.b16 %v516
      %v1489 = vunpack.c.l.b16 %v517
      %v1490 = vunpack.c.h.b16 %v517
      %v1491 = vunpack.c.l.b16 %v518
      %v1492 = vunpack.c.l.b16 %v519
      %v1493 = vunpack.c.h.b16 %v519
      %v1494 = vunpack.c.l.b16 %v520
      %v1495 = vunpack.c.l.b16 %v521
      %v1496 = vunpack.c.h.b16 %v521
      %v1497 = vunpack.c.l.b16 %v522
      %v1498 = vunpack.c.l.b16 %v523
      %v1499 = vunpack.c.h.b16 %v523
      %v1500 = vunpack.c.l.b16 %v524
      %v1501 = vunpack.c.l.b16 %v525
      %v1502 = vunpack.c.h.b16 %v525
      %v1503 = vunpack.c.l.b16 %v526
      %v1504 = vunpack.c.l.b16 %v527
      %v1505 = vunpack.c.h.b16 %v527
      %v1506 = vunpack.c.l.b16 %v528
      %v1507 = vunpack.c.l.b16 %v529
      %v1508 = vunpack.c.h.b16 %v529
      %v1509 = vunpack.c.l.b16 %v530
      %v1510 = vunpack.c.l.b16 %v531
      %v1511 = vunpack.c.h.b16 %v531
      %v1512 = vunpack.c.l.b16 %v532
      %v1513 = vunpack.c.l.b16 %v533
      %v1514 = vunpack.c.h.b16 %v533
      %v1515 = vunpack.c.l.b16 %v534
      %v1516 = vunpack.c.l.b16 %v535
      %v1517 = vunpack.c.h.b16 %v535
      %v1518 = vunpack.c.l.b16 %v536
      %v1519 = vunpack.c.l.b16 %v537
      %v1520 = vunpack.c.h.b16 %v537
      %v1521 = vunpack.c.l.b16 %v538
      %v1522 = vunpack.c.l.b16 %v539
      %v1523 = vunpack.c.h.b16 %v539
      %v1524 = vunpack.c.l.b16 %v540
      %v1525 = vunpack.c.l.b16 %v541
      %v1526 = vunpack.c.h.b16 %v541
      %v1527 = vunpack.c.l.b16 %v542
      %v1528 = vunpack.c.l.b16 %v543
      %v1529 = vunpack.c.h.b16 %v543
      %v1530 = vunpack.c.l.b16 %v544
      %v1531 = vunpack.c.l.b16 %v545
      %v1532 = vunpack.c.h.b16 %v545
      %v1533 = vunpack.c.l.b16 %v546
      %v1534 = vunpack.c.l.b16 %v547
      %v1535 = vunpack.c.h.b16 %v547
      %v1536 = vunpack.c.l.b16 %v548
      %v1537 = vunpack.c.l.b16 %v549
      %v1538 = vunpack.c.h.b16 %v549
      %v1539 = vunpack.c.l.b16 %v550
      %v1540 = vunpack.c.l.b16 %v551
      %v1541 = vunpack.c.h.b16 %v551
      %v1542 = vunpack.c.l.b16 %v552
      %v1543 = vunpack.c.l.b16 %v553
      %v1544 = vunpack.c.h.b16 %v553
      %v1545 = vunpack.c.l.b16 %v554
      %v1546 = vunpack.c.l.b16 %v555
      %v1547 = vunpack.c.h.b16 %v555
      %v1548 = vunpack.c.l.b16 %v556
      %v1549 = vunpack.c.l.b16 %v557
      %v1550 = vunpack.c.h.b16 %v557
      %v1551 = vunpack.c.l.b16 %v558
      %v1552 = vunpack.c.l.b16 %v559
      %v1553 = vunpack.c.h.b16 %v559
      %v1554 = vunpack.c.l.b16 %v560
      %v1555 = vunpack.c.l.b16 %v561
      %v1556 = vunpack.c.h.b16 %v561
      %v1557 = vunpack.c.l.b16 %v562
      %v1558 = vunpack.c.l.b16 %v563
      %v1559 = vunpack.c.h.b16 %v563
      %v1560 = vunpack.c.l.b16 %v564
      %v1561 = vunpack.c.l.b16 %v565
      %v1562 = vunpack.c.h.b16 %v565
      %v1563 = vunpack.c.l.b16 %v566
      %v1564 = vunpack.c.l.b16 %v567
      %v1565 = vunpack.c.h.b16 %v567
      %v1566 = vunpack.c.l.b16 %v568
      %v1567 = vunpack.c.l.b16 %v569
      %v1568 = vunpack.c.h.b16 %v569
      %v1569 = vunpack.c.l.b16 %v570
      %v1570 = vunpack.c.l.b16 %v571
      %v1571 = vunpack.c.h.b16 %v571
      %v1572 = vunpack.c.l.b16 %v572
      %v1573 = vunpack.c.l.b16 %v573
      %v1574 = vunpack.c.h.b16 %v573
      %v1575 = vunpack.c.l.b16 %v574
      %v1576 = vunpack.c.l.b16 %v575
      %v1577 = vunpack.c.h.b16 %v575
      %v1578 = vunpack.c.l.b16 %v576
      %v1579 = vunpack.c.l.b16 %v577
      %v1580 = vunpack.c.h.b16 %v577
      %v1581 = vunpack.c.l.b16 %v578
      %v1582 = vunpack.c.l.b16 %v579
      %v1583 = vunpack.c.h.b16 %v579
      %v1584 = vunpack.c.l.b16 %v580
      %v1585 = vunpack.c.l.b16 %v581
      %v1586 = vunpack.c.h.b16 %v581
      %v1587 = vunpack.c.l.b16 %v582
      %v1588 = vunpack.c.l.b16 %v583
      %v1589 = vunpack.c.h.b16 %v583
      %v1590 = vunpack.c.l.b16 %v584
      %v1591 = vunpack.c.l.b16 %v585
      %v1592 = vunpack.c.h.b16 %v585
      %v1593 = vunpack.c.l.b16 %v586
      %v1594 = vunpack.c.l.b16 %v587
      %v1595 = vunpack.c.h.b16 %v587
      %v1596 = vunpack.c.l.b16 %v588
      %v1597 = vunpack.c.l.b16 %v589
      %v1598 = vunpack.c.h.b16 %v589
      %v1599 = vunpack.c.l.b16 %v590
      %v1600 = vunpack.c.l.b16 %v591
      %v1601 = vunpack.c.h.b16 %v591
      %v1602 = vunpack.c.l.b16 %v592
      %v1603 = vunpack.c.l.b16 %v593
      %v1604 = vunpack.c.h.b16 %v593
      %v1605 = vunpack.c.l.b16 %v594
      %v1606 = vunpack.c.l.b16 %v595
      %v1607 = vunpack.c.h.b16 %v595
      %v1608 = vunpack.c.l.b16 %v596
      %v1609 = vunpack.c.l.b16 %v597
      %v1610 = vunpack.c.h.b16 %v597
      %v1611 = vunpack.c.l.b16 %v598
      %v1612 = vunpack.c.l.b16 %v599
      %v1613 = vunpack.c.h.b16 %v599
      %v1614 = vunpack.c.l.b16 %v600
      %v1615 = vunpack.c.l.b16 %v601
      %v1616 = vunpack.c.h.b16 %v601
      %v1617 = vunpack.c.l.b16 %v602
      %v1618 = vunpack.c.l.b16 %v603
      %v1619 = vunpack.c.h.b16 %v603
      %v1620 = vunpack.c.l.b16 %v604
      %v1621 = vunpack.c.l.b16 %v605
      %v1622 = vunpack.c.h.b16 %v605
      %v1623 = vunpack.c.l.b16 %v606
      %v1624 = vunpack.c.l.b16 %v607
      %v1625 = vunpack.c.h.b16 %v607
      %v1626 = vunpack.c.l.b16 %v608
      %v1627 = vunpack.c.l.b16 %v609
      %v1628 = vunpack.c.h.b16 %v609
      %v1629 = vunpack.c.l.b16 %v610
      %v1630 = vunpack.c.l.b16 %v611
      %v1631 = vunpack.c.h.b16 %v611
      %v1632 = vunpack.c.l.b16 %v612
      %v1633 = vunpack.c.l.b16 %v613
      %v1634 = vunpack.c.h.b16 %v613
      %v1635 = vunpack.c.l.b16 %v614
      %v1636 = vunpack.c.l.b16 %v615
      %v1637 = vunpack.c.h.b16 %v615
      %v1638 = vunpack.c.l.b16 %v616
      %v1639 = vunpack.c.l.b16 %v617
      %v1640 = vunpack.c.h.b16 %v617
      %v1641 = vunpack.c.l.b16 %v618
      %v1642 = vunpack.c.l.b16 %v619
      %v1643 = vunpack.c.h.b16 %v619
      %v1644 = vunpack.c.l.b16 %v620
      %v1645 = vunpack.c.l.b16 %v621
      %v1646 = vunpack.c.h.b16 %v621
      %v1647 = vunpack.c.l.b16 %v622
      %v1648 = vunpack.c.l.b16 %v623
      %v1649 = vunpack.c.h.b16 %v623
      %v1650 = vunpack.c.l.b16 %v624
      %v1651 = vunpack.c.l.b16 %v625
      %v1652 = vunpack.c.h.b16 %v625
      %v1653 = vunpack.c.l.b16 %v626
      %v1654 = vunpack.c.l.b16 %v627
      %v1655 = vunpack.c.h.b16 %v627
      %v1656 = vunpack.c.l.b16 %v628
      %v1657 = vunpack.c.l.b16 %v629
      %v1658 = vunpack.c.h.b16 %v629
      %v1659 = vunpack.c.l.b16 %v630
      %v1660 = vunpack.c.l.b16 %v631
      %v1661 = vunpack.c.h.b16 %v631
      %v1662 = vunpack.c.l.b16 %v632
      %v1663 = vunpack.c.l.b16 %v633
      %v1664 = vunpack.c.h.b16 %v633
      %v1665 = vunpack.c.l.b16 %v634
      %v1666 = vunpack.c.l.b16 %v635
      %v1667 = vunpack.c.h.b16 %v635
      %v1668 = vunpack.c.l.b16 %v636
      %v1669 = vunpack.c.l.b16 %v637
      %v1670 = vunpack.c.h.b16 %v637
      %v1671 = vunpack.c.l.b16 %v638
      %v1672 = vunpack.c.l.b16 %v639
      %v1673 = vunpack.c.h.b16 %v639
      %v1674 = vunpack.c.l.b16 %v640
      %v1675 = vunpack.c.l.b16 %v641
      %v1676 = vunpack.c.h.b16 %v641
      %v1677 = vunpack.c.l.b16 %v642
      %v1678 = vunpack.c.l.b16 %v643
      %v1679 = vunpack.c.h.b16 %v643
      %v1680 = vunpack.c.l.b16 %v644
      %v1681 = vunpack.c.l.b16 %v645
      %v1682 = vunpack.c.h.b16 %v645
      %v1683 = vunpack.c.l.b16 %v646
      %v1684 = vunpack.c.l.b16 %v647
      %v1685 = vunpack.c.h.b16 %v647
      %v1686 = vunpack.c.l.b16 %v648
      %v1687 = vunpack.c.l.b16 %v649
      %v1688 = vunpack.c.h.b16 %v649
      %v1689 = vunpack.c.l.b16 %v650
      %v1690 = vunpack.c.l.b16 %v651
      %v1691 = vunpack.c.h.b16 %v651
      %v1692 = vunpack.c.l.b16 %v652
      %v1693 = vpack.c.b16 %v1384, %v1381
      %v1694 = vpack.c.b16 %v1385, %v1382
      %v1695 = vpack.c.b16 %v1386, %v1383
      %v1696 = vpack.c.b16 %v1390, %v1387
      %v1697 = vpack.c.b16 %v1391, %v1388
      %v1698 = vpack.c.b16 %v1392, %v1389
      %v1699 = vpack.c.b16 %v1396, %v1393
      %v1700 = vpack.c.b16 %v1397, %v1394
      %v1701 = vpack.c.b16 %v1398, %v1395
      %v1702 = vpack.c.b16 %v1402, %v1399
      %v1703 = vpack.c.b16 %v1403, %v1400
      %v1704 = vpack.c.b16 %v1404, %v1401
      %v1705 = vpack.c.b16 %v1408, %v1405
      %v1706 = vpack.c.b16 %v1409, %v1406
      %v1707 = vpack.c.b16 %v1410, %v1407
      %v1708 = vpack.c.b16 %v1414, %v1411
      %v1709 = vpack.c.b16 %v1415, %v1412
      %v1710 = vpack.c.b16 %v1416, %v1413
      %v1711 = vpack.c.b16 %v1420, %v1417
      %v1712 = vpack.c.b16 %v1421, %v1418
      %v1713 = vpack.c.b16 %v1422, %v1419
      %v1714 = vpack.c.b16 %v1426, %v1423
      %v1715 = vpack.c.b16 %v1427, %v1424
      %v1716 = vpack.c.b16 %v1428, %v1425
      %v1717 = vpack.c.b16 %v1432, %v1429
      %v1718 = vpack.c.b16 %v1433, %v1430
      %v1719 = vpack.c.b16 %v1434, %v1431
      %v1720 = vpack.c.b16 %v1438, %v1435
      %v1721 = vpack.c.b16 %v1439, %v1436
      %v1722 = vpack.c.b16 %v1440, %v1437
      %v1723 = vpack.c.b16 %v1444, %v1441
      %v1724 = vpack.c.b16 %v1445, %v1442
      %v1725 = vpack.c.b16 %v1446, %v1443
      %v1726 = vpack.c.b16 %v1450, %v1447
      %v1727 = vpack.c.b16 %v1451, %v1448
      %v1728 = vpack.c.b16 %v1452, %v1449
      %v1729 = vpack.c.b16 %v1456, %v1453
      %v1730 = vpack.c.b16 %v1457, %v1454
      %v1731 = vpack.c.b16 %v1458, %v1455
      %v1732 = vpack.c.b16 %v1462, %v1459
      %v1733 = vpack.c.b16 %v1463, %v1460
      %v1734 = vpack.c.b16 %v1464, %v1461
      %v1735 = vpack.c.b16 %v1468, %v1465
      %v1736 = vpack.c.b16 %v1469, %v1466
      %v1737 = vpack.c.b16 %v1470, %v1467
      %v1738 = vpack.c.b16 %v1474, %v1471
      %v1739 = vpack.c.b16 %v1475, %v1472
      %v1740 = vpack.c.b16 %v1476, %v1473
      %v1741 = vpack.c.b16 %v1480, %v1477
      %v1742 = vpack.c.b16 %v1481, %v1478
      %v1743 = vpack.c.b16 %v1482, %v1479
      %v1744 = vpack.c.b16 %v1486, %v1483
      %v1745 = vpack.c.b16 %v1487, %v1484
      %v1746 = vpack.c.b16 %v1488, %v1485
      %v1747 = vpack.c.b16 %v1492, %v1489
      %v1748 = vpack.c.b16 %v1493, %v1490
      %v1749 = vpack.c.b16 %v1494, %v1491
      %v1750 = vpack.c.b16 %v1498, %v1495
      %v1751 = vpack.c.b16 %v1499, %v1496
      %v1752 = vpack.c.b16 %v1500, %v1497
      %v1753 = vpack.c.b16 %v1504, %v1501
      %v1754 = vpack.c.b16 %v1505, %v1502
      %v1755 = vpack.c.b16 %v1506, %v1503
      %v1756 = vpack.c.b16 %v1510, %v1507
      %v1757 = vpack.c.b16 %v1511, %v1508
      %v1758 = vpack.c.b16 %v1512, %v1509
      %v1759 = vpack.c.b16 %v1516, %v1513
      %v1760 = vpack.c.b16 %v1517, %v1514
      %v1761 = vpack.c.b16 %v1518, %v1515
      %v1762 = vpack.c.b16 %v1522, %v1519
      %v1763 = vpack.c.b16 %v1523, %v1520
      %v1764 = vpack.c.b16 %v1524, %v1521
      %v1765 = vpack.c.b16 %v1528, %v1525
      %v1766 = vpack.c.b16 %v1529, %v1526
      %v1767 = vpack.c.b16 %v1530, %v1527
      %v1768 = vpack.c.b16 %v1534, %v1531
      %v1769 = vpack.c.b16 %v1535, %v1532
      %v1770 = vpack.c.b16 %v1536, %v1533
      %v1771 = vpack.c.b16 %v1540, %v1537
      %v1772 = vpack.c.b16 %v1541, %v1538
      %v1773 = vpack.c.b16 %v1542, %v1539
      %v1774 = vpack.c.b16 %v1546, %v1543
      %v1775 = vpack.c.b16 %v1547, %v1544
      %v1776 = vpack.c.b16 %v1548, %v1545
      %v1777 = vpack.c.b16 %v1552, %v1549
      %v1778 = vpack.c.b16 %v1553, %v1550
      %v1779 = vpack.c.b16 %v1554, %v1551
      %v1780 = vpack.c.b16 %v1558, %v1555
      %v1781 = vpack.c.b16 %v1559, %v1556
      %v1782 = vpack.c.b16 %v1560, %v1557
      %v1783 = vpack.c.b16 %v1564, %v1561
      %v1784 = vpack.c.b16 %v1565, %v1562
      %v1785 = vpack.c.b16 %v1566, %v1563
      %v1786 = vpack.c.b16 %v1570, %v1567
      %v1787 = vpack.c.b16 %v1571, %v1568
      %v1788 = vpack.c.b16 %v1572, %v1569
      %v1789 = vpack.c.b16 %v1576, %v1573
      %v1790 = vpack.c.b16 %v1577, %v1574
      %v1791 = vpack.c.b16 %v1578, %v1575
      %v1792 = vpack.c.b16 %v1582, %v1579
      %v1793 = vpack.c.b16 %v1583, %v1580
      %v1794 = vpack.c.b16 %v1584, %v1581
      %v1795 = vpack.c.b16 %v1588, %v1585
      %v1796 = vpack.c.b16 %v1589, %v1586
      %v1797 = vpack.c.b16 %v1590, %v1587
      %v1798 = vpack.c.b16 %v1594, %v1591
      %v1799 = vpack.c.b16 %v1595, %v1592
      %v1800 = vpack.c.b16 %v1596, %v1593
      %v1801 = vpack.c.b16 %v1600, %v1597
      %v1802 = vpack.c.b16 %v1601, %v1598
      %v1803 = vpack.c.b16 %v1602, %v1599
      %v1804 = vpack.c.b16 %v1606, %v1603
      %v1805 = vpack.c.b16 %v1607, %v1604
      %v1806 = vpack.c.b16 %v1608, %v1605
      %v1807 = vpack.c.b16 %v1612, %v1609
      %v1808 = vpack.c.b16 %v1613, %v1610
      %v1809 = vpack.c.b16 %v1614, %v1611
      %v1810 = vpack.c.b16 %v1618, %v1615
      %v1811 = vpack.c.b16 %v1619, %v1616
      %v1812 = vpack.c.b16 %v1620, %v1617
      %v1813 = vpack.c.b16 %v1624, %v1621
      %v1814 = vpack.c.b16 %v1625, %v1622
      %v1815 = vpack.c.b16 %v1626, %v1623
      %v1816 = vpack.c.b16 %v1630, %v1627
      %v1817 = vpack.c.b16 %v1631, %v1628
      %v1818 = vpack.c.b16 %v1632, %v1629
      %v1819 = vpack.c.b16 %v1636, %v1633
      %v1820 = vpack.c.b16 %v1637, %v1634
      %v1821 = vpack.c.b16 %v1638, %v1635
      %v1822 = vpack.c.b16 %v1642, %v1639
      %v1823 = vpack.c.b16 %v1643, %v1640
      %v1824 = vpack.c.b16 %v1644, %v1641
      %v1825 = vpack.c.b16 %v1648, %v1645
      %v1826 = vpack.c.b16 %v1649, %v1646
      %v1827 = vpack.c.b16 %v1650, %v1647
      %v1828 = vpack.c.b16 %v1654, %v1651
      %v1829 = vpack.c.b16 %v1655, %v1652
      %v1830 = vpack.c.b16 %v1656, %v1653
      %v1831 = vpack.c.b16 %v1660, %v1657
      %v1832 = vpack.c.b16 %v1661, %v1658
      %v1833 = vpack.c.b16 %v1662, %v1659
      %v1834 = vpack.c.b16 %v1666, %v1663
      %v1835 = vpack.c.b16 %v1667, %v1664
      %v1836 = vpack.c.b16 %v1668, %v1665
      %v1837 = vpack.c.b16 %v1672, %v1669
      %v1838 = vpack.c.b16 %v1673, %v1670
      %v1839 = vpack.c.b16 %v1674, %v1671
      %v1840 = vpack.c.b16 %v1678, %v1675
      %v1841 = vpack.c.b16 %v1679, %v1676
      %v1842 = vpack.c.b16 %v1680, %v1677
      %v1843 = vpack.c.b16 %v1684, %v1681
      %v1844 = vpack.c.b16 %v1685, %v1682
      %v1845 = vpack.c.b16 %v1686, %v1683
      %v1846 = vpack.c.b16 %v1690, %v1687
      %v1847 = vpack.c.b16 %v1691, %v1688
      %v1848 = vpack.c.b16 %v1692, %v1689
      %v1985 = vunpack.c.l.b16 %v308
      %v1986 = vunpack.c.h.b16 %v308
      %v1987 = vunpack.c.l.b16 %v309
      %v1988 = vunpack.c.l.b16 %v310
      %v1989 = vunpack.c.h.b16 %v310
      %v1990 = vunpack.c.l.b16 %v311
      %v1991 = vunpack.c.l.b16 %v312
      %v1992 = vunpack.c.h.b16 %v312
      %v1993 = vunpack.c.l.b16 %v313
      %v1994 = vunpack.c.l.b16 %v314
      %v1995 = vunpack.c.h.b16 %v314
      %v1996 = vunpack.c.l.b16 %v315
      %v1997 = vunpack.c.l.b16 %v316
      %v1998 = vunpack.c.h.b16 %v316
      %v1999 = vunpack.c.l.b16 %v317
      %v2000 = vunpack.c.l.b16 %v318
      %v2001 = vunpack.c.h.b16 %v318
      %v2002 = vunpack.c.l.b16 %v319
      %v2003 = vunpack.c.l.b16 %v320
      %v2004 = vunpack.c.h.b16 %v320
      %v2005 = vunpack.c.l.b16 %v321
      %v2006 = vunpack.c.l.b16 %v322
      %v2007 = vunpack.c.h.b16 %v322
      %v2008 = vunpack.c.l.b16 %v323
      %v2009 = vunpack.c.l.b16 %v324
      %v2010 = vunpack.c.h.b16 %v324
      %v2011 = vunpack.c.l.b16 %v325
      %v2012 = vunpack.c.l.b16 %v326
      %v2013 = vunpack.c.h.b16 %v326
      %v2014 = vunpack.c.l.b16 %v327
      %v2015 = vunpack.c.l.b16 %v328
      %v2016 = vunpack.c.h.b16 %v328
      %v2017 = vunpack.c.l.b16 %v329
      %v2018 = vunpack.c.l.b16 %v330
      %v2019 = vunpack.c.h.b16 %v330
      %v2020 = vunpack.c.l.b16 %v331
      %v2021 = vunpack.c.l.b16 %v332
      %v2022 = vunpack.c.h.b16 %v332
      %v2023 = vunpack.c.l.b16 %v333
      %v2024 = vunpack.c.l.b16 %v334
      %v2025 = vunpack.c.h.b16 %v334
      %v2026 = vunpack.c.l.b16 %v335
      %v2027 = vunpack.c.l.b16 %v336
      %v2028 = vunpack.c.h.b16 %v336
      %v2029 = vunpack.c.l.b16 %v337
      %v2030 = vunpack.c.l.b16 %v338
      %v2031 = vunpack.c.h.b16 %v338
      %v2032 = vunpack.c.l.b16 %v339
      %v2033 = vpack.c.b16 %v1988, %v1985
      %v2034 = vpack.c.b16 %v1989, %v1986
      %v2035 = vpack.c.b16 %v1990, %v1987
      %v2036 = vpack.c.b16 %v1994, %v1991
      %v2037 = vpack.c.b16 %v1995, %v1992
      %v2038 = vpack.c.b16 %v1996, %v1993
      %v2039 = vpack.c.b16 %v2000, %v1997
      %v2040 = vpack.c.b16 %v2001, %v1998
      %v2041 = vpack.c.b16 %v2002, %v1999
      %v2042 = vpack.c.b16 %v2006, %v2003
      %v2043 = vpack.c.b16 %v2007, %v2004
      %v2044 = vpack.c.b16 %v2008, %v2005
      %v2045 = vpack.c.b16 %v2012, %v2009
      %v2046 = vpack.c.b16 %v2013, %v2010
      %v2047 = vpack.c.b16 %v2014, %v2011
      %v2048 = vpack.c.b16 %v2018, %v2015
      %v2049 = vpack.c.b16 %v2019, %v2016
      %v2050 = vpack.c.b16 %v2020, %v2017
      %v2051 = vpack.c.b16 %v2024, %v2021
      %v2052 = vpack.c.b16 %v2025, %v2022
      %v2053 = vpack.c.b16 %v2026, %v2023
      %v2054 = vpack.c.b16 %v2030, %v2027
      %v2055 = vpack.c.b16 %v2031, %v2028
      %v2056 = vpack.c.b16 %v2032, %v2029
      %vm2073 = vcmask 113664
      %v2075 = vsel %vm2073, %v1695, 0
      %v2078 = vsel %vm2073, %v1698, 0
      %v2081 = vsel %vm2073, %v1701, 0
      %v2084 = vsel %vm2073, %v1704, 0
      %v2087 = vsel %vm2073, %v1707, 0
      %v2090 = vsel %vm2073, %v1710, 0
      %v2093 = vsel %vm2073, %v1713, 0
      %v2096 = vsel %vm2073, %v1716, 0
      %v2099 = vsel %vm2073, %v1719, 0
      %v2102 = vsel %vm2073, %v1722, 0
      %v2105 = vsel %vm2073, %v1725, 0
      %v2108 = vsel %vm2073, %v1728, 0
      %v2111 = vsel %vm2073, %v1731, 0
      %v2114 = vsel %vm2073, %v1734, 0
      %v2117 = vsel %vm2073, %v1737, 0
      %v2120 = vsel %vm2073, %v1740, 0
      %v2123 = vsel %vm2073, %v1743, 0
      %v2126 = vsel %vm2073, %v1746, 0
      %v2129 = vsel %vm2073, %v1749, 0
      %v2132 = vsel %vm2073, %v1752, 0
      %v2135 = vsel %vm2073, %v1755, 0
      %v2138 = vsel %vm2073, %v1758, 0
      %v2141 = vsel %vm2073, %v1761, 0
      %v2144 = vsel %vm2073, %v1764, 0
      %v2147 = vsel %vm2073, %v1767, 0
      %v2150 = vsel %vm2073, %v1770, 0
      %v2153 = vsel %vm2073, %v1773, 0
      %v2156 = vsel %vm2073, %v1776, 0
      %v2159 = vsel %vm2073, %v1779, 0
      %v2162 = vsel %vm2073, %v1782, 0
      %v2165 = vsel %vm2073, %v1785, 0
      %v2168 = vsel %vm2073, %v1788, 0
      %v2171 = vsel %vm2073, %v1791, 0
      %v2174 = vsel %vm2073, %v1794, 0
      %v2177 = vsel %vm2073, %v1797, 0
      %v2180 = vsel %vm2073, %v1800, 0
      %v2183 = vsel %vm2073, %v1803, 0
      %v2186 = vsel %vm2073, %v1806, 0
      %v2189 = vsel %vm2073, %v1809, 0
      %v2192 = vsel %vm2073, %v1812, 0
      %v2195 = vsel %vm2073, %v1815, 0
      %v2198 = vsel %vm2073, %v1818, 0
      %v2201 = vsel %vm2073, %v1821, 0
      %v2204 = vsel %vm2073, %v1824, 0
      %v2207 = vsel %vm2073, %v1827, 0
      %v2210 = vsel %vm2073, %v1830, 0
      %v2213 = vsel %vm2073, %v1833, 0
      %v2216 = vsel %vm2073, %v1836, 0
      %v2219 = vsel %vm2073, %v1839, 0
      %v2222 = vsel %vm2073, %v1842, 0
      %v2225 = vsel %vm2073, %v1845, 0
      %v2228 = vsel %vm2073, %v1848, 0
      %v2231 = vsel %vm2073, %v2035, 0
      %v2234 = vsel %vm2073, %v2038, 0
      %v2237 = vsel %vm2073, %v2041, 0
      %v2240 = vsel %vm2073, %v2044, 0
      %v2243 = vsel %vm2073, %v2047, 0
      %v2246 = vsel %vm2073, %v2050, 0
      %v2249 = vsel %vm2073, %v2053, 0
      %v2252 = vsel %vm2073, %v2056, 0
      %2254 = vmatprep.subr.bf16.mxu0 %v2034
      %2255 = vmatpush1.bf16.xpose.msra.mxu0 %v2033
      %2256 = vmatprep.subr.bf16.mxu0 %v2037
      %2257 = vmatpush1.bf16.xpose.msra.mxu0 %v2036
      %2258 = vmatprep.subr.bf16.mxu0 %v2040
      %2259 = vmatpush1.bf16.xpose.msra.mxu0 %v2039
      %2260 = vmatprep.subr.bf16.mxu0 %v2043
      %2261 = vmatpush1.bf16.xpose.msra.mxu0 %v2042
      %2262 = vmatprep.subr.bf16.mxu0 %v2046
      %2263 = vmatpush1.bf16.xpose.msra.mxu0 %v2045
      %2264 = vmatprep.subr.bf16.mxu0 %v2049
      %2265 = vmatpush1.bf16.xpose.msra.mxu0 %v2048
      %2266 = vmatprep.subr.bf16.mxu0 %v2052
      %2267 = vmatpush1.bf16.xpose.msra.mxu0 %v2051
      %2268 = vmatprep.subr.bf16.mxu0 %v2055
      %2269 = vmatpush1.bf16.xpose.msra.mxu0 %v2054
      %2270 = vmatprep.subr.bf16.mxu0 0
      %2271 = vmatpush1.bf16.xpose.msra.mxu0 0
      %2272 = vmatprep.subr.bf16.mxu0 0
      %2273 = vmatpush1.bf16.xpose.msra.mxu0 0
      %2274 = vmatprep.subr.bf16.mxu0 0
      %2275 = vmatpush1.bf16.xpose.msra.mxu0 0
      %2276 = vmatprep.subr.bf16.mxu0 0
      %2277 = vmatpush1.bf16.xpose.msra.mxu0 0
      %2278 = vmatprep.subr.bf16.mxu0 0
      %2279 = vmatpush1.bf16.xpose.msra.mxu0 0
      %2280 = vmatprep.subr.bf16.mxu0 0
      %2281 = vmatpush1.bf16.xpose.msra.mxu0 0
      %2282 = vmatprep.subr.bf16.mxu0 0
      %2283 = vmatpush1.bf16.xpose.msra.mxu0 0
      %2284 = vmatprep.subr.bf16.mxu0 0
      %2285 = vmatpush1.bf16.xpose.msra.mxu0 0
      %2286 = vmatprep.mubr.bf16.mxu0 %v1694
      %2287 = vmatmul.mubr.bf16.gmra.mrb[0].mxu0 %v1693
      %v2288 = vpop.f32.mrb[0].mxu0
      %v2289 = vadd.f32 %v656, %v2288
      %v2290 = vpop.f32.mrb[0].mxu0
      %v2291 = vpop.f32.mrb[0].mxu0
      %v2292 = vadd.f32 %v661, %v2291
      %v2293 = vpop.f32.mrb[0].mxu0
      %2294 = vmatprep.mubr.bf16.mxu0 %v1697
      %2295 = vmatmul.mubr.bf16.gmra.mrb[0].mxu0 %v1696
      %v2296 = vpop.f32.mrb[0].mxu0
      %v2297 = vadd.f32 %v666, %v2296
      %v2298 = vpop.f32.mrb[0].mxu0
      %v2299 = vpop.f32.mrb[0].mxu0
      %v2300 = vadd.f32 %v671, %v2299
      %v2301 = vpop.f32.mrb[0].mxu0
      %2302 = vmatprep.mubr.bf16.mxu0 %v1700
      %2303 = vmatmul.mubr.bf16.gmra.mrb[0].mxu0 %v1699
      %v2304 = vpop.f32.mrb[0].mxu0
      %v2305 = vadd.f32 %v676, %v2304
      %v2306 = vpop.f32.mrb[0].mxu0
      %v2307 = vpop.f32.mrb[0].mxu0
      %v2308 = vadd.f32 %v681, %v2307
      %v2309 = vpop.f32.mrb[0].mxu0
      %2310 = vmatprep.mubr.bf16.mxu0 %v1703
      %2311 = vmatmul.mubr.bf16.gmra.mrb[0].mxu0 %v1702
      %v2312 = vpop.f32.mrb[0].mxu0
      %v2313 = vadd.f32 %v686, %v2312
      %v2314 = vpop.f32.mrb[0].mxu0
      %v2315 = vpop.f32.mrb[0].mxu0
      %v2316 = vadd.f32 %v691, %v2315
      %v2317 = vpop.f32.mrb[0].mxu0
      %2318 = vmatprep.mubr.bf16.mxu0 %v1706
      %2319 = vmatmul.mubr.bf16.gmra.mrb[0].mxu0 %v1705
      %v2320 = vpop.f32.mrb[0].mxu0
      %v2321 = vadd.f32 %v696, %v2320
      %v2322 = vpop.f32.mrb[0].mxu0
      %v2323 = vpop.f32.mrb[0].mxu0
      %v2324 = vadd.f32 %v701, %v2323
      %v2325 = vpop.f32.mrb[0].mxu0
      %2326 = vmatprep.mubr.bf16.mxu0 %v1709
      %2327 = vmatmul.mubr.bf16.gmra.mrb[0].mxu0 %v1708
      %v2328 = vpop.f32.mrb[0].mxu0
      %v2329 = vadd.f32 %v706, %v2328
      %v2330 = vpop.f32.mrb[0].mxu0
      %v2331 = vpop.f32.mrb[0].mxu0
      %v2332 = vadd.f32 %v711, %v2331
      %v2333 = vpop.f32.mrb[0].mxu0
      %2334 = vmatprep.mubr.bf16.mxu0 %v1712
      %2335 = vmatmul.mubr.bf16.gmra.mrb[0].mxu0 %v1711
      %v2336 = vpop.f32.mrb[0].mxu0
      %v2337 = vadd.f32 %v716, %v2336
      %v2338 = vpop.f32.mrb[0].mxu0
      %v2339 = vpop.f32.mrb[0].mxu0
      %v2340 = vadd.f32 %v721, %v2339
      %v2341 = vpop.f32.mrb[0].mxu0
      %2342 = vmatprep.mubr.bf16.mxu0 %v1715
      %2343 = vmatmul.mubr.bf16.gmra.mrb[0].mxu0 %v1714
      %v2344 = vpop.f32.mrb[0].mxu0
      %v2345 = vadd.f32 %v726, %v2344
      %v2346 = vpop.f32.mrb[0].mxu0
      %v2347 = vpop.f32.mrb[0].mxu0
      %v2348 = vadd.f32 %v731, %v2347
      %v2349 = vpop.f32.mrb[0].mxu0
      %2350 = vmatprep.mubr.bf16.mxu0 %v1718
      %2351 = vmatmul.mubr.bf16.gmra.mrb[0].mxu0 %v1717
      %v2352 = vpop.f32.mrb[0].mxu0
      %v2353 = vadd.f32 %v736, %v2352
      %v2354 = vpop.f32.mrb[0].mxu0
      %v2355 = vpop.f32.mrb[0].mxu0
      %v2356 = vadd.f32 %v741, %v2355
      %v2357 = vpop.f32.mrb[0].mxu0
      %2358 = vmatprep.mubr.bf16.mxu0 %v1721
      %2359 = vmatmul.mubr.bf16.gmra.mrb[0].mxu0 %v1720
      %v2360 = vpop.f32.mrb[0].mxu0
      %v2361 = vadd.f32 %v746, %v2360
      %v2362 = vpop.f32.mrb[0].mxu0
      %v2363 = vpop.f32.mrb[0].mxu0
      %v2364 = vadd.f32 %v751, %v2363
      %v2365 = vpop.f32.mrb[0].mxu0
      %2366 = vmatprep.mubr.bf16.mxu0 %v1724
      %2367 = vmatmul.mubr.bf16.gmra.mrb[0].mxu0 %v1723
      %v2368 = vpop.f32.mrb[0].mxu0
      %v2369 = vadd.f32 %v756, %v2368
      %v2370 = vpop.f32.mrb[0].mxu0
      %v2371 = vpop.f32.mrb[0].mxu0
      %v2372 = vadd.f32 %v761, %v2371
      %v2373 = vpop.f32.mrb[0].mxu0
      %2374 = vmatprep.mubr.bf16.mxu0 %v1727
      %2375 = vmatmul.mubr.bf16.gmra.mrb[0].mxu0 %v1726
      %v2376 = vpop.f32.mrb[0].mxu0
      %v2377 = vadd.f32 %v766, %v2376
      %v2378 = vpop.f32.mrb[0].mxu0
      %v2379 = vpop.f32.mrb[0].mxu0
      %v2380 = vadd.f32 %v771, %v2379
      %v2381 = vpop.f32.mrb[0].mxu0
      %2382 = vmatprep.mubr.bf16.mxu0 %v1730
      %2383 = vmatmul.mubr.bf16.gmra.mrb[0].mxu0 %v1729
      %v2384 = vpop.f32.mrb[0].mxu0
      %v2385 = vadd.f32 %v776, %v2384
      %v2386 = vpop.f32.mrb[0].mxu0
      %v2387 = vpop.f32.mrb[0].mxu0
      %v2388 = vadd.f32 %v781, %v2387
      %v2389 = vpop.f32.mrb[0].mxu0
      %2390 = vmatprep.mubr.bf16.mxu0 %v1733
      %2391 = vmatmul.mubr.bf16.gmra.mrb[0].mxu0 %v1732
      %v2392 = vpop.f32.mrb[0].mxu0
      %v2393 = vadd.f32 %v786, %v2392
      %v2394 = vpop.f32.mrb[0].mxu0
      %v2395 = vpop.f32.mrb[0].mxu0
      %v2396 = vadd.f32 %v791, %v2395
      %v2397 = vpop.f32.mrb[0].mxu0
      %2398 = vmatprep.mubr.bf16.mxu0 %v1736
      %2399 = vmatmul.mubr.bf16.gmra.mrb[0].mxu0 %v1735
      %v2400 = vpop.f32.mrb[0].mxu0
      %v2401 = vadd.f32 %v796, %v2400
      %v2402 = vpop.f32.mrb[0].mxu0
      %v2403 = vpop.f32.mrb[0].mxu0
      %v2404 = vadd.f32 %v801, %v2403
      %v2405 = vpop.f32.mrb[0].mxu0
      %2406 = vmatprep.mubr.bf16.mxu0 %v1739
      %2407 = vmatmul.mubr.bf16.gmra.mrb[0].mxu0 %v1738
      %v2408 = vpop.f32.mrb[0].mxu0
      %v2409 = vadd.f32 %v806, %v2408
      %v2410 = vpop.f32.mrb[0].mxu0
      %v2411 = vpop.f32.mrb[0].mxu0
      %v2412 = vadd.f32 %v811, %v2411
      %v2413 = vpop.f32.mrb[0].mxu0
      %2414 = vmatprep.mubr.bf16.mxu0 %v1742
      %2415 = vmatmul.mubr.bf16.gmra.mrb[0].mxu0 %v1741
      %v2416 = vpop.f32.mrb[0].mxu0
      %v2417 = vadd.f32 %v816, %v2416
      %v2418 = vpop.f32.mrb[0].mxu0
      %v2419 = vpop.f32.mrb[0].mxu0
      %v2420 = vadd.f32 %v821, %v2419
      %v2421 = vpop.f32.mrb[0].mxu0
      %2422 = vmatprep.mubr.bf16.mxu0 %v1745
      %2423 = vmatmul.mubr.bf16.gmra.mrb[0].mxu0 %v1744
      %v2424 = vpop.f32.mrb[0].mxu0
      %v2425 = vadd.f32 %v826, %v2424
      %v2426 = vpop.f32.mrb[0].mxu0
      %v2427 = vpop.f32.mrb[0].mxu0
      %v2428 = vadd.f32 %v831, %v2427
      %v2429 = vpop.f32.mrb[0].mxu0
      %2430 = vmatprep.mubr.bf16.mxu0 %v1748
      %2431 = vmatmul.mubr.bf16.gmra.mrb[0].mxu0 %v1747
      %v2432 = vpop.f32.mrb[0].mxu0
      %v2433 = vadd.f32 %v836, %v2432
      %v2434 = vpop.f32.mrb[0].mxu0
      %v2435 = vpop.f32.mrb[0].mxu0
      %v2436 = vadd.f32 %v841, %v2435
      %v2437 = vpop.f32.mrb[0].mxu0
      %2438 = vmatprep.mubr.bf16.mxu0 %v1751
      %2439 = vmatmul.mubr.bf16.gmra.mrb[0].mxu0 %v1750
      %v2440 = vpop.f32.mrb[0].mxu0
      %v2441 = vadd.f32 %v846, %v2440
      %v2442 = vpop.f32.mrb[0].mxu0
      %v2443 = vpop.f32.mrb[0].mxu0
      %v2444 = vadd.f32 %v851, %v2443
      %v2445 = vpop.f32.mrb[0].mxu0
      %2446 = vmatprep.mubr.bf16.mxu0 %v1754
      %2447 = vmatmul.mubr.bf16.gmra.mrb[0].mxu0 %v1753
      %v2448 = vpop.f32.mrb[0].mxu0
      %v2449 = vadd.f32 %v856, %v2448
      %v2450 = vpop.f32.mrb[0].mxu0
      %v2451 = vpop.f32.mrb[0].mxu0
      %v2452 = vadd.f32 %v861, %v2451
      %v2453 = vpop.f32.mrb[0].mxu0
      %2454 = vmatprep.mubr.bf16.mxu0 %v1757
      %2455 = vmatmul.mubr.bf16.gmra.mrb[0].mxu0 %v1756
      %v2456 = vpop.f32.mrb[0].mxu0
      %v2457 = vadd.f32 %v866, %v2456
      %v2458 = vpop.f32.mrb[0].mxu0
      %v2459 = vpop.f32.mrb[0].mxu0
      %v2460 = vadd.f32 %v871, %v2459
      %v2461 = vpop.f32.mrb[0].mxu0
      %2462 = vmatprep.mubr.bf16.mxu0 %v1760
      %2463 = vmatmul.mubr.bf16.gmra.mrb[0].mxu0 %v1759
      %v2464 = vpop.f32.mrb[0].mxu0
      %v2465 = vadd.f32 %v876, %v2464
      %v2466 = vpop.f32.mrb[0].mxu0
      %v2467 = vpop.f32.mrb[0].mxu0
      %v2468 = vadd.f32 %v881, %v2467
      %v2469 = vpop.f32.mrb[0].mxu0
      %2470 = vmatprep.mubr.bf16.mxu0 %v1763
      %2471 = vmatmul.mubr.bf16.gmra.mrb[0].mxu0 %v1762
      %v2472 = vpop.f32.mrb[0].mxu0
      %v2473 = vadd.f32 %v886, %v2472
      %v2474 = vpop.f32.mrb[0].mxu0
      %v2475 = vpop.f32.mrb[0].mxu0
      %v2476 = vadd.f32 %v891, %v2475
      %v2477 = vpop.f32.mrb[0].mxu0
      %2478 = vmatprep.mubr.bf16.mxu0 %v1766
      %2479 = vmatmul.mubr.bf16.gmra.mrb[0].mxu0 %v1765
      %v2480 = vpop.f32.mrb[0].mxu0
      %v2481 = vadd.f32 %v896, %v2480
      %v2482 = vpop.f32.mrb[0].mxu0
      %v2483 = vpop.f32.mrb[0].mxu0
      %v2484 = vadd.f32 %v901, %v2483
      %v2485 = vpop.f32.mrb[0].mxu0
      %2486 = vmatprep.mubr.bf16.mxu0 %v1769
      %2487 = vmatmul.mubr.bf16.gmra.mrb[0].mxu0 %v1768
      %v2488 = vpop.f32.mrb[0].mxu0
      %v2489 = vadd.f32 %v906, %v2488
      %v2490 = vpop.f32.mrb[0].mxu0
      %v2491 = vpop.f32.mrb[0].mxu0
      %v2492 = vadd.f32 %v911, %v2491
      %v2493 = vpop.f32.mrb[0].mxu0
      %2494 = vmatprep.mubr.bf16.mxu0 %v1772
      %2495 = vmatmul.mubr.bf16.gmra.mrb[0].mxu0 %v1771
      %v2496 = vpop.f32.mrb[0].mxu0
      %v2497 = vadd.f32 %v916, %v2496
      %v2498 = vpop.f32.mrb[0].mxu0
      %v2499 = vpop.f32.mrb[0].mxu0
      %v2500 = vadd.f32 %v921, %v2499
      %v2501 = vpop.f32.mrb[0].mxu0
      %2502 = vmatprep.mubr.bf16.mxu0 %v1775
      %2503 = vmatmul.mubr.bf16.gmra.mrb[0].mxu0 %v1774
      %v2504 = vpop.f32.mrb[0].mxu0
      %v2505 = vadd.f32 %v926, %v2504
      %v2506 = vpop.f32.mrb[0].mxu0
      %v2507 = vpop.f32.mrb[0].mxu0
      %v2508 = vadd.f32 %v931, %v2507
      %v2509 = vpop.f32.mrb[0].mxu0
      %2510 = vmatprep.mubr.bf16.mxu0 %v1778
      %2511 = vmatmul.mubr.bf16.gmra.mrb[0].mxu0 %v1777
      %v2512 = vpop.f32.mrb[0].mxu0
      %v2513 = vadd.f32 %v936, %v2512
      %v2514 = vpop.f32.mrb[0].mxu0
      %v2515 = vpop.f32.mrb[0].mxu0
      %v2516 = vadd.f32 %v941, %v2515
      %v2517 = vpop.f32.mrb[0].mxu0
      %2518 = vmatprep.mubr.bf16.mxu0 %v1781
      %2519 = vmatmul.mubr.bf16.gmra.mrb[0].mxu0 %v1780
      %v2520 = vpop.f32.mrb[0].mxu0
      %v2521 = vadd.f32 %v946, %v2520
      %v2522 = vpop.f32.mrb[0].mxu0
      %v2523 = vpop.f32.mrb[0].mxu0
      %v2524 = vadd.f32 %v951, %v2523
      %v2525 = vpop.f32.mrb[0].mxu0
      %2526 = vmatprep.mubr.bf16.mxu0 %v1784
      %2527 = vmatmul.mubr.bf16.gmra.mrb[0].mxu0 %v1783
      %v2528 = vpop.f32.mrb[0].mxu0
      %v2529 = vadd.f32 %v956, %v2528
      %v2530 = vpop.f32.mrb[0].mxu0
      %v2531 = vpop.f32.mrb[0].mxu0
      %v2532 = vadd.f32 %v961, %v2531
      %v2533 = vpop.f32.mrb[0].mxu0
      %2534 = vmatprep.mubr.bf16.mxu0 %v1787
      %2535 = vmatmul.mubr.bf16.gmra.mrb[0].mxu0 %v1786
      %v2536 = vpop.f32.mrb[0].mxu0
      %v2537 = vadd.f32 %v966, %v2536
      %v2538 = vpop.f32.mrb[0].mxu0
      %v2539 = vpop.f32.mrb[0].mxu0
      %v2540 = vadd.f32 %v971, %v2539
      %v2541 = vpop.f32.mrb[0].mxu0
      %2542 = vmatprep.mubr.bf16.mxu0 %v1790
      %2543 = vmatmul.mubr.bf16.gmra.mrb[0].mxu0 %v1789
      %v2544 = vpop.f32.mrb[0].mxu0
      %v2545 = vadd.f32 %v976, %v2544
      %v2546 = vpop.f32.mrb[0].mxu0
      %v2547 = vpop.f32.mrb[0].mxu0
      %v2548 = vadd.f32 %v981, %v2547
      %v2549 = vpop.f32.mrb[0].mxu0
      %2550 = vmatprep.mubr.bf16.mxu0 %v1793
      %2551 = vmatmul.mubr.bf16.gmra.mrb[0].mxu0 %v1792
      %v2552 = vpop.f32.mrb[0].mxu0
      %v2553 = vadd.f32 %v986, %v2552
      %v2554 = vpop.f32.mrb[0].mxu0
      %v2555 = vpop.f32.mrb[0].mxu0
      %v2556 = vadd.f32 %v991, %v2555
      %v2557 = vpop.f32.mrb[0].mxu0
      %2558 = vmatprep.mubr.bf16.mxu0 %v1796
      %2559 = vmatmul.mubr.bf16.gmra.mrb[0].mxu0 %v1795
      %v2560 = vpop.f32.mrb[0].mxu0
      %v2561 = vadd.f32 %v996, %v2560
      %v2562 = vpop.f32.mrb[0].mxu0
      %v2563 = vpop.f32.mrb[0].mxu0
      %v2564 = vadd.f32 %v1001, %v2563
      %v2565 = vpop.f32.mrb[0].mxu0
      %2566 = vmatprep.mubr.bf16.mxu0 %v1799
      %2567 = vmatmul.mubr.bf16.gmra.mrb[0].mxu0 %v1798
      %v2568 = vpop.f32.mrb[0].mxu0
      %v2569 = vadd.f32 %v1006, %v2568
      %v2570 = vpop.f32.mrb[0].mxu0
      %v2571 = vpop.f32.mrb[0].mxu0
      %v2572 = vadd.f32 %v1011, %v2571
      %v2573 = vpop.f32.mrb[0].mxu0
      %2574 = vmatprep.mubr.bf16.mxu0 %v1802
      %2575 = vmatmul.mubr.bf16.gmra.mrb[0].mxu0 %v1801
      %v2576 = vpop.f32.mrb[0].mxu0
      %v2577 = vadd.f32 %v1016, %v2576
      %v2578 = vpop.f32.mrb[0].mxu0
      %v2579 = vpop.f32.mrb[0].mxu0
      %v2580 = vadd.f32 %v1021, %v2579
      %v2581 = vpop.f32.mrb[0].mxu0
      %2582 = vmatprep.mubr.bf16.mxu0 %v1805
      %2583 = vmatmul.mubr.bf16.gmra.mrb[0].mxu0 %v1804
      %v2584 = vpop.f32.mrb[0].mxu0
      %v2585 = vadd.f32 %v1026, %v2584
      %v2586 = vpop.f32.mrb[0].mxu0
      %v2587 = vpop.f32.mrb[0].mxu0
      %v2588 = vadd.f32 %v1031, %v2587
      %v2589 = vpop.f32.mrb[0].mxu0
      %2590 = vmatprep.mubr.bf16.mxu0 %v1808
      %2591 = vmatmul.mubr.bf16.gmra.mrb[0].mxu0 %v1807
      %v2592 = vpop.f32.mrb[0].mxu0
      %v2593 = vadd.f32 %v1036, %v2592
      %v2594 = vpop.f32.mrb[0].mxu0
      %v2595 = vpop.f32.mrb[0].mxu0
      %v2596 = vadd.f32 %v1041, %v2595
      %v2597 = vpop.f32.mrb[0].mxu0
      %2598 = vmatprep.mubr.bf16.mxu0 %v1811
      %2599 = vmatmul.mubr.bf16.gmra.mrb[0].mxu0 %v1810
      %v2600 = vpop.f32.mrb[0].mxu0
      %v2601 = vadd.f32 %v1046, %v2600
      %v2602 = vpop.f32.mrb[0].mxu0
      %v2603 = vpop.f32.mrb[0].mxu0
      %v2604 = vadd.f32 %v1051, %v2603
      %v2605 = vpop.f32.mrb[0].mxu0
      %2606 = vmatprep.mubr.bf16.mxu0 %v1814
      %2607 = vmatmul.mubr.bf16.gmra.mrb[0].mxu0 %v1813
      %v2608 = vpop.f32.mrb[0].mxu0
      %v2609 = vadd.f32 %v1056, %v2608
      %v2610 = vpop.f32.mrb[0].mxu0
      %v2611 = vpop.f32.mrb[0].mxu0
      %v2612 = vadd.f32 %v1061, %v2611
      %v2613 = vpop.f32.mrb[0].mxu0
      %2614 = vmatprep.mubr.bf16.mxu0 %v1817
      %2615 = vmatmul.mubr.bf16.gmra.mrb[0].mxu0 %v1816
      %v2616 = vpop.f32.mrb[0].mxu0
      %v2617 = vadd.f32 %v1066, %v2616
      %v2618 = vpop.f32.mrb[0].mxu0
      %v2619 = vpop.f32.mrb[0].mxu0
      %v2620 = vadd.f32 %v1071, %v2619
      %v2621 = vpop.f32.mrb[0].mxu0
      %2622 = vmatprep.mubr.bf16.mxu0 %v1820
      %2623 = vmatmul.mubr.bf16.gmra.mrb[0].mxu0 %v1819
      %v2624 = vpop.f32.mrb[0].mxu0
      %v2625 = vadd.f32 %v1076, %v2624
      %v2626 = vpop.f32.mrb[0].mxu0
      %v2627 = vpop.f32.mrb[0].mxu0
      %v2628 = vadd.f32 %v1081, %v2627
      %v2629 = vpop.f32.mrb[0].mxu0
      %2630 = vmatprep.mubr.bf16.mxu0 %v1823
      %2631 = vmatmul.mubr.bf16.gmra.mrb[0].mxu0 %v1822
      %v2632 = vpop.f32.mrb[0].mxu0
      %v2633 = vadd.f32 %v1086, %v2632
      %v2634 = vpop.f32.mrb[0].mxu0
      %v2635 = vpop.f32.mrb[0].mxu0
      %v2636 = vadd.f32 %v1091, %v2635
      %v2637 = vpop.f32.mrb[0].mxu0
      %2638 = vmatprep.mubr.bf16.mxu0 %v1826
      %2639 = vmatmul.mubr.bf16.gmra.mrb[0].mxu0 %v1825
      %v2640 = vpop.f32.mrb[0].mxu0
      %v2641 = vadd.f32 %v1096, %v2640
      %v2642 = vpop.f32.mrb[0].mxu0
      %v2643 = vpop.f32.mrb[0].mxu0
      %v2644 = vadd.f32 %v1101, %v2643
      %v2645 = vpop.f32.mrb[0].mxu0
      %2646 = vmatprep.mubr.bf16.mxu0 %v1829
      %2647 = vmatmul.mubr.bf16.gmra.mrb[0].mxu0 %v1828
      %v2648 = vpop.f32.mrb[0].mxu0
      %v2649 = vadd.f32 %v1106, %v2648
      %v2650 = vpop.f32.mrb[0].mxu0
      %v2651 = vpop.f32.mrb[0].mxu0
      %v2652 = vadd.f32 %v1111, %v2651
      %v2653 = vpop.f32.mrb[0].mxu0
      %2654 = vmatprep.mubr.bf16.mxu0 %v1832
      %2655 = vmatmul.mubr.bf16.gmra.mrb[0].mxu0 %v1831
      %v2656 = vpop.f32.mrb[0].mxu0
      %v2657 = vadd.f32 %v1116, %v2656
      %v2658 = vpop.f32.mrb[0].mxu0
      %v2659 = vpop.f32.mrb[0].mxu0
      %v2660 = vadd.f32 %v1121, %v2659
      %v2661 = vpop.f32.mrb[0].mxu0
      %2662 = vmatprep.mubr.bf16.mxu0 %v1835
      %2663 = vmatmul.mubr.bf16.gmra.mrb[0].mxu0 %v1834
      %v2664 = vpop.f32.mrb[0].mxu0
      %v2665 = vadd.f32 %v1126, %v2664
      %v2666 = vpop.f32.mrb[0].mxu0
      %v2667 = vpop.f32.mrb[0].mxu0
      %v2668 = vadd.f32 %v1131, %v2667
      %v2669 = vpop.f32.mrb[0].mxu0
      %2670 = vmatprep.mubr.bf16.mxu0 %v1838
      %2671 = vmatmul.mubr.bf16.gmra.mrb[0].mxu0 %v1837
      %v2672 = vpop.f32.mrb[0].mxu0
      %v2673 = vadd.f32 %v1136, %v2672
      %v2674 = vpop.f32.mrb[0].mxu0
      %v2675 = vpop.f32.mrb[0].mxu0
      %v2676 = vadd.f32 %v1141, %v2675
      %v2677 = vpop.f32.mrb[0].mxu0
      %2678 = vmatprep.mubr.bf16.mxu0 %v1841
      %2679 = vmatmul.mubr.bf16.gmra.mrb[0].mxu0 %v1840
      %v2680 = vpop.f32.mrb[0].mxu0
      %v2681 = vadd.f32 %v1146, %v2680
      %v2682 = vpop.f32.mrb[0].mxu0
      %v2683 = vpop.f32.mrb[0].mxu0
      %v2684 = vadd.f32 %v1151, %v2683
      %v2685 = vpop.f32.mrb[0].mxu0
      %2686 = vmatprep.mubr.bf16.mxu0 %v1844
      %2687 = vmatmul.mubr.bf16.gmra.mrb[0].mxu0 %v1843
      %v2688 = vpop.f32.mrb[0].mxu0
      %v2689 = vadd.f32 %v1156, %v2688
      %v2690 = vpop.f32.mrb[0].mxu0
      %v2691 = vpop.f32.mrb[0].mxu0
      %v2692 = vadd.f32 %v1161, %v2691
      %v2693 = vpop.f32.mrb[0].mxu0
      %2694 = vmatprep.mubr.bf16.mxu0 %v1847
      %2695 = vmatmul.mubr.bf16.gmra.mrb[0].mxu0 %v1846
      %v2696 = vpop.f32.mrb[0].mxu0
      %v2697 = vadd.f32 %v1166, %v2696
      %v2698 = vpop.f32.mrb[0].mxu0
      %v2699 = vpop.f32.mrb[0].mxu0
      %v2700 = vadd.f32 %v1171, %v2699
      %v2701 = vpop.f32.mrb[0].mxu0
      %2702 = vdwg.mxu0
      %2703 = vmatprep.subr.bf16.mxu0 0
      %2704 = vmatpush1.bf16.xpose.msra.mxu0 %v2231
      %2705 = vmatprep.subr.bf16.mxu0 0
      %2706 = vmatpush1.bf16.xpose.msra.mxu0 %v2234
      %2707 = vmatprep.subr.bf16.mxu0 0
      %2708 = vmatpush1.bf16.xpose.msra.mxu0 %v2237
      %2709 = vmatprep.subr.bf16.mxu0 0
      %2710 = vmatpush1.bf16.xpose.msra.mxu0 %v2240
      %2711 = vmatprep.subr.bf16.mxu0 0
      %2712 = vmatpush1.bf16.xpose.msra.mxu0 %v2243
      %2713 = vmatprep.subr.bf16.mxu0 0
      %2714 = vmatpush1.bf16.xpose.msra.mxu0 %v2246
      %2715 = vmatprep.subr.bf16.mxu0 0
      %2716 = vmatpush1.bf16.xpose.msra.mxu0 %v2249
      %2717 = vmatprep.subr.bf16.mxu0 0
      %2718 = vmatpush1.bf16.xpose.msra.mxu0 %v2252
      %2719 = vmatprep.subr.bf16.mxu0 0
      %2720 = vmatpush1.bf16.xpose.msra.mxu0 0
      %2721 = vmatprep.subr.bf16.mxu0 0
      %2722 = vmatpush1.bf16.xpose.msra.mxu0 0
      %2723 = vmatprep.subr.bf16.mxu0 0
      %2724 = vmatpush1.bf16.xpose.msra.mxu0 0
      %2725 = vmatprep.subr.bf16.mxu0 0
      %2726 = vmatpush1.bf16.xpose.msra.mxu0 0
      %2727 = vmatprep.subr.bf16.mxu0 0
      %2728 = vmatpush1.bf16.xpose.msra.mxu0 0
      %2729 = vmatprep.subr.bf16.mxu0 0
      %2730 = vmatpush1.bf16.xpose.msra.mxu0 0
      %2731 = vmatprep.subr.bf16.mxu0 0
      %2732 = vmatpush1.bf16.xpose.msra.mxu0 0
      %2733 = vmatprep.subr.bf16.mxu0 0
      %2734 = vmatpush1.bf16.xpose.msra.mxu0 0
      %2735 = vmatprep.mubr.bf16.mxu0 0
      %2736 = vmatmul.mubr.bf16.gmra.mrb[0].mxu0 %v2075
      %v2737 = vpop.f32.mrb[0].mxu0
      %v2738 = vadd.f32 %v2289, %v2737
      %v2739 = vpop.f32.mrb[0].mxu0
      %v2740 = vpop.f32.mrb[0].mxu0
      %v2741 = vadd.f32 %v2292, %v2740
      %v2742 = vpop.f32.mrb[0].mxu0
      %2743 = vmatprep.mubr.bf16.mxu0 0
      %2744 = vmatmul.mubr.bf16.gmra.mrb[0].mxu0 %v2078
      %v2745 = vpop.f32.mrb[0].mxu0
      %v2746 = vadd.f32 %v2297, %v2745
      %v2747 = vpop.f32.mrb[0].mxu0
      %v2748 = vpop.f32.mrb[0].mxu0
      %v2749 = vadd.f32 %v2300, %v2748
      %v2750 = vpop.f32.mrb[0].mxu0
      %2751 = vmatprep.mubr.bf16.mxu0 0
      %2752 = vmatmul.mubr.bf16.gmra.mrb[0].mxu0 %v2081
      %v2753 = vpop.f32.mrb[0].mxu0
      %v2754 = vadd.f32 %v2305, %v2753
      %v2755 = vpop.f32.mrb[0].mxu0
      %v2756 = vpop.f32.mrb[0].mxu0
      %v2757 = vadd.f32 %v2308, %v2756
      %v2758 = vpop.f32.mrb[0].mxu0
      %2759 = vmatprep.mubr.bf16.mxu0 0
      %2760 = vmatmul.mubr.bf16.gmra.mrb[0].mxu0 %v2084
      %v2761 = vpop.f32.mrb[0].mxu0
      %v2762 = vadd.f32 %v2313, %v2761
      %v2763 = vpop.f32.mrb[0].mxu0
      %v2764 = vpop.f32.mrb[0].mxu0
      %v2765 = vadd.f32 %v2316, %v2764
      %v2766 = vpop.f32.mrb[0].mxu0
      %2767 = vmatprep.mubr.bf16.mxu0 0
      %2768 = vmatmul.mubr.bf16.gmra.mrb[0].mxu0 %v2087
      %v2769 = vpop.f32.mrb[0].mxu0
      %v2770 = vadd.f32 %v2321, %v2769
      %v2771 = vpop.f32.mrb[0].mxu0
      %v2772 = vpop.f32.mrb[0].mxu0
      %v2773 = vadd.f32 %v2324, %v2772
      %v2774 = vpop.f32.mrb[0].mxu0
      %2775 = vmatprep.mubr.bf16.mxu0 0
      %2776 = vmatmul.mubr.bf16.gmra.mrb[0].mxu0 %v2090
      %v2777 = vpop.f32.mrb[0].mxu0
      %v2778 = vadd.f32 %v2329, %v2777
      %v2779 = vpop.f32.mrb[0].mxu0
      %v2780 = vpop.f32.mrb[0].mxu0
      %v2781 = vadd.f32 %v2332, %v2780
      %v2782 = vpop.f32.mrb[0].mxu0
      %2783 = vmatprep.mubr.bf16.mxu0 0
      %2784 = vmatmul.mubr.bf16.gmra.mrb[0].mxu0 %v2093
      %v2785 = vpop.f32.mrb[0].mxu0
      %v2786 = vadd.f32 %v2337, %v2785
      %v2787 = vpop.f32.mrb[0].mxu0
      %v2788 = vpop.f32.mrb[0].mxu0
      %v2789 = vadd.f32 %v2340, %v2788
      %v2790 = vpop.f32.mrb[0].mxu0
      %2791 = vmatprep.mubr.bf16.mxu0 0
      %2792 = vmatmul.mubr.bf16.gmra.mrb[0].mxu0 %v2096
      %v2793 = vpop.f32.mrb[0].mxu0
      %v2794 = vadd.f32 %v2345, %v2793
      %v2795 = vpop.f32.mrb[0].mxu0
      %v2796 = vpop.f32.mrb[0].mxu0
      %v2797 = vadd.f32 %v2348, %v2796
      %v2798 = vpop.f32.mrb[0].mxu0
      %2799 = vmatprep.mubr.bf16.mxu0 0
      %2800 = vmatmul.mubr.bf16.gmra.mrb[0].mxu0 %v2099
      %v2801 = vpop.f32.mrb[0].mxu0
      %v2802 = vadd.f32 %v2353, %v2801
      %v2803 = vpop.f32.mrb[0].mxu0
      %v2804 = vpop.f32.mrb[0].mxu0
      %v2805 = vadd.f32 %v2356, %v2804
      %v2806 = vpop.f32.mrb[0].mxu0
      %2807 = vmatprep.mubr.bf16.mxu0 0
      %2808 = vmatmul.mubr.bf16.gmra.mrb[0].mxu0 %v2102
      %v2809 = vpop.f32.mrb[0].mxu0
      %v2810 = vadd.f32 %v2361, %v2809
      %v2811 = vpop.f32.mrb[0].mxu0
      %v2812 = vpop.f32.mrb[0].mxu0
      %v2813 = vadd.f32 %v2364, %v2812
      %v2814 = vpop.f32.mrb[0].mxu0
      %2815 = vmatprep.mubr.bf16.mxu0 0
      %2816 = vmatmul.mubr.bf16.gmra.mrb[0].mxu0 %v2105
      %v2817 = vpop.f32.mrb[0].mxu0
      %v2818 = vadd.f32 %v2369, %v2817
      %v2819 = vpop.f32.mrb[0].mxu0
      %v2820 = vpop.f32.mrb[0].mxu0
      %v2821 = vadd.f32 %v2372, %v2820
      %v2822 = vpop.f32.mrb[0].mxu0
      %2823 = vmatprep.mubr.bf16.mxu0 0
      %2824 = vmatmul.mubr.bf16.gmra.mrb[0].mxu0 %v2108
      %v2825 = vpop.f32.mrb[0].mxu0
      %v2826 = vadd.f32 %v2377, %v2825
      %v2827 = vpop.f32.mrb[0].mxu0
      %v2828 = vpop.f32.mrb[0].mxu0
      %v2829 = vadd.f32 %v2380, %v2828
      %v2830 = vpop.f32.mrb[0].mxu0
      %2831 = vmatprep.mubr.bf16.mxu0 0
      %2832 = vmatmul.mubr.bf16.gmra.mrb[0].mxu0 %v2111
      %v2833 = vpop.f32.mrb[0].mxu0
      %v2834 = vadd.f32 %v2385, %v2833
      %v2835 = vpop.f32.mrb[0].mxu0
      %v2836 = vpop.f32.mrb[0].mxu0
      %v2837 = vadd.f32 %v2388, %v2836
      %v2838 = vpop.f32.mrb[0].mxu0
      %2839 = vmatprep.mubr.bf16.mxu0 0
      %2840 = vmatmul.mubr.bf16.gmra.mrb[0].mxu0 %v2114
      %v2841 = vpop.f32.mrb[0].mxu0
      %v2842 = vadd.f32 %v2393, %v2841
      %v2843 = vpop.f32.mrb[0].mxu0
      %v2844 = vpop.f32.mrb[0].mxu0
      %v2845 = vadd.f32 %v2396, %v2844
      %v2846 = vpop.f32.mrb[0].mxu0
      %2847 = vmatprep.mubr.bf16.mxu0 0
      %2848 = vmatmul.mubr.bf16.gmra.mrb[0].mxu0 %v2117
      %v2849 = vpop.f32.mrb[0].mxu0
      %v2850 = vadd.f32 %v2401, %v2849
      %v2851 = vpop.f32.mrb[0].mxu0
      %v2852 = vpop.f32.mrb[0].mxu0
      %v2853 = vadd.f32 %v2404, %v2852
      %v2854 = vpop.f32.mrb[0].mxu0
      %2855 = vmatprep.mubr.bf16.mxu0 0
      %2856 = vmatmul.mubr.bf16.gmra.mrb[0].mxu0 %v2120
      %v2857 = vpop.f32.mrb[0].mxu0
      %v2858 = vadd.f32 %v2409, %v2857
      %v2859 = vpop.f32.mrb[0].mxu0
      %v2860 = vpop.f32.mrb[0].mxu0
      %v2861 = vadd.f32 %v2412, %v2860
      %v2862 = vpop.f32.mrb[0].mxu0
      %2863 = vmatprep.mubr.bf16.mxu0 0
      %2864 = vmatmul.mubr.bf16.gmra.mrb[0].mxu0 %v2123
      %v2865 = vpop.f32.mrb[0].mxu0
      %v2866 = vadd.f32 %v2417, %v2865
      %v2867 = vpop.f32.mrb[0].mxu0
      %v2868 = vpop.f32.mrb[0].mxu0
      %v2869 = vadd.f32 %v2420, %v2868
      %v2870 = vpop.f32.mrb[0].mxu0
      %2871 = vmatprep.mubr.bf16.mxu0 0
      %2872 = vmatmul.mubr.bf16.gmra.mrb[0].mxu0 %v2126
      %v2873 = vpop.f32.mrb[0].mxu0
      %v2874 = vadd.f32 %v2425, %v2873
      %v2875 = vpop.f32.mrb[0].mxu0
      %v2876 = vpop.f32.mrb[0].mxu0
      %v2877 = vadd.f32 %v2428, %v2876
      %v2878 = vpop.f32.mrb[0].mxu0
      %2879 = vmatprep.mubr.bf16.mxu0 0
      %2880 = vmatmul.mubr.bf16.gmra.mrb[0].mxu0 %v2129
      %v2881 = vpop.f32.mrb[0].mxu0
      %v2882 = vadd.f32 %v2433, %v2881
      %v2883 = vpop.f32.mrb[0].mxu0
      %v2884 = vpop.f32.mrb[0].mxu0
      %v2885 = vadd.f32 %v2436, %v2884
      %v2886 = vpop.f32.mrb[0].mxu0
      %2887 = vmatprep.mubr.bf16.mxu0 0
      %2888 = vmatmul.mubr.bf16.gmra.mrb[0].mxu0 %v2132
      %v2889 = vpop.f32.mrb[0].mxu0
      %v2890 = vadd.f32 %v2441, %v2889
      %v2891 = vpop.f32.mrb[0].mxu0
      %v2892 = vpop.f32.mrb[0].mxu0
      %v2893 = vadd.f32 %v2444, %v2892
      %v2894 = vpop.f32.mrb[0].mxu0
      %2895 = vmatprep.mubr.bf16.mxu0 0
      %2896 = vmatmul.mubr.bf16.gmra.mrb[0].mxu0 %v2135
      %v2897 = vpop.f32.mrb[0].mxu0
      %v2898 = vadd.f32 %v2449, %v2897
      %v2899 = vpop.f32.mrb[0].mxu0
      %v2900 = vpop.f32.mrb[0].mxu0
      %v2901 = vadd.f32 %v2452, %v2900
      %v2902 = vpop.f32.mrb[0].mxu0
      %2903 = vmatprep.mubr.bf16.mxu0 0
      %2904 = vmatmul.mubr.bf16.gmra.mrb[0].mxu0 %v2138
      %v2905 = vpop.f32.mrb[0].mxu0
      %v2906 = vadd.f32 %v2457, %v2905
      %v2907 = vpop.f32.mrb[0].mxu0
      %v2908 = vpop.f32.mrb[0].mxu0
      %v2909 = vadd.f32 %v2460, %v2908
      %v2910 = vpop.f32.mrb[0].mxu0
      %2911 = vmatprep.mubr.bf16.mxu0 0
      %2912 = vmatmul.mubr.bf16.gmra.mrb[0].mxu0 %v2141
      %v2913 = vpop.f32.mrb[0].mxu0
      %v2914 = vadd.f32 %v2465, %v2913
      %v2915 = vpop.f32.mrb[0].mxu0
      %v2916 = vpop.f32.mrb[0].mxu0
      %v2917 = vadd.f32 %v2468, %v2916
      %v2918 = vpop.f32.mrb[0].mxu0
      %2919 = vmatprep.mubr.bf16.mxu0 0
      %2920 = vmatmul.mubr.bf16.gmra.mrb[0].mxu0 %v2144
      %v2921 = vpop.f32.mrb[0].mxu0
      %v2922 = vadd.f32 %v2473, %v2921
      %v2923 = vpop.f32.mrb[0].mxu0
      %v2924 = vpop.f32.mrb[0].mxu0
      %v2925 = vadd.f32 %v2476, %v2924
      %v2926 = vpop.f32.mrb[0].mxu0
      %2927 = vmatprep.mubr.bf16.mxu0 0
      %2928 = vmatmul.mubr.bf16.gmra.mrb[0].mxu0 %v2147
      %v2929 = vpop.f32.mrb[0].mxu0
      %v2930 = vadd.f32 %v2481, %v2929
      %v2931 = vpop.f32.mrb[0].mxu0
      %v2932 = vpop.f32.mrb[0].mxu0
      %v2933 = vadd.f32 %v2484, %v2932
      %v2934 = vpop.f32.mrb[0].mxu0
      %2935 = vmatprep.mubr.bf16.mxu0 0
      %2936 = vmatmul.mubr.bf16.gmra.mrb[0].mxu0 %v2150
      %v2937 = vpop.f32.mrb[0].mxu0
      %v2938 = vadd.f32 %v2489, %v2937
      %v2939 = vpop.f32.mrb[0].mxu0
      %v2940 = vpop.f32.mrb[0].mxu0
      %v2941 = vadd.f32 %v2492, %v2940
      %v2942 = vpop.f32.mrb[0].mxu0
      %2943 = vmatprep.mubr.bf16.mxu0 0
      %2944 = vmatmul.mubr.bf16.gmra.mrb[0].mxu0 %v2153
      %v2945 = vpop.f32.mrb[0].mxu0
      %v2946 = vadd.f32 %v2497, %v2945
      %v2947 = vpop.f32.mrb[0].mxu0
      %v2948 = vpop.f32.mrb[0].mxu0
      %v2949 = vadd.f32 %v2500, %v2948
      %v2950 = vpop.f32.mrb[0].mxu0
      %2951 = vmatprep.mubr.bf16.mxu0 0
      %2952 = vmatmul.mubr.bf16.gmra.mrb[0].mxu0 %v2156
      %v2953 = vpop.f32.mrb[0].mxu0
      %v2954 = vadd.f32 %v2505, %v2953
      %v2955 = vpop.f32.mrb[0].mxu0
      %v2956 = vpop.f32.mrb[0].mxu0
      %v2957 = vadd.f32 %v2508, %v2956
      %v2958 = vpop.f32.mrb[0].mxu0
      %2959 = vmatprep.mubr.bf16.mxu0 0
      %2960 = vmatmul.mubr.bf16.gmra.mrb[0].mxu0 %v2159
      %v2961 = vpop.f32.mrb[0].mxu0
      %v2962 = vadd.f32 %v2513, %v2961
      %v2963 = vpop.f32.mrb[0].mxu0
      %v2964 = vpop.f32.mrb[0].mxu0
      %v2965 = vadd.f32 %v2516, %v2964
      %v2966 = vpop.f32.mrb[0].mxu0
      %2967 = vmatprep.mubr.bf16.mxu0 0
      %2968 = vmatmul.mubr.bf16.gmra.mrb[0].mxu0 %v2162
      %v2969 = vpop.f32.mrb[0].mxu0
      %v2970 = vadd.f32 %v2521, %v2969
      %v2971 = vpop.f32.mrb[0].mxu0
      %v2972 = vpop.f32.mrb[0].mxu0
      %v2973 = vadd.f32 %v2524, %v2972
      %v2974 = vpop.f32.mrb[0].mxu0
      %2975 = vmatprep.mubr.bf16.mxu0 0
      %2976 = vmatmul.mubr.bf16.gmra.mrb[0].mxu0 %v2165
      %v2977 = vpop.f32.mrb[0].mxu0
      %v2978 = vadd.f32 %v2529, %v2977
      %v2979 = vpop.f32.mrb[0].mxu0
      %v2980 = vpop.f32.mrb[0].mxu0
      %v2981 = vadd.f32 %v2532, %v2980
      %v2982 = vpop.f32.mrb[0].mxu0
      %2983 = vmatprep.mubr.bf16.mxu0 0
      %2984 = vmatmul.mubr.bf16.gmra.mrb[0].mxu0 %v2168
      %v2985 = vpop.f32.mrb[0].mxu0
      %v2986 = vadd.f32 %v2537, %v2985
      %v2987 = vpop.f32.mrb[0].mxu0
      %v2988 = vpop.f32.mrb[0].mxu0
      %v2989 = vadd.f32 %v2540, %v2988
      %v2990 = vpop.f32.mrb[0].mxu0
      %2991 = vmatprep.mubr.bf16.mxu0 0
      %2992 = vmatmul.mubr.bf16.gmra.mrb[0].mxu0 %v2171
      %v2993 = vpop.f32.mrb[0].mxu0
      %v2994 = vadd.f32 %v2545, %v2993
      %v2995 = vpop.f32.mrb[0].mxu0
      %v2996 = vpop.f32.mrb[0].mxu0
      %v2997 = vadd.f32 %v2548, %v2996
      %v2998 = vpop.f32.mrb[0].mxu0
      %2999 = vmatprep.mubr.bf16.mxu0 0
      %3000 = vmatmul.mubr.bf16.gmra.mrb[0].mxu0 %v2174
      %v3001 = vpop.f32.mrb[0].mxu0
      %v3002 = vadd.f32 %v2553, %v3001
      %v3003 = vpop.f32.mrb[0].mxu0
      %v3004 = vpop.f32.mrb[0].mxu0
      %v3005 = vadd.f32 %v2556, %v3004
      %v3006 = vpop.f32.mrb[0].mxu0
      %3007 = vmatprep.mubr.bf16.mxu0 0
      %3008 = vmatmul.mubr.bf16.gmra.mrb[0].mxu0 %v2177
      %v3009 = vpop.f32.mrb[0].mxu0
      %v3010 = vadd.f32 %v2561, %v3009
      %v3011 = vpop.f32.mrb[0].mxu0
      %v3012 = vpop.f32.mrb[0].mxu0
      %v3013 = vadd.f32 %v2564, %v3012
      %v3014 = vpop.f32.mrb[0].mxu0
      %3015 = vmatprep.mubr.bf16.mxu0 0
      %3016 = vmatmul.mubr.bf16.gmra.mrb[0].mxu0 %v2180
      %v3017 = vpop.f32.mrb[0].mxu0
      %v3018 = vadd.f32 %v2569, %v3017
      %v3019 = vpop.f32.mrb[0].mxu0
      %v3020 = vpop.f32.mrb[0].mxu0
      %v3021 = vadd.f32 %v2572, %v3020
      %v3022 = vpop.f32.mrb[0].mxu0
      %3023 = vmatprep.mubr.bf16.mxu0 0
      %3024 = vmatmul.mubr.bf16.gmra.mrb[0].mxu0 %v2183
      %v3025 = vpop.f32.mrb[0].mxu0
      %v3026 = vadd.f32 %v2577, %v3025
      %v3027 = vpop.f32.mrb[0].mxu0
      %v3028 = vpop.f32.mrb[0].mxu0
      %v3029 = vadd.f32 %v2580, %v3028
      %v3030 = vpop.f32.mrb[0].mxu0
      %3031 = vmatprep.mubr.bf16.mxu0 0
      %3032 = vmatmul.mubr.bf16.gmra.mrb[0].mxu0 %v2186
      %v3033 = vpop.f32.mrb[0].mxu0
      %v3034 = vadd.f32 %v2585, %v3033
      %v3035 = vpop.f32.mrb[0].mxu0
      %v3036 = vpop.f32.mrb[0].mxu0
      %v3037 = vadd.f32 %v2588, %v3036
      %v3038 = vpop.f32.mrb[0].mxu0
      %3039 = vmatprep.mubr.bf16.mxu0 0
      %3040 = vmatmul.mubr.bf16.gmra.mrb[0].mxu0 %v2189
      %v3041 = vpop.f32.mrb[0].mxu0
      %v3042 = vadd.f32 %v2593, %v3041
      %v3043 = vpop.f32.mrb[0].mxu0
      %v3044 = vpop.f32.mrb[0].mxu0
      %v3045 = vadd.f32 %v2596, %v3044
      %v3046 = vpop.f32.mrb[0].mxu0
      %3047 = vmatprep.mubr.bf16.mxu0 0
      %3048 = vmatmul.mubr.bf16.gmra.mrb[0].mxu0 %v2192
      %v3049 = vpop.f32.mrb[0].mxu0
      %v3050 = vadd.f32 %v2601, %v3049
      %v3051 = vpop.f32.mrb[0].mxu0
      %v3052 = vpop.f32.mrb[0].mxu0
      %v3053 = vadd.f32 %v2604, %v3052
      %v3054 = vpop.f32.mrb[0].mxu0
      %3055 = vmatprep.mubr.bf16.mxu0 0
      %3056 = vmatmul.mubr.bf16.gmra.mrb[0].mxu0 %v2195
      %v3057 = vpop.f32.mrb[0].mxu0
      %v3058 = vadd.f32 %v2609, %v3057
      %v3059 = vpop.f32.mrb[0].mxu0
      %v3060 = vpop.f32.mrb[0].mxu0
      %v3061 = vadd.f32 %v2612, %v3060
      %v3062 = vpop.f32.mrb[0].mxu0
      %3063 = vmatprep.mubr.bf16.mxu0 0
      %3064 = vmatmul.mubr.bf16.gmra.mrb[0].mxu0 %v2198
      %v3065 = vpop.f32.mrb[0].mxu0
      %v3066 = vadd.f32 %v2617, %v3065
      %v3067 = vpop.f32.mrb[0].mxu0
      %v3068 = vpop.f32.mrb[0].mxu0
      %v3069 = vadd.f32 %v2620, %v3068
      %v3070 = vpop.f32.mrb[0].mxu0
      %3071 = vmatprep.mubr.bf16.mxu0 0
      %3072 = vmatmul.mubr.bf16.gmra.mrb[0].mxu0 %v2201
      %v3073 = vpop.f32.mrb[0].mxu0
      %v3074 = vadd.f32 %v2625, %v3073
      %v3075 = vpop.f32.mrb[0].mxu0
      %v3076 = vpop.f32.mrb[0].mxu0
      %v3077 = vadd.f32 %v2628, %v3076
      %v3078 = vpop.f32.mrb[0].mxu0
      %3079 = vmatprep.mubr.bf16.mxu0 0
      %3080 = vmatmul.mubr.bf16.gmra.mrb[0].mxu0 %v2204
      %v3081 = vpop.f32.mrb[0].mxu0
      %v3082 = vadd.f32 %v2633, %v3081
      %v3083 = vpop.f32.mrb[0].mxu0
      %v3084 = vpop.f32.mrb[0].mxu0
      %v3085 = vadd.f32 %v2636, %v3084
      %v3086 = vpop.f32.mrb[0].mxu0
      %3087 = vmatprep.mubr.bf16.mxu0 0
      %3088 = vmatmul.mubr.bf16.gmra.mrb[0].mxu0 %v2207
      %v3089 = vpop.f32.mrb[0].mxu0
      %v3090 = vadd.f32 %v2641, %v3089
      %v3091 = vpop.f32.mrb[0].mxu0
      %v3092 = vpop.f32.mrb[0].mxu0
      %v3093 = vadd.f32 %v2644, %v3092
      %v3094 = vpop.f32.mrb[0].mxu0
      %3095 = vmatprep.mubr.bf16.mxu0 0
      %3096 = vmatmul.mubr.bf16.gmra.mrb[0].mxu0 %v2210
      %v3097 = vpop.f32.mrb[0].mxu0
      %v3098 = vadd.f32 %v2649, %v3097
      %v3099 = vpop.f32.mrb[0].mxu0
      %v3100 = vpop.f32.mrb[0].mxu0
      %v3101 = vadd.f32 %v2652, %v3100
      %v3102 = vpop.f32.mrb[0].mxu0
      %3103 = vmatprep.mubr.bf16.mxu0 0
      %3104 = vmatmul.mubr.bf16.gmra.mrb[0].mxu0 %v2213
      %v3105 = vpop.f32.mrb[0].mxu0
      %v3106 = vadd.f32 %v2657, %v3105
      %v3107 = vpop.f32.mrb[0].mxu0
      %v3108 = vpop.f32.mrb[0].mxu0
      %v3109 = vadd.f32 %v2660, %v3108
      %v3110 = vpop.f32.mrb[0].mxu0
      %3111 = vmatprep.mubr.bf16.mxu0 0
      %3112 = vmatmul.mubr.bf16.gmra.mrb[0].mxu0 %v2216
      %v3113 = vpop.f32.mrb[0].mxu0
      %v3114 = vadd.f32 %v2665, %v3113
      %v3115 = vpop.f32.mrb[0].mxu0
      %v3116 = vpop.f32.mrb[0].mxu0
      %v3117 = vadd.f32 %v2668, %v3116
      %v3118 = vpop.f32.mrb[0].mxu0
      %3119 = vmatprep.mubr.bf16.mxu0 0
      %3120 = vmatmul.mubr.bf16.gmra.mrb[0].mxu0 %v2219
      %v3121 = vpop.f32.mrb[0].mxu0
      %v3122 = vadd.f32 %v2673, %v3121
      %v3123 = vpop.f32.mrb[0].mxu0
      %v3124 = vpop.f32.mrb[0].mxu0
      %v3125 = vadd.f32 %v2676, %v3124
      %v3126 = vpop.f32.mrb[0].mxu0
      %3127 = vmatprep.mubr.bf16.mxu0 0
      %3128 = vmatmul.mubr.bf16.gmra.mrb[0].mxu0 %v2222
      %v3129 = vpop.f32.mrb[0].mxu0
      %v3130 = vadd.f32 %v2681, %v3129
      %v3131 = vpop.f32.mrb[0].mxu0
      %v3132 = vpop.f32.mrb[0].mxu0
      %v3133 = vadd.f32 %v2684, %v3132
      %v3134 = vpop.f32.mrb[0].mxu0
      %3135 = vmatprep.mubr.bf16.mxu0 0
      %3136 = vmatmul.mubr.bf16.gmra.mrb[0].mxu0 %v2225
      %v3137 = vpop.f32.mrb[0].mxu0
      %v3138 = vadd.f32 %v2689, %v3137
      %v3139 = vpop.f32.mrb[0].mxu0
      %v3140 = vpop.f32.mrb[0].mxu0
      %v3141 = vadd.f32 %v2692, %v3140
      %v3142 = vpop.f32.mrb[0].mxu0
      %3143 = vmatprep.mubr.bf16.mxu0 0
      %3144 = vmatmul.mubr.bf16.gmra.mrb[0].mxu0 %v2228
      %v3145 = vpop.f32.mrb[0].mxu0
      %v3146 = vadd.f32 %v2697, %v3145
      %v3147 = vpop.f32.mrb[0].mxu0
      %v3148 = vpop.f32.mrb[0].mxu0
      %v3149 = vadd.f32 %v2700, %v3148
      %v3150 = vpop.f32.mrb[0].mxu0
      %3151 = vdwg.mxu0
      %v3152 = vmax.f32 %v2738, 0.0
      %v3153 = vmax.f32 %v2741, 0.0
      %v3154 = vmax.f32 %v2746, 0.0
      %v3155 = vmax.f32 %v2749, 0.0
      %v3156 = vmax.f32 %v2754, 0.0
      %v3157 = vmax.f32 %v2757, 0.0
      %v3158 = vmax.f32 %v2762, 0.0
      %v3159 = vmax.f32 %v2765, 0.0
      %v3160 = vmax.f32 %v2770, 0.0
      %v3161 = vmax.f32 %v2773, 0.0
      %v3162 = vmax.f32 %v2778, 0.0
      %v3163 = vmax.f32 %v2781, 0.0
      %v3164 = vmax.f32 %v2786, 0.0
      %v3165 = vmax.f32 %v2789, 0.0
      %v3166 = vmax.f32 %v2794, 0.0
      %v3167 = vmax.f32 %v2797, 0.0
      %v3168 = vmax.f32 %v2802, 0.0
      %v3169 = vmax.f32 %v2805, 0.0
      %v3170 = vmax.f32 %v2810, 0.0
      %v3171 = vmax.f32 %v2813, 0.0
      %v3172 = vmax.f32 %v2818, 0.0
      %v3173 = vmax.f32 %v2821, 0.0
      %v3174 = vmax.f32 %v2826, 0.0
      %v3175 = vmax.f32 %v2829, 0.0
      %v3176 = vmax.f32 %v2834, 0.0
      %v3177 = vmax.f32 %v2837, 0.0
      %v3178 = vmax.f32 %v2842, 0.0
      %v3179 = vmax.f32 %v2845, 0.0
      %v3180 = vmax.f32 %v2850, 0.0
      %v3181 = vmax.f32 %v2853, 0.0
      %v3182 = vmax.f32 %v2858, 0.0
      %v3183 = vmax.f32 %v2861, 0.0
      %v3184 = vmax.f32 %v2866, 0.0
      %v3185 = vmax.f32 %v2869, 0.0
      %v3186 = vmax.f32 %v2874, 0.0
      %v3187 = vmax.f32 %v2877, 0.0
      %v3188 = vmax.f32 %v2882, 0.0
      %v3189 = vmax.f32 %v2885, 0.0
      %v3190 = vmax.f32 %v2890, 0.0
      %v3191 = vmax.f32 %v2893, 0.0
      %v3192 = vmax.f32 %v2898, 0.0
      %v3193 = vmax.f32 %v2901, 0.0
      %v3194 = vmax.f32 %v2906, 0.0
      %v3195 = vmax.f32 %v2909, 0.0
      %v3196 = vmax.f32 %v2914, 0.0
      %v3197 = vmax.f32 %v2917, 0.0
      %v3198 = vmax.f32 %v2922, 0.0
      %v3199 = vmax.f32 %v2925, 0.0
      %v3200 = vmax.f32 %v2930, 0.0
      %v3201 = vmax.f32 %v2933, 0.0
      %v3202 = vmax.f32 %v2938, 0.0
      %v3203 = vmax.f32 %v2941, 0.0
      %v3204 = vmax.f32 %v2946, 0.0
      %v3205 = vmax.f32 %v2949, 0.0
      %v3206 = vmax.f32 %v2954, 0.0
      %v3207 = vmax.f32 %v2957, 0.0
      %v3208 = vmax.f32 %v2962, 0.0
      %v3209 = vmax.f32 %v2965, 0.0
      %v3210 = vmax.f32 %v2970, 0.0
      %v3211 = vmax.f32 %v2973, 0.0
      %v3212 = vmax.f32 %v2978, 0.0
      %v3213 = vmax.f32 %v2981, 0.0
      %v3214 = vmax.f32 %v2986, 0.0
      %v3215 = vmax.f32 %v2989, 0.0
      %v3216 = vmax.f32 %v2994, 0.0
      %v3217 = vmax.f32 %v2997, 0.0
      %v3218 = vmax.f32 %v3002, 0.0
      %v3219 = vmax.f32 %v3005, 0.0
      %v3220 = vmax.f32 %v3010, 0.0
      %v3221 = vmax.f32 %v3013, 0.0
      %v3222 = vmax.f32 %v3018, 0.0
      %v3223 = vmax.f32 %v3021, 0.0
      %v3224 = vmax.f32 %v3026, 0.0
      %v3225 = vmax.f32 %v3029, 0.0
      %v3226 = vmax.f32 %v3034, 0.0
      %v3227 = vmax.f32 %v3037, 0.0
      %v3228 = vmax.f32 %v3042, 0.0
      %v3229 = vmax.f32 %v3045, 0.0
      %v3230 = vmax.f32 %v3050, 0.0
      %v3231 = vmax.f32 %v3053, 0.0
      %v3232 = vmax.f32 %v3058, 0.0
      %v3233 = vmax.f32 %v3061, 0.0
      %v3234 = vmax.f32 %v3066, 0.0
      %v3235 = vmax.f32 %v3069, 0.0
      %v3236 = vmax.f32 %v3074, 0.0
      %v3237 = vmax.f32 %v3077, 0.0
      %v3238 = vmax.f32 %v3082, 0.0
      %v3239 = vmax.f32 %v3085, 0.0
      %v3240 = vmax.f32 %v3090, 0.0
      %v3241 = vmax.f32 %v3093, 0.0
      %v3242 = vmax.f32 %v3098, 0.0
      %v3243 = vmax.f32 %v3101, 0.0
      %v3244 = vmax.f32 %v3106, 0.0
      %v3245 = vmax.f32 %v3109, 0.0
      %v3246 = vmax.f32 %v3114, 0.0
      %v3247 = vmax.f32 %v3117, 0.0
      %v3248 = vmax.f32 %v3122, 0.0
      %v3249 = vmax.f32 %v3125, 0.0
      %v3250 = vmax.f32 %v3130, 0.0
      %v3251 = vmax.f32 %v3133, 0.0
      %v3252 = vmax.f32 %v3138, 0.0
      %v3253 = vmax.f32 %v3141, 0.0
      %v3254 = vmax.f32 %v3146, 0.0
      %v3255 = vmax.f32 %v3149, 0.0
      %v3256 = vmax.f32 %v3152, %v3204
      %v3257 = vmax.f32 %v3153, %v3205
      %v3258 = vmax.f32 %v3154, %v3206
      %v3259 = vmax.f32 %v3155, %v3207
      %v3260 = vmax.f32 %v3156, %v3208
      %v3261 = vmax.f32 %v3157, %v3209
      %v3262 = vmax.f32 %v3158, %v3210
      %v3263 = vmax.f32 %v3159, %v3211
      %v3264 = vmax.f32 %v3160, %v3212
      %v3265 = vmax.f32 %v3161, %v3213
      %v3266 = vmax.f32 %v3162, %v3214
      %v3267 = vmax.f32 %v3163, %v3215
      %v3268 = vmax.f32 %v3164, %v3216
      %v3269 = vmax.f32 %v3165, %v3217
      %v3270 = vmax.f32 %v3166, %v3218
      %v3271 = vmax.f32 %v3167, %v3219
      %v3272 = vmax.f32 %v3168, %v3220
      %v3273 = vmax.f32 %v3169, %v3221
      %v3274 = vmax.f32 %v3170, %v3222
      %v3275 = vmax.f32 %v3171, %v3223
      %v3276 = vmax.f32 %v3172, %v3224
      %v3277 = vmax.f32 %v3173, %v3225
      %v3278 = vmax.f32 %v3174, %v3226
      %v3279 = vmax.f32 %v3175, %v3227
      %v3280 = vmax.f32 %v3176, %v3228
      %v3281 = vmax.f32 %v3177, %v3229
      %v3282 = vmax.f32 %v3178, %v3230
      %v3283 = vmax.f32 %v3179, %v3231
      %v3284 = vmax.f32 %v3180, %v3232
      %v3285 = vmax.f32 %v3181, %v3233
      %v3286 = vmax.f32 %v3182, %v3234
      %v3287 = vmax.f32 %v3183, %v3235
      %v3288 = vmax.f32 %v3184, %v3236
      %v3289 = vmax.f32 %v3185, %v3237
      %v3290 = vmax.f32 %v3186, %v3238
      %v3291 = vmax.f32 %v3187, %v3239
      %v3292 = vmax.f32 %v3188, %v3240
      %v3293 = vmax.f32 %v3189, %v3241
      %v3294 = vmax.f32 %v3190, %v3242
      %v3295 = vmax.f32 %v3191, %v3243
      %v3296 = vmax.f32 %v3192, %v3244
      %v3297 = vmax.f32 %v3193, %v3245
      %v3298 = vmax.f32 %v3194, %v3246
      %v3299 = vmax.f32 %v3195, %v3247
      %v3300 = vmax.f32 %v3196, %v3248
      %v3301 = vmax.f32 %v3197, %v3249
      %v3302 = vmax.f32 %v3198, %v3250
      %v3303 = vmax.f32 %v3199, %v3251
      %v3304 = vmax.f32 %v3200, %v3252
      %v3305 = vmax.f32 %v3201, %v3253
      %v3306 = vmax.f32 %v3202, %v3254
      %v3307 = vmax.f32 %v3203, %v3255
      %v3308 = vpack.c.bf16 %v3257, %v3256
      %v3309 = vpack.c.bf16 %v3259, %v3258
      %v3310 = vpack.c.bf16 %v3261, %v3260
      %v3311 = vpack.c.bf16 %v3263, %v3262
      %v3312 = vpack.c.bf16 %v3265, %v3264
      %v3313 = vpack.c.bf16 %v3267, %v3266
      %v3314 = vpack.c.bf16 %v3269, %v3268
      %v3315 = vpack.c.bf16 %v3271, %v3270
      %v3316 = vpack.c.bf16 %v3273, %v3272
      %v3317 = vpack.c.bf16 %v3275, %v3274
      %v3318 = vpack.c.bf16 %v3277, %v3276
      %v3319 = vpack.c.bf16 %v3279, %v3278
      %v3320 = vpack.c.bf16 %v3281, %v3280
      %v3321 = vpack.c.bf16 %v3283, %v3282
      %v3322 = vpack.c.bf16 %v3285, %v3284
      %v3323 = vpack.c.bf16 %v3287, %v3286
      %v3324 = vpack.c.bf16 %v3289, %v3288
      %v3325 = vpack.c.bf16 %v3291, %v3290
      %v3326 = vpack.c.bf16 %v3293, %v3292
      %v3327 = vpack.c.bf16 %v3295, %v3294
      %v3328 = vpack.c.bf16 %v3297, %v3296
      %v3329 = vpack.c.bf16 %v3299, %v3298
      %v3330 = vpack.c.bf16 %v3301, %v3300
      %v3331 = vpack.c.bf16 %v3303, %v3302
      %v3332 = vpack.c.bf16 %v3305, %v3304
      %v3333 = vpack.c.bf16 %v3307, %v3306
      %v3334 = vld [vmem:[%s2] sm:$0xff]
      %v3335 = vld [vmem:[%s2 + $0x8] sm:$0xff]
      %v3336 = vld [vmem:[%s2 + $0x10] sm:$0xff]
      %v3337 = vld [vmem:[%s2 + $0x18] sm:$0xff]
      %v3338 = vld [vmem:[%s2 + $0x20] sm:$0xff]
      %v3339 = vld [vmem:[%s2 + $0x28] sm:$0xff]
      %v3340 = vld [vmem:[%s2 + $0x30] sm:$0xff]
      %v3341 = vld [vmem:[%s2 + $0x38] sm:$0xff]
      %v3342 = vld [vmem:[%s2 + $0x40] sm:$0xff]
      %v3343 = vld [vmem:[%s2 + $0x48] sm:$0xff]
      %v3344 = vld [vmem:[%s2 + $0x50] sm:$0xff]
      %v3345 = vld [vmem:[%s2 + $0x58] sm:$0xff]
      %v3346 = vld [vmem:[%s2 + $0x60] sm:$0xff]
      %v3347 = vld [vmem:[%s2 + $0x68] sm:$0xff]
      %v3348 = vld [vmem:[%s2 + $0x70] sm:$0xff]
      %v3349 = vld [vmem:[%s2 + $0x78] sm:$0xff]
      %v3350 = vld [vmem:[%s2 + $0x80] sm:$0xff]
      %v3351 = vld [vmem:[%s2 + $0x88] sm:$0xff]
      %v3352 = vld [vmem:[%s2 + $0x90] sm:$0xff]
      %v3353 = vld [vmem:[%s2 + $0x98] sm:$0xff]
      %v3354 = vld [vmem:[%s2 + $0xa0] sm:$0xff]
      %v3355 = vld [vmem:[%s2 + $0xa8] sm:$0xff]
      %v3356 = vld [vmem:[%s2 + $0xb0] sm:$0xff]
      %v3357 = vld [vmem:[%s2 + $0xb8] sm:$0xff]
      %v3382 = vunpack.c.l.b16 %v3334
      %v3383 = vunpack.c.h.b16 %v3334
      %v3384 = vunpack.c.l.b16 %v3335
      %v3385 = vunpack.c.h.b16 %v3335
      %v3386 = vunpack.c.l.b16 %v3336
      %v3387 = vunpack.c.h.b16 %v3336
      %v3388 = vunpack.c.l.b16 %v3337
      %v3389 = vunpack.c.h.b16 %v3337
      %v3390 = vunpack.c.l.b16 %v3338
      %v3391 = vunpack.c.h.b16 %v3338
      %v3392 = vunpack.c.l.b16 %v3339
      %v3393 = vunpack.c.h.b16 %v3339
      %v3394 = vunpack.c.l.b16 %v3340
      %v3395 = vunpack.c.h.b16 %v3340
      %v3396 = vunpack.c.l.b16 %v3341
      %v3397 = vunpack.c.h.b16 %v3341
      %v3398 = vunpack.c.l.b16 %v3342
      %v3399 = vunpack.c.h.b16 %v3342
      %v3400 = vunpack.c.l.b16 %v3343
      %v3401 = vunpack.c.h.b16 %v3343
      %v3402 = vunpack.c.l.b16 %v3344
      %v3403 = vunpack.c.h.b16 %v3344
      %v3404 = vunpack.c.l.b16 %v3345
      %v3405 = vunpack.c.h.b16 %v3345
      %v3406 = vunpack.c.l.b16 %v3346
      %v3407 = vunpack.c.h.b16 %v3346
      %v3408 = vunpack.c.l.b16 %v3347
      %v3409 = vunpack.c.h.b16 %v3347
      %v3410 = vunpack.c.l.b16 %v3348
      %v3411 = vunpack.c.h.b16 %v3348
      %v3412 = vunpack.c.l.b16 %v3349
      %v3413 = vunpack.c.h.b16 %v3349
      %v3414 = vunpack.c.l.b16 %v3350
      %v3415 = vunpack.c.h.b16 %v3350
      %v3416 = vunpack.c.l.b16 %v3351
      %v3417 = vunpack.c.h.b16 %v3351
      %v3418 = vunpack.c.l.b16 %v3352
      %v3419 = vunpack.c.h.b16 %v3352
      %v3420 = vunpack.c.l.b16 %v3353
      %v3421 = vunpack.c.h.b16 %v3353
      %v3422 = vunpack.c.l.b16 %v3354
      %v3423 = vunpack.c.h.b16 %v3354
      %v3424 = vunpack.c.l.b16 %v3355
      %v3425 = vunpack.c.h.b16 %v3355
      %v3426 = vunpack.c.l.b16 %v3356
      %v3427 = vunpack.c.h.b16 %v3356
      %v3428 = vunpack.c.l.b16 %v3357
      %v3429 = vunpack.c.h.b16 %v3357
      %v3430 = vpack.c.b16 %v3384, %v3382
      %v3431 = vpack.c.b16 %v3385, %v3383
      %v3432 = vpack.c.b16 %v3388, %v3386
      %v3433 = vpack.c.b16 %v3389, %v3387
      %v3434 = vpack.c.b16 %v3392, %v3390
      %v3435 = vpack.c.b16 %v3393, %v3391
      %v3436 = vpack.c.b16 %v3396, %v3394
      %v3437 = vpack.c.b16 %v3397, %v3395
      %v3438 = vpack.c.b16 %v3400, %v3398
      %v3439 = vpack.c.b16 %v3401, %v3399
      %v3440 = vpack.c.b16 %v3404, %v3402
      %v3441 = vpack.c.b16 %v3405, %v3403
      %v3442 = vpack.c.b16 %v3408, %v3406
      %v3443 = vpack.c.b16 %v3409, %v3407
      %v3444 = vpack.c.b16 %v3412, %v3410
      %v3445 = vpack.c.b16 %v3413, %v3411
      %v3446 = vpack.c.b16 %v3416, %v3414
      %v3447 = vpack.c.b16 %v3417, %v3415
      %v3448 = vpack.c.b16 %v3420, %v3418
      %v3449 = vpack.c.b16 %v3421, %v3419
      %v3450 = vpack.c.b16 %v3424, %v3422
      %v3451 = vpack.c.b16 %v3425, %v3423
      %v3452 = vpack.c.b16 %v3428, %v3426
      %v3453 = vpack.c.b16 %v3429, %v3427
      %vm3466 = vcmask 654336
      %v3468 = vsel %vm3466, %v3431, 0
      %v3471 = vsel %vm3466, %v3433, 0
      %v3474 = vsel %vm3466, %v3435, 0
      %v3477 = vsel %vm3466, %v3437, 0
      %v3480 = vsel %vm3466, %v3439, 0
      %v3483 = vsel %vm3466, %v3441, 0
      %v3486 = vsel %vm3466, %v3443, 0
      %v3489 = vsel %vm3466, %v3445, 0
      %v3492 = vsel %vm3466, %v3447, 0
      %v3495 = vsel %vm3466, %v3449, 0
      %v3498 = vsel %vm3466, %v3451, 0
      %v3501 = vsel %vm3466, %v3453, 0
      %3503 = vmatprep.subr.bf16.mxu0 0
      %3504 = vmatpush1.bf16.msra.mxu0 %v3308
      %3505 = vmatprep.subr.bf16.mxu0 0
      %3506 = vmatpush1.bf16.msra.mxu0 %v3309
      %3507 = vmatprep.subr.bf16.mxu0 0
      %3508 = vmatpush1.bf16.msra.mxu0 %v3310
      %3509 = vmatprep.subr.bf16.mxu0 0
      %3510 = vmatpush1.bf16.msra.mxu0 %v3311
      %3511 = vmatprep.subr.bf16.mxu0 0
      %3512 = vmatpush1.bf16.msra.mxu0 %v3312
      %3513 = vmatprep.subr.bf16.mxu0 0
      %3514 = vmatpush1.bf16.msra.mxu0 %v3313
      %3515 = vmatprep.subr.bf16.mxu0 0
      %3516 = vmatpush1.bf16.msra.mxu0 %v3314
      %3517 = vmatprep.subr.bf16.mxu0 0
      %3518 = vmatpush1.bf16.msra.mxu0 %v3315
      %3519 = vmatprep.subr.bf16.mxu0 0
      %3520 = vmatpush1.bf16.msra.mxu0 %v3316
      %3521 = vmatprep.subr.bf16.mxu0 0
      %3522 = vmatpush1.bf16.msra.mxu0 %v3317
      %3523 = vmatprep.subr.bf16.mxu0 0
      %3524 = vmatpush1.bf16.msra.mxu0 %v3318
      %3525 = vmatprep.subr.bf16.mxu0 0
      %3526 = vmatpush1.bf16.msra.mxu0 %v3319
      %3527 = vmatprep.subr.bf16.mxu0 0
      %3528 = vmatpush1.bf16.msra.mxu0 %v3320
      %3529 = vmatprep.subr.bf16.mxu0 0
      %3530 = vmatpush1.bf16.msra.mxu0 0
      %3531 = vmatprep.subr.bf16.mxu0 0
      %3532 = vmatpush1.bf16.msra.mxu0 0
      %3533 = vmatprep.subr.bf16.mxu0 0
      %3534 = vmatpush1.bf16.msra.mxu0 0
      %3535 = vmatprep.mubr.bf16.mxu0 %v3468
      %3536 = vmatmul.mubr.bf16.gmra.mrb[0].mxu0 %v3430
      %v3537 = vpop.f32.mrb[0].mxu0
      %v3538 = vadd.f32 0.0, %v3537
      %v3539 = vpop.f32.mrb[0].mxu0
      %v3540 = vpop.f32.mrb[0].mxu0
      %v3541 = vadd.f32 0.0, %v3540
      %v3542 = vpop.f32.mrb[0].mxu0
      %3543 = vmatprep.mubr.bf16.mxu0 %v3471
      %3544 = vmatmul.mubr.bf16.gmra.mrb[0].mxu0 %v3432
      %v3545 = vpop.f32.mrb[0].mxu0
      %v3546 = vadd.f32 0.0, %v3545
      %v3547 = vpop.f32.mrb[0].mxu0
      %v3548 = vpop.f32.mrb[0].mxu0
      %v3549 = vadd.f32 0.0, %v3548
      %v3550 = vpop.f32.mrb[0].mxu0
      %3551 = vmatprep.mubr.bf16.mxu0 %v3474
      %3552 = vmatmul.mubr.bf16.gmra.mrb[0].mxu0 %v3434
      %v3553 = vpop.f32.mrb[0].mxu0
      %v3554 = vadd.f32 0.0, %v3553
      %v3555 = vpop.f32.mrb[0].mxu0
      %v3556 = vpop.f32.mrb[0].mxu0
      %v3557 = vadd.f32 0.0, %v3556
      %v3558 = vpop.f32.mrb[0].mxu0
      %3559 = vmatprep.mubr.bf16.mxu0 %v3477
      %3560 = vmatmul.mubr.bf16.gmra.mrb[0].mxu0 %v3436
      %v3561 = vpop.f32.mrb[0].mxu0
      %v3562 = vadd.f32 0.0, %v3561
      %v3563 = vpop.f32.mrb[0].mxu0
      %v3564 = vpop.f32.mrb[0].mxu0
      %v3565 = vadd.f32 0.0, %v3564
      %v3566 = vpop.f32.mrb[0].mxu0
      %3567 = vmatprep.mubr.bf16.mxu0 %v3480
      %3568 = vmatmul.mubr.bf16.gmra.mrb[0].mxu0 %v3438
      %v3569 = vpop.f32.mrb[0].mxu0
      %v3570 = vadd.f32 0.0, %v3569
      %v3571 = vpop.f32.mrb[0].mxu0
      %v3572 = vpop.f32.mrb[0].mxu0
      %v3573 = vadd.f32 0.0, %v3572
      %v3574 = vpop.f32.mrb[0].mxu0
      %3575 = vmatprep.mubr.bf16.mxu0 %v3483
      %3576 = vmatmul.mubr.bf16.gmra.mrb[0].mxu0 %v3440
      %v3577 = vpop.f32.mrb[0].mxu0
      %v3578 = vadd.f32 0.0, %v3577
      %v3579 = vpop.f32.mrb[0].mxu0
      %v3580 = vpop.f32.mrb[0].mxu0
      %v3581 = vadd.f32 0.0, %v3580
      %v3582 = vpop.f32.mrb[0].mxu0
      %3583 = vmatprep.mubr.bf16.mxu0 %v3486
      %3584 = vmatmul.mubr.bf16.gmra.mrb[0].mxu0 %v3442
      %v3585 = vpop.f32.mrb[0].mxu0
      %v3586 = vadd.f32 0.0, %v3585
      %v3587 = vpop.f32.mrb[0].mxu0
      %v3588 = vpop.f32.mrb[0].mxu0
      %v3589 = vadd.f32 0.0, %v3588
      %v3590 = vpop.f32.mrb[0].mxu0
      %3591 = vmatprep.mubr.bf16.mxu0 %v3489
      %3592 = vmatmul.mubr.bf16.gmra.mrb[0].mxu0 %v3444
      %v3593 = vpop.f32.mrb[0].mxu0
      %v3594 = vadd.f32 0.0, %v3593
      %v3595 = vpop.f32.mrb[0].mxu0
      %v3596 = vpop.f32.mrb[0].mxu0
      %v3597 = vadd.f32 0.0, %v3596
      %v3598 = vpop.f32.mrb[0].mxu0
      %3599 = vmatprep.mubr.bf16.mxu0 %v3492
      %3600 = vmatmul.mubr.bf16.gmra.mrb[0].mxu0 %v3446
      %v3601 = vpop.f32.mrb[0].mxu0
      %v3602 = vadd.f32 0.0, %v3601
      %v3603 = vpop.f32.mrb[0].mxu0
      %v3604 = vpop.f32.mrb[0].mxu0
      %v3605 = vadd.f32 0.0, %v3604
      %v3606 = vpop.f32.mrb[0].mxu0
      %3607 = vmatprep.mubr.bf16.mxu0 %v3495
      %3608 = vmatmul.mubr.bf16.gmra.mrb[0].mxu0 %v3448
      %v3609 = vpop.f32.mrb[0].mxu0
      %v3610 = vadd.f32 0.0, %v3609
      %v3611 = vpop.f32.mrb[0].mxu0
      %v3612 = vpop.f32.mrb[0].mxu0
      %v3613 = vadd.f32 0.0, %v3612
      %v3614 = vpop.f32.mrb[0].mxu0
      %3615 = vmatprep.mubr.bf16.mxu0 %v3498
      %3616 = vmatmul.mubr.bf16.gmra.mrb[0].mxu0 %v3450
      %v3617 = vpop.f32.mrb[0].mxu0
      %v3618 = vadd.f32 0.0, %v3617
      %v3619 = vpop.f32.mrb[0].mxu0
      %v3620 = vpop.f32.mrb[0].mxu0
      %v3621 = vadd.f32 0.0, %v3620
      %v3622 = vpop.f32.mrb[0].mxu0
      %3623 = vmatprep.mubr.bf16.mxu0 %v3501
      %3624 = vmatmul.mubr.bf16.gmra.mrb[0].mxu0 %v3452
      %v3625 = vpop.f32.mrb[0].mxu0
      %v3626 = vadd.f32 0.0, %v3625
      %v3627 = vpop.f32.mrb[0].mxu0
      %v3628 = vpop.f32.mrb[0].mxu0
      %v3629 = vadd.f32 0.0, %v3628
      %v3630 = vpop.f32.mrb[0].mxu0
      %3631 = vdwg.mxu0
      %v3632 = vld [vmem:[%s3] sm:$0xff]
      %v3633 = vld [vmem:[%s3 + $0x8] sm:$0xff]
      %v3634 = vld [vmem:[%s3 + $0x10] sm:$0xff]
      %v3635 = vld [vmem:[%s3 + $0x18] sm:$0xff]
      %v3636 = vld [vmem:[%s3 + $0x20] sm:$0xff]
      %v3637 = vld [vmem:[%s3 + $0x28] sm:$0xff]
      %v3638 = vld [vmem:[%s3 + $0x30] sm:$0xff]
      %v3639 = vld [vmem:[%s3 + $0x38] sm:$0xff]
      %v3640 = vld [vmem:[%s3 + $0x40] sm:$0xff]
      %v3641 = vld [vmem:[%s3 + $0x48] sm:$0xff]
      %v3642 = vld [vmem:[%s3 + $0x50] sm:$0xff]
      %v3643 = vld [vmem:[%s3 + $0x58] sm:$0xff]
      %v3644 = vld [vmem:[%s3 + $0x60] sm:$0xff]
      %v3645 = vld [vmem:[%s3 + $0x68] sm:$0xff]
      %v3646 = vld [vmem:[%s3 + $0x70] sm:$0xff]
      %v3647 = vld [vmem:[%s3 + $0x78] sm:$0xff]
      %v3648 = vld [vmem:[%s3 + $0x80] sm:$0xff]
      %v3649 = vld [vmem:[%s3 + $0x88] sm:$0xff]
      %v3650 = vld [vmem:[%s3 + $0x90] sm:$0xff]
      %v3651 = vld [vmem:[%s3 + $0x98] sm:$0xff]
      %v3652 = vld [vmem:[%s3 + $0xa0] sm:$0xff]
      %v3653 = vld [vmem:[%s3 + $0xa8] sm:$0xff]
      %v3654 = vld [vmem:[%s3 + $0xb0] sm:$0xff]
      %v3655 = vld [vmem:[%s3 + $0xb8] sm:$0xff]
      %v3680 = vunpack.c.l.b16 %v3632
      %v3681 = vunpack.c.h.b16 %v3632
      %v3682 = vunpack.c.l.b16 %v3633
      %v3683 = vunpack.c.h.b16 %v3633
      %v3684 = vunpack.c.l.b16 %v3634
      %v3685 = vunpack.c.h.b16 %v3634
      %v3686 = vunpack.c.l.b16 %v3635
      %v3687 = vunpack.c.h.b16 %v3635
      %v3688 = vunpack.c.l.b16 %v3636
      %v3689 = vunpack.c.h.b16 %v3636
      %v3690 = vunpack.c.l.b16 %v3637
      %v3691 = vunpack.c.h.b16 %v3637
      %v3692 = vunpack.c.l.b16 %v3638
      %v3693 = vunpack.c.h.b16 %v3638
      %v3694 = vunpack.c.l.b16 %v3639
      %v3695 = vunpack.c.h.b16 %v3639
      %v3696 = vunpack.c.l.b16 %v3640
      %v3697 = vunpack.c.h.b16 %v3640
      %v3698 = vunpack.c.l.b16 %v3641
      %v3699 = vunpack.c.h.b16 %v3641
      %v3700 = vunpack.c.l.b16 %v3642
      %v3701 = vunpack.c.h.b16 %v3642
      %v3702 = vunpack.c.l.b16 %v3643
      %v3703 = vunpack.c.h.b16 %v3643
      %v3704 = vunpack.c.l.b16 %v3644
      %v3705 = vunpack.c.h.b16 %v3644
      %v3706 = vunpack.c.l.b16 %v3645
      %v3707 = vunpack.c.h.b16 %v3645
      %v3708 = vunpack.c.l.b16 %v3646
      %v3709 = vunpack.c.h.b16 %v3646
      %v3710 = vunpack.c.l.b16 %v3647
      %v3711 = vunpack.c.h.b16 %v3647
      %v3712 = vunpack.c.l.b16 %v3648
      %v3713 = vunpack.c.h.b16 %v3648
      %v3714 = vunpack.c.l.b16 %v3649
      %v3715 = vunpack.c.h.b16 %v3649
      %v3716 = vunpack.c.l.b16 %v3650
      %v3717 = vunpack.c.h.b16 %v3650
      %v3718 = vunpack.c.l.b16 %v3651
      %v3719 = vunpack.c.h.b16 %v3651
      %v3720 = vunpack.c.l.b16 %v3652
      %v3721 = vunpack.c.h.b16 %v3652
      %v3722 = vunpack.c.l.b16 %v3653
      %v3723 = vunpack.c.h.b16 %v3653
      %v3724 = vunpack.c.l.b16 %v3654
      %v3725 = vunpack.c.h.b16 %v3654
      %v3726 = vunpack.c.l.b16 %v3655
      %v3727 = vunpack.c.h.b16 %v3655
      %v3728 = vpack.c.b16 %v3682, %v3680
      %v3729 = vpack.c.b16 %v3683, %v3681
      %v3730 = vpack.c.b16 %v3686, %v3684
      %v3731 = vpack.c.b16 %v3687, %v3685
      %v3732 = vpack.c.b16 %v3690, %v3688
      %v3733 = vpack.c.b16 %v3691, %v3689
      %v3734 = vpack.c.b16 %v3694, %v3692
      %v3735 = vpack.c.b16 %v3695, %v3693
      %v3736 = vpack.c.b16 %v3698, %v3696
      %v3737 = vpack.c.b16 %v3699, %v3697
      %v3738 = vpack.c.b16 %v3702, %v3700
      %v3739 = vpack.c.b16 %v3703, %v3701
      %v3740 = vpack.c.b16 %v3706, %v3704
      %v3741 = vpack.c.b16 %v3707, %v3705
      %v3742 = vpack.c.b16 %v3710, %v3708
      %v3743 = vpack.c.b16 %v3711, %v3709
      %v3744 = vpack.c.b16 %v3714, %v3712
      %v3745 = vpack.c.b16 %v3715, %v3713
      %v3746 = vpack.c.b16 %v3718, %v3716
      %v3747 = vpack.c.b16 %v3719, %v3717
      %v3748 = vpack.c.b16 %v3722, %v3720
      %v3749 = vpack.c.b16 %v3723, %v3721
      %v3750 = vpack.c.b16 %v3726, %v3724
      %v3751 = vpack.c.b16 %v3727, %v3725
      %v3765 = vsel %vm3466, %v3729, 0
      %v3768 = vsel %vm3466, %v3731, 0
      %v3771 = vsel %vm3466, %v3733, 0
      %v3774 = vsel %vm3466, %v3735, 0
      %v3777 = vsel %vm3466, %v3737, 0
      %v3780 = vsel %vm3466, %v3739, 0
      %v3783 = vsel %vm3466, %v3741, 0
      %v3786 = vsel %vm3466, %v3743, 0
      %v3789 = vsel %vm3466, %v3745, 0
      %v3792 = vsel %vm3466, %v3747, 0
      %v3795 = vsel %vm3466, %v3749, 0
      %v3798 = vsel %vm3466, %v3751, 0
      %3800 = vmatprep.subr.bf16.mxu0 0
      %3801 = vmatpush1.bf16.msra.mxu0 %v3320
      %3802 = vmatprep.subr.bf16.mxu0 0
      %3803 = vmatpush1.bf16.msra.mxu0 %v3321
      %3804 = vmatprep.subr.bf16.mxu0 0
      %3805 = vmatpush1.bf16.msra.mxu0 %v3322
      %3806 = vmatprep.subr.bf16.mxu0 0
      %3807 = vmatpush1.bf16.msra.mxu0 %v3323
      %3808 = vmatprep.subr.bf16.mxu0 0
      %3809 = vmatpush1.bf16.msra.mxu0 %v3324
      %3810 = vmatprep.subr.bf16.mxu0 0
      %3811 = vmatpush1.bf16.msra.mxu0 %v3325
      %3812 = vmatprep.subr.bf16.mxu0 0
      %3813 = vmatpush1.bf16.msra.mxu0 %v3326
      %3814 = vmatprep.subr.bf16.mxu0 0
      %3815 = vmatpush1.bf16.msra.mxu0 %v3327
      %3816 = vmatprep.subr.bf16.mxu0 0
      %3817 = vmatpush1.bf16.msra.mxu0 %v3328
      %3818 = vmatprep.subr.bf16.mxu0 0
      %3819 = vmatpush1.bf16.msra.mxu0 %v3329
      %3820 = vmatprep.subr.bf16.mxu0 0
      %3821 = vmatpush1.bf16.msra.mxu0 %v3330
      %3822 = vmatprep.subr.bf16.mxu0 0
      %3823 = vmatpush1.bf16.msra.mxu0 %v3331
      %3824 = vmatprep.subr.bf16.mxu0 0
      %3825 = vmatpush1.bf16.msra.mxu0 %v3332
      %3826 = vmatprep.subr.bf16.mxu0 0
      %3827 = vmatpush1.bf16.msra.mxu0 0
      %3828 = vmatprep.subr.bf16.mxu0 0
      %3829 = vmatpush1.bf16.msra.mxu0 0
      %3830 = vmatprep.subr.bf16.mxu0 0
      %3831 = vmatpush1.bf16.msra.mxu0 0
      %3832 = vmatprep.mubr.bf16.mxu0 %v3765
      %3833 = vmatmul.mubr.bf16.gmra.mrb[0].mxu0 %v3728
      %v3834 = vpop.f32.mrb[0].mxu0
      %v3835 = vadd.f32 0.0, %v3834
      %v3836 = vpop.f32.mrb[0].mxu0
      %v3837 = vpop.f32.mrb[0].mxu0
      %v3838 = vadd.f32 0.0, %v3837
      %v3839 = vpop.f32.mrb[0].mxu0
      %3840 = vmatprep.mubr.bf16.mxu0 %v3768
      %3841 = vmatmul.mubr.bf16.gmra.mrb[0].mxu0 %v3730
      %v3842 = vpop.f32.mrb[0].mxu0
      %v3843 = vadd.f32 0.0, %v3842
      %v3844 = vpop.f32.mrb[0].mxu0
      %v3845 = vpop.f32.mrb[0].mxu0
      %v3846 = vadd.f32 0.0, %v3845
      %v3847 = vpop.f32.mrb[0].mxu0
      %3848 = vmatprep.mubr.bf16.mxu0 %v3771
      %3849 = vmatmul.mubr.bf16.gmra.mrb[0].mxu0 %v3732
      %v3850 = vpop.f32.mrb[0].mxu0
      %v3851 = vadd.f32 0.0, %v3850
      %v3852 = vpop.f32.mrb[0].mxu0
      %v3853 = vpop.f32.mrb[0].mxu0
      %v3854 = vadd.f32 0.0, %v3853
      %v3855 = vpop.f32.mrb[0].mxu0
      %3856 = vmatprep.mubr.bf16.mxu0 %v3774
      %3857 = vmatmul.mubr.bf16.gmra.mrb[0].mxu0 %v3734
      %v3858 = vpop.f32.mrb[0].mxu0
      %v3859 = vadd.f32 0.0, %v3858
      %v3860 = vpop.f32.mrb[0].mxu0
      %v3861 = vpop.f32.mrb[0].mxu0
      %v3862 = vadd.f32 0.0, %v3861
      %v3863 = vpop.f32.mrb[0].mxu0
      %3864 = vmatprep.mubr.bf16.mxu0 %v3777
      %3865 = vmatmul.mubr.bf16.gmra.mrb[0].mxu0 %v3736
      %v3866 = vpop.f32.mrb[0].mxu0
      %v3867 = vadd.f32 0.0, %v3866
      %v3868 = vpop.f32.mrb[0].mxu0
      %v3869 = vpop.f32.mrb[0].mxu0
      %v3870 = vadd.f32 0.0, %v3869
      %v3871 = vpop.f32.mrb[0].mxu0
      %3872 = vmatprep.mubr.bf16.mxu0 %v3780
      %3873 = vmatmul.mubr.bf16.gmra.mrb[0].mxu0 %v3738
      %v3874 = vpop.f32.mrb[0].mxu0
      %v3875 = vadd.f32 0.0, %v3874
      %v3876 = vpop.f32.mrb[0].mxu0
      %v3877 = vpop.f32.mrb[0].mxu0
      %v3878 = vadd.f32 0.0, %v3877
      %v3879 = vpop.f32.mrb[0].mxu0
      %3880 = vmatprep.mubr.bf16.mxu0 %v3783
      %3881 = vmatmul.mubr.bf16.gmra.mrb[0].mxu0 %v3740
      %v3882 = vpop.f32.mrb[0].mxu0
      %v3883 = vadd.f32 0.0, %v3882
      %v3884 = vpop.f32.mrb[0].mxu0
      %v3885 = vpop.f32.mrb[0].mxu0
      %v3886 = vadd.f32 0.0, %v3885
      %v3887 = vpop.f32.mrb[0].mxu0
      %3888 = vmatprep.mubr.bf16.mxu0 %v3786
      %3889 = vmatmul.mubr.bf16.gmra.mrb[0].mxu0 %v3742
      %v3890 = vpop.f32.mrb[0].mxu0
      %v3891 = vadd.f32 0.0, %v3890
      %v3892 = vpop.f32.mrb[0].mxu0
      %v3893 = vpop.f32.mrb[0].mxu0
      %v3894 = vadd.f32 0.0, %v3893
      %v3895 = vpop.f32.mrb[0].mxu0
      %3896 = vmatprep.mubr.bf16.mxu0 %v3789
      %3897 = vmatmul.mubr.bf16.gmra.mrb[0].mxu0 %v3744
      %v3898 = vpop.f32.mrb[0].mxu0
      %v3899 = vadd.f32 0.0, %v3898
      %v3900 = vpop.f32.mrb[0].mxu0
      %v3901 = vpop.f32.mrb[0].mxu0
      %v3902 = vadd.f32 0.0, %v3901
      %v3903 = vpop.f32.mrb[0].mxu0
      %3904 = vmatprep.mubr.bf16.mxu0 %v3792
      %3905 = vmatmul.mubr.bf16.gmra.mrb[0].mxu0 %v3746
      %v3906 = vpop.f32.mrb[0].mxu0
      %v3907 = vadd.f32 0.0, %v3906
      %v3908 = vpop.f32.mrb[0].mxu0
      %v3909 = vpop.f32.mrb[0].mxu0
      %v3910 = vadd.f32 0.0, %v3909
      %v3911 = vpop.f32.mrb[0].mxu0
      %3912 = vmatprep.mubr.bf16.mxu0 %v3795
      %3913 = vmatmul.mubr.bf16.gmra.mrb[0].mxu0 %v3748
      %v3914 = vpop.f32.mrb[0].mxu0
      %v3915 = vadd.f32 0.0, %v3914
      %v3916 = vpop.f32.mrb[0].mxu0
      %v3917 = vpop.f32.mrb[0].mxu0
      %v3918 = vadd.f32 0.0, %v3917
      %v3919 = vpop.f32.mrb[0].mxu0
      %3920 = vmatprep.mubr.bf16.mxu0 %v3798
      %3921 = vmatmul.mubr.bf16.gmra.mrb[0].mxu0 %v3750
      %v3922 = vpop.f32.mrb[0].mxu0
      %v3923 = vadd.f32 0.0, %v3922
      %v3924 = vpop.f32.mrb[0].mxu0
      %v3925 = vpop.f32.mrb[0].mxu0
      %v3926 = vadd.f32 0.0, %v3925
      %v3927 = vpop.f32.mrb[0].mxu0
      %3928 = vdwg.mxu0
      %v3929 = vld [vmem:[%s4] sm:$0xff]
      %v3930 = vld [vmem:[%s4 + $0x8] sm:$0xff]
      %v3931 = vld [vmem:[%s4 + $0x10] sm:$0xff]
      %v3932 = vld [vmem:[%s4 + $0x18] sm:$0xff]
      %v3933 = vld [vmem:[%s4 + $0x20] sm:$0xff]
      %v3934 = vld [vmem:[%s4 + $0x28] sm:$0xff]
      %v3935 = vld [vmem:[%s4 + $0x30] sm:$0xff]
      %v3936 = vld [vmem:[%s4 + $0x38] sm:$0xff]
      %v3937 = vld [vmem:[%s4 + $0x40] sm:$0xff]
      %v3938 = vld [vmem:[%s4 + $0x48] sm:$0xff]
      %v3939 = vld [vmem:[%s4 + $0x50] sm:$0xff]
      %v3940 = vld [vmem:[%s4 + $0x58] sm:$0xff]
      %v3941 = vld [vmem:[%s4 + $0x60] sm:$0xff]
      %v3942 = vld [vmem:[%s4 + $0x68] sm:$0xff]
      %v3943 = vld [vmem:[%s4 + $0x70] sm:$0xff]
      %v3944 = vld [vmem:[%s4 + $0x78] sm:$0xff]
      %v3945 = vld [vmem:[%s4 + $0x80] sm:$0xff]
      %v3946 = vld [vmem:[%s4 + $0x88] sm:$0xff]
      %v3947 = vld [vmem:[%s4 + $0x90] sm:$0xff]
      %v3948 = vld [vmem:[%s4 + $0x98] sm:$0xff]
      %v3949 = vld [vmem:[%s4 + $0xa0] sm:$0xff]
      %v3950 = vld [vmem:[%s4 + $0xa8] sm:$0xff]
      %v3951 = vld [vmem:[%s4 + $0xb0] sm:$0xff]
      %v3952 = vld [vmem:[%s4 + $0xb8] sm:$0xff]
      %v3977 = vunpack.c.l.b16 %v3929
      %v3978 = vunpack.c.h.b16 %v3929
      %v3979 = vunpack.c.l.b16 %v3930
      %v3980 = vunpack.c.h.b16 %v3930
      %v3981 = vunpack.c.l.b16 %v3931
      %v3982 = vunpack.c.h.b16 %v3931
      %v3983 = vunpack.c.l.b16 %v3932
      %v3984 = vunpack.c.h.b16 %v3932
      %v3985 = vunpack.c.l.b16 %v3933
      %v3986 = vunpack.c.h.b16 %v3933
      %v3987 = vunpack.c.l.b16 %v3934
      %v3988 = vunpack.c.h.b16 %v3934
      %v3989 = vunpack.c.l.b16 %v3935
      %v3990 = vunpack.c.h.b16 %v3935
      %v3991 = vunpack.c.l.b16 %v3936
      %v3992 = vunpack.c.h.b16 %v3936
      %v3993 = vunpack.c.l.b16 %v3937
      %v3994 = vunpack.c.h.b16 %v3937
      %v3995 = vunpack.c.l.b16 %v3938
      %v3996 = vunpack.c.h.b16 %v3938
      %v3997 = vunpack.c.l.b16 %v3939
      %v3998 = vunpack.c.h.b16 %v3939
      %v3999 = vunpack.c.l.b16 %v3940
      %v4000 = vunpack.c.h.b16 %v3940
      %v4001 = vunpack.c.l.b16 %v3941
      %v4002 = vunpack.c.h.b16 %v3941
      %v4003 = vunpack.c.l.b16 %v3942
      %v4004 = vunpack.c.h.b16 %v3942
      %v4005 = vunpack.c.l.b16 %v3943
      %v4006 = vunpack.c.h.b16 %v3943
      %v4007 = vunpack.c.l.b16 %v3944
      %v4008 = vunpack.c.h.b16 %v3944
      %v4009 = vunpack.c.l.b16 %v3945
      %v4010 = vunpack.c.h.b16 %v3945
      %v4011 = vunpack.c.l.b16 %v3946
      %v4012 = vunpack.c.h.b16 %v3946
      %v4013 = vunpack.c.l.b16 %v3947
      %v4014 = vunpack.c.h.b16 %v3947
      %v4015 = vunpack.c.l.b16 %v3948
      %v4016 = vunpack.c.h.b16 %v3948
      %v4017 = vunpack.c.l.b16 %v3949
      %v4018 = vunpack.c.h.b16 %v3949
      %v4019 = vunpack.c.l.b16 %v3950
      %v4020 = vunpack.c.h.b16 %v3950
      %v4021 = vunpack.c.l.b16 %v3951
      %v4022 = vunpack.c.h.b16 %v3951
      %v4023 = vunpack.c.l.b16 %v3952
      %v4024 = vunpack.c.h.b16 %v3952
      %v4025 = vpack.c.b16 %v3979, %v3977
      %v4026 = vpack.c.b16 %v3980, %v3978
      %v4027 = vpack.c.b16 %v3983, %v3981
      %v4028 = vpack.c.b16 %v3984, %v3982
      %v4029 = vpack.c.b16 %v3987, %v3985
      %v4030 = vpack.c.b16 %v3988, %v3986
      %v4031 = vpack.c.b16 %v3991, %v3989
      %v4032 = vpack.c.b16 %v3992, %v3990
      %v4033 = vpack.c.b16 %v3995, %v3993
      %v4034 = vpack.c.b16 %v3996, %v3994
      %v4035 = vpack.c.b16 %v3999, %v3997
      %v4036 = vpack.c.b16 %v4000, %v3998
      %v4037 = vpack.c.b16 %v4003, %v4001
      %v4038 = vpack.c.b16 %v4004, %v4002
      %v4039 = vpack.c.b16 %v4007, %v4005
      %v4040 = vpack.c.b16 %v4008, %v4006
      %v4041 = vpack.c.b16 %v4011, %v4009
      %v4042 = vpack.c.b16 %v4012, %v4010
      %v4043 = vpack.c.b16 %v4015, %v4013
      %v4044 = vpack.c.b16 %v4016, %v4014
      %v4045 = vpack.c.b16 %v4019, %v4017
      %v4046 = vpack.c.b16 %v4020, %v4018
      %v4047 = vpack.c.b16 %v4023, %v4021
      %v4048 = vpack.c.b16 %v4024, %v4022
      %v4062 = vsel %vm3466, %v4026, 0
      %v4065 = vsel %vm3466, %v4028, 0
      %v4068 = vsel %vm3466, %v4030, 0
      %v4071 = vsel %vm3466, %v4032, 0
      %v4074 = vsel %vm3466, %v4034, 0
      %v4077 = vsel %vm3466, %v4036, 0
      %v4080 = vsel %vm3466, %v4038, 0
      %v4083 = vsel %vm3466, %v4040, 0
      %v4086 = vsel %vm3466, %v4042, 0
      %v4089 = vsel %vm3466, %v4044, 0
      %v4092 = vsel %vm3466, %v4046, 0
      %v4095 = vsel %vm3466, %v4048, 0
      %4097 = vmatprep.subr.bf16.mxu0 0
      %4098 = vmatpush1.bf16.msra.mxu0 %v3309
      %4099 = vmatprep.subr.bf16.mxu0 0
      %4100 = vmatpush1.bf16.msra.mxu0 %v3310
      %4101 = vmatprep.subr.bf16.mxu0 0
      %4102 = vmatpush1.bf16.msra.mxu0 %v3311
      %4103 = vmatprep.subr.bf16.mxu0 0
      %4104 = vmatpush1.bf16.msra.mxu0 %v3312
      %4105 = vmatprep.subr.bf16.mxu0 0
      %4106 = vmatpush1.bf16.msra.mxu0 %v3313
      %4107 = vmatprep.subr.bf16.mxu0 0
      %4108 = vmatpush1.bf16.msra.mxu0 %v3314
      %4109 = vmatprep.subr.bf16.mxu0 0
      %4110 = vmatpush1.bf16.msra.mxu0 %v3315
      %4111 = vmatprep.subr.bf16.mxu0 0
      %4112 = vmatpush1.bf16.msra.mxu0 %v3316
      %4113 = vmatprep.subr.bf16.mxu0 0
      %4114 = vmatpush1.bf16.msra.mxu0 %v3317
      %4115 = vmatprep.subr.bf16.mxu0 0
      %4116 = vmatpush1.bf16.msra.mxu0 %v3318
      %4117 = vmatprep.subr.bf16.mxu0 0
      %4118 = vmatpush1.bf16.msra.mxu0 %v3319
      %4119 = vmatprep.subr.bf16.mxu0 0
      %4120 = vmatpush1.bf16.msra.mxu0 %v3320
      %4121 = vmatprep.subr.bf16.mxu0 0
      %4122 = vmatpush1.bf16.msra.mxu0 %v3321
      %4123 = vmatprep.subr.bf16.mxu0 0
      %4124 = vmatpush1.bf16.msra.mxu0 0
      %4125 = vmatprep.subr.bf16.mxu0 0
      %4126 = vmatpush1.bf16.msra.mxu0 0
      %4127 = vmatprep.subr.bf16.mxu0 0
      %4128 = vmatpush1.bf16.msra.mxu0 0
      %4129 = vmatprep.mubr.bf16.mxu0 %v4062
      %4130 = vmatmul.mubr.bf16.gmra.mrb[0].mxu0 %v4025
      %v4131 = vpop.f32.mrb[0].mxu0
      %v4132 = vadd.f32 0.0, %v4131
      %v4133 = vpop.f32.mrb[0].mxu0
      %v4134 = vpop.f32.mrb[0].mxu0
      %v4135 = vadd.f32 0.0, %v4134
      %v4136 = vpop.f32.mrb[0].mxu0
      %4137 = vmatprep.mubr.bf16.mxu0 %v4065
      %4138 = vmatmul.mubr.bf16.gmra.mrb[0].mxu0 %v4027
      %v4139 = vpop.f32.mrb[0].mxu0
      %v4140 = vadd.f32 0.0, %v4139
      %v4141 = vpop.f32.mrb[0].mxu0
      %v4142 = vpop.f32.mrb[0].mxu0
      %v4143 = vadd.f32 0.0, %v4142
      %v4144 = vpop.f32.mrb[0].mxu0
      %4145 = vmatprep.mubr.bf16.mxu0 %v4068
      %4146 = vmatmul.mubr.bf16.gmra.mrb[0].mxu0 %v4029
      %v4147 = vpop.f32.mrb[0].mxu0
      %v4148 = vadd.f32 0.0, %v4147
      %v4149 = vpop.f32.mrb[0].mxu0
      %v4150 = vpop.f32.mrb[0].mxu0
      %v4151 = vadd.f32 0.0, %v4150
      %v4152 = vpop.f32.mrb[0].mxu0
      %4153 = vmatprep.mubr.bf16.mxu0 %v4071
      %4154 = vmatmul.mubr.bf16.gmra.mrb[0].mxu0 %v4031
      %v4155 = vpop.f32.mrb[0].mxu0
      %v4156 = vadd.f32 0.0, %v4155
      %v4157 = vpop.f32.mrb[0].mxu0
      %v4158 = vpop.f32.mrb[0].mxu0
      %v4159 = vadd.f32 0.0, %v4158
      %v4160 = vpop.f32.mrb[0].mxu0
      %4161 = vmatprep.mubr.bf16.mxu0 %v4074
      %4162 = vmatmul.mubr.bf16.gmra.mrb[0].mxu0 %v4033
      %v4163 = vpop.f32.mrb[0].mxu0
      %v4164 = vadd.f32 0.0, %v4163
      %v4165 = vpop.f32.mrb[0].mxu0
      %v4166 = vpop.f32.mrb[0].mxu0
      %v4167 = vadd.f32 0.0, %v4166
      %v4168 = vpop.f32.mrb[0].mxu0
      %4169 = vmatprep.mubr.bf16.mxu0 %v4077
      %4170 = vmatmul.mubr.bf16.gmra.mrb[0].mxu0 %v4035
      %v4171 = vpop.f32.mrb[0].mxu0
      %v4172 = vadd.f32 0.0, %v4171
      %v4173 = vpop.f32.mrb[0].mxu0
      %v4174 = vpop.f32.mrb[0].mxu0
      %v4175 = vadd.f32 0.0, %v4174
      %v4176 = vpop.f32.mrb[0].mxu0
      %4177 = vmatprep.mubr.bf16.mxu0 %v4080
      %4178 = vmatmul.mubr.bf16.gmra.mrb[0].mxu0 %v4037
      %v4179 = vpop.f32.mrb[0].mxu0
      %v4180 = vadd.f32 0.0, %v4179
      %v4181 = vpop.f32.mrb[0].mxu0
      %v4182 = vpop.f32.mrb[0].mxu0
      %v4183 = vadd.f32 0.0, %v4182
      %v4184 = vpop.f32.mrb[0].mxu0
      %4185 = vmatprep.mubr.bf16.mxu0 %v4083
      %4186 = vmatmul.mubr.bf16.gmra.mrb[0].mxu0 %v4039
      %v4187 = vpop.f32.mrb[0].mxu0
      %v4188 = vadd.f32 0.0, %v4187
      %v4189 = vpop.f32.mrb[0].mxu0
      %v4190 = vpop.f32.mrb[0].mxu0
      %v4191 = vadd.f32 0.0, %v4190
      %v4192 = vpop.f32.mrb[0].mxu0
      %4193 = vmatprep.mubr.bf16.mxu0 %v4086
      %4194 = vmatmul.mubr.bf16.gmra.mrb[0].mxu0 %v4041
      %v4195 = vpop.f32.mrb[0].mxu0
      %v4196 = vadd.f32 0.0, %v4195
      %v4197 = vpop.f32.mrb[0].mxu0
      %v4198 = vpop.f32.mrb[0].mxu0
      %v4199 = vadd.f32 0.0, %v4198
      %v4200 = vpop.f32.mrb[0].mxu0
      %4201 = vmatprep.mubr.bf16.mxu0 %v4089
      %4202 = vmatmul.mubr.bf16.gmra.mrb[0].mxu0 %v4043
      %v4203 = vpop.f32.mrb[0].mxu0
      %v4204 = vadd.f32 0.0, %v4203
      %v4205 = vpop.f32.mrb[0].mxu0
      %v4206 = vpop.f32.mrb[0].mxu0
      %v4207 = vadd.f32 0.0, %v4206
      %v4208 = vpop.f32.mrb[0].mxu0
      %4209 = vmatprep.mubr.bf16.mxu0 %v4092
      %4210 = vmatmul.mubr.bf16.gmra.mrb[0].mxu0 %v4045
      %v4211 = vpop.f32.mrb[0].mxu0
      %v4212 = vadd.f32 0.0, %v4211
      %v4213 = vpop.f32.mrb[0].mxu0
      %v4214 = vpop.f32.mrb[0].mxu0
      %v4215 = vadd.f32 0.0, %v4214
      %v4216 = vpop.f32.mrb[0].mxu0
      %4217 = vmatprep.mubr.bf16.mxu0 %v4095
      %4218 = vmatmul.mubr.bf16.gmra.mrb[0].mxu0 %v4047
      %v4219 = vpop.f32.mrb[0].mxu0
      %v4220 = vadd.f32 0.0, %v4219
      %v4221 = vpop.f32.mrb[0].mxu0
      %v4222 = vpop.f32.mrb[0].mxu0
      %v4223 = vadd.f32 0.0, %v4222
      %v4224 = vpop.f32.mrb[0].mxu0
      %4225 = vdwg.mxu0
      %v4226 = vld [vmem:[%s5] sm:$0xff]
      %v4227 = vld [vmem:[%s5 + $0x8] sm:$0xff]
      %v4228 = vld [vmem:[%s5 + $0x10] sm:$0xff]
      %v4229 = vld [vmem:[%s5 + $0x18] sm:$0xff]
      %v4230 = vld [vmem:[%s5 + $0x20] sm:$0xff]
      %v4231 = vld [vmem:[%s5 + $0x28] sm:$0xff]
      %v4232 = vld [vmem:[%s5 + $0x30] sm:$0xff]
      %v4233 = vld [vmem:[%s5 + $0x38] sm:$0xff]
      %v4234 = vld [vmem:[%s5 + $0x40] sm:$0xff]
      %v4235 = vld [vmem:[%s5 + $0x48] sm:$0xff]
      %v4236 = vld [vmem:[%s5 + $0x50] sm:$0xff]
      %v4237 = vld [vmem:[%s5 + $0x58] sm:$0xff]
      %v4238 = vld [vmem:[%s5 + $0x60] sm:$0xff]
      %v4239 = vld [vmem:[%s5 + $0x68] sm:$0xff]
      %v4240 = vld [vmem:[%s5 + $0x70] sm:$0xff]
      %v4241 = vld [vmem:[%s5 + $0x78] sm:$0xff]
      %v4242 = vld [vmem:[%s5 + $0x80] sm:$0xff]
      %v4243 = vld [vmem:[%s5 + $0x88] sm:$0xff]
      %v4244 = vld [vmem:[%s5 + $0x90] sm:$0xff]
      %v4245 = vld [vmem:[%s5 + $0x98] sm:$0xff]
      %v4246 = vld [vmem:[%s5 + $0xa0] sm:$0xff]
      %v4247 = vld [vmem:[%s5 + $0xa8] sm:$0xff]
      %v4248 = vld [vmem:[%s5 + $0xb0] sm:$0xff]
      %v4249 = vld [vmem:[%s5 + $0xb8] sm:$0xff]
      %v4274 = vunpack.c.l.b16 %v4226
      %v4275 = vunpack.c.h.b16 %v4226
      %v4276 = vunpack.c.l.b16 %v4227
      %v4277 = vunpack.c.h.b16 %v4227
      %v4278 = vunpack.c.l.b16 %v4228
      %v4279 = vunpack.c.h.b16 %v4228
      %v4280 = vunpack.c.l.b16 %v4229
      %v4281 = vunpack.c.h.b16 %v4229
      %v4282 = vunpack.c.l.b16 %v4230
      %v4283 = vunpack.c.h.b16 %v4230
      %v4284 = vunpack.c.l.b16 %v4231
      %v4285 = vunpack.c.h.b16 %v4231
      %v4286 = vunpack.c.l.b16 %v4232
      %v4287 = vunpack.c.h.b16 %v4232
      %v4288 = vunpack.c.l.b16 %v4233
      %v4289 = vunpack.c.h.b16 %v4233
      %v4290 = vunpack.c.l.b16 %v4234
      %v4291 = vunpack.c.h.b16 %v4234
      %v4292 = vunpack.c.l.b16 %v4235
      %v4293 = vunpack.c.h.b16 %v4235
      %v4294 = vunpack.c.l.b16 %v4236
      %v4295 = vunpack.c.h.b16 %v4236
      %v4296 = vunpack.c.l.b16 %v4237
      %v4297 = vunpack.c.h.b16 %v4237
      %v4298 = vunpack.c.l.b16 %v4238
      %v4299 = vunpack.c.h.b16 %v4238
      %v4300 = vunpack.c.l.b16 %v4239
      %v4301 = vunpack.c.h.b16 %v4239
      %v4302 = vunpack.c.l.b16 %v4240
      %v4303 = vunpack.c.h.b16 %v4240
      %v4304 = vunpack.c.l.b16 %v4241
      %v4305 = vunpack.c.h.b16 %v4241
      %v4306 = vunpack.c.l.b16 %v4242
      %v4307 = vunpack.c.h.b16 %v4242
      %v4308 = vunpack.c.l.b16 %v4243
      %v4309 = vunpack.c.h.b16 %v4243
      %v4310 = vunpack.c.l.b16 %v4244
      %v4311 = vunpack.c.h.b16 %v4244
      %v4312 = vunpack.c.l.b16 %v4245
      %v4313 = vunpack.c.h.b16 %v4245
      %v4314 = vunpack.c.l.b16 %v4246
      %v4315 = vunpack.c.h.b16 %v4246
      %v4316 = vunpack.c.l.b16 %v4247
      %v4317 = vunpack.c.h.b16 %v4247
      %v4318 = vunpack.c.l.b16 %v4248
      %v4319 = vunpack.c.h.b16 %v4248
      %v4320 = vunpack.c.l.b16 %v4249
      %v4321 = vunpack.c.h.b16 %v4249
      %v4322 = vpack.c.b16 %v4276, %v4274
      %v4323 = vpack.c.b16 %v4277, %v4275
      %v4324 = vpack.c.b16 %v4280, %v4278
      %v4325 = vpack.c.b16 %v4281, %v4279
      %v4326 = vpack.c.b16 %v4284, %v4282
      %v4327 = vpack.c.b16 %v4285, %v4283
      %v4328 = vpack.c.b16 %v4288, %v4286
      %v4329 = vpack.c.b16 %v4289, %v4287
      %v4330 = vpack.c.b16 %v4292, %v4290
      %v4331 = vpack.c.b16 %v4293, %v4291
      %v4332 = vpack.c.b16 %v4296, %v4294
      %v4333 = vpack.c.b16 %v4297, %v4295
      %v4334 = vpack.c.b16 %v4300, %v4298
      %v4335 = vpack.c.b16 %v4301, %v4299
      %v4336 = vpack.c.b16 %v4304, %v4302
      %v4337 = vpack.c.b16 %v4305, %v4303
      %v4338 = vpack.c.b16 %v4308, %v4306
      %v4339 = vpack.c.b16 %v4309, %v4307
      %v4340 = vpack.c.b16 %v4312, %v4310
      %v4341 = vpack.c.b16 %v4313, %v4311
      %v4342 = vpack.c.b16 %v4316, %v4314
      %v4343 = vpack.c.b16 %v4317, %v4315
      %v4344 = vpack.c.b16 %v4320, %v4318
      %v4345 = vpack.c.b16 %v4321, %v4319
      %v4359 = vsel %vm3466, %v4323, 0
      %v4362 = vsel %vm3466, %v4325, 0
      %v4365 = vsel %vm3466, %v4327, 0
      %v4368 = vsel %vm3466, %v4329, 0
      %v4371 = vsel %vm3466, %v4331, 0
      %v4374 = vsel %vm3466, %v4333, 0
      %v4377 = vsel %vm3466, %v4335, 0
      %v4380 = vsel %vm3466, %v4337, 0
      %v4383 = vsel %vm3466, %v4339, 0
      %v4386 = vsel %vm3466, %v4341, 0
      %v4389 = vsel %vm3466, %v4343, 0
      %v4392 = vsel %vm3466, %v4345, 0
      %4394 = vmatprep.subr.bf16.mxu0 0
      %4395 = vmatpush1.bf16.msra.mxu0 %v3321
      %4396 = vmatprep.subr.bf16.mxu0 0
      %4397 = vmatpush1.bf16.msra.mxu0 %v3322
      %4398 = vmatprep.subr.bf16.mxu0 0
      %4399 = vmatpush1.bf16.msra.mxu0 %v3323
      %4400 = vmatprep.subr.bf16.mxu0 0
      %4401 = vmatpush1.bf16.msra.mxu0 %v3324
      %4402 = vmatprep.subr.bf16.mxu0 0
      %4403 = vmatpush1.bf16.msra.mxu0 %v3325
      %4404 = vmatprep.subr.bf16.mxu0 0
      %4405 = vmatpush1.bf16.msra.mxu0 %v3326
      %4406 = vmatprep.subr.bf16.mxu0 0
      %4407 = vmatpush1.bf16.msra.mxu0 %v3327
      %4408 = vmatprep.subr.bf16.mxu0 0
      %4409 = vmatpush1.bf16.msra.mxu0 %v3328
      %4410 = vmatprep.subr.bf16.mxu0 0
      %4411 = vmatpush1.bf16.msra.mxu0 %v3329
      %4412 = vmatprep.subr.bf16.mxu0 0
      %4413 = vmatpush1.bf16.msra.mxu0 %v3330
      %4414 = vmatprep.subr.bf16.mxu0 0
      %4415 = vmatpush1.bf16.msra.mxu0 %v3331
      %4416 = vmatprep.subr.bf16.mxu0 0
      %4417 = vmatpush1.bf16.msra.mxu0 %v3332
      %4418 = vmatprep.subr.bf16.mxu0 0
      %4419 = vmatpush1.bf16.msra.mxu0 %v3333
      %4420 = vmatprep.subr.bf16.mxu0 0
      %4421 = vmatpush1.bf16.msra.mxu0 0
      %4422 = vmatprep.subr.bf16.mxu0 0
      %4423 = vmatpush1.bf16.msra.mxu0 0
      %4424 = vmatprep.subr.bf16.mxu0 0
      %4425 = vmatpush1.bf16.msra.mxu0 0
      %4426 = vmatprep.mubr.bf16.mxu0 %v4359
      %4427 = vmatmul.mubr.bf16.gmra.mrb[0].mxu0 %v4322
      %v4428 = vpop.f32.mrb[0].mxu0
      %v4429 = vadd.f32 0.0, %v4428
      %v4430 = vpop.f32.mrb[0].mxu0
      %v4431 = vpop.f32.mrb[0].mxu0
      %v4432 = vadd.f32 0.0, %v4431
      %v4433 = vpop.f32.mrb[0].mxu0
      %4434 = vmatprep.mubr.bf16.mxu0 %v4362
      %4435 = vmatmul.mubr.bf16.gmra.mrb[0].mxu0 %v4324
      %v4436 = vpop.f32.mrb[0].mxu0
      %v4437 = vadd.f32 0.0, %v4436
      %v4438 = vpop.f32.mrb[0].mxu0
      %v4439 = vpop.f32.mrb[0].mxu0
      %v4440 = vadd.f32 0.0, %v4439
      %v4441 = vpop.f32.mrb[0].mxu0
      %4442 = vmatprep.mubr.bf16.mxu0 %v4365
      %4443 = vmatmul.mubr.bf16.gmra.mrb[0].mxu0 %v4326
      %v4444 = vpop.f32.mrb[0].mxu0
      %v4445 = vadd.f32 0.0, %v4444
      %v4446 = vpop.f32.mrb[0].mxu0
      %v4447 = vpop.f32.mrb[0].mxu0
      %v4448 = vadd.f32 0.0, %v4447
      %v4449 = vpop.f32.mrb[0].mxu0
      %4450 = vmatprep.mubr.bf16.mxu0 %v4368
      %4451 = vmatmul.mubr.bf16.gmra.mrb[0].mxu0 %v4328
      %v4452 = vpop.f32.mrb[0].mxu0
      %v4453 = vadd.f32 0.0, %v4452
      %v4454 = vpop.f32.mrb[0].mxu0
      %v4455 = vpop.f32.mrb[0].mxu0
      %v4456 = vadd.f32 0.0, %v4455
      %v4457 = vpop.f32.mrb[0].mxu0
      %4458 = vmatprep.mubr.bf16.mxu0 %v4371
      %4459 = vmatmul.mubr.bf16.gmra.mrb[0].mxu0 %v4330
      %v4460 = vpop.f32.mrb[0].mxu0
      %v4461 = vadd.f32 0.0, %v4460
      %v4462 = vpop.f32.mrb[0].mxu0
      %v4463 = vpop.f32.mrb[0].mxu0
      %v4464 = vadd.f32 0.0, %v4463
      %v4465 = vpop.f32.mrb[0].mxu0
      %4466 = vmatprep.mubr.bf16.mxu0 %v4374
      %4467 = vmatmul.mubr.bf16.gmra.mrb[0].mxu0 %v4332
      %v4468 = vpop.f32.mrb[0].mxu0
      %v4469 = vadd.f32 0.0, %v4468
      %v4470 = vpop.f32.mrb[0].mxu0
      %v4471 = vpop.f32.mrb[0].mxu0
      %v4472 = vadd.f32 0.0, %v4471
      %v4473 = vpop.f32.mrb[0].mxu0
      %4474 = vmatprep.mubr.bf16.mxu0 %v4377
      %4475 = vmatmul.mubr.bf16.gmra.mrb[0].mxu0 %v4334
      %v4476 = vpop.f32.mrb[0].mxu0
      %v4477 = vadd.f32 0.0, %v4476
      %v4478 = vpop.f32.mrb[0].mxu0
      %v4479 = vpop.f32.mrb[0].mxu0
      %v4480 = vadd.f32 0.0, %v4479
      %v4481 = vpop.f32.mrb[0].mxu0
      %4482 = vmatprep.mubr.bf16.mxu0 %v4380
      %4483 = vmatmul.mubr.bf16.gmra.mrb[0].mxu0 %v4336
      %v4484 = vpop.f32.mrb[0].mxu0
      %v4485 = vadd.f32 0.0, %v4484
      %v4486 = vpop.f32.mrb[0].mxu0
      %v4487 = vpop.f32.mrb[0].mxu0
      %v4488 = vadd.f32 0.0, %v4487
      %v4489 = vpop.f32.mrb[0].mxu0
      %4490 = vmatprep.mubr.bf16.mxu0 %v4383
      %4491 = vmatmul.mubr.bf16.gmra.mrb[0].mxu0 %v4338
      %v4492 = vpop.f32.mrb[0].mxu0
      %v4493 = vadd.f32 0.0, %v4492
      %v4494 = vpop.f32.mrb[0].mxu0
      %v4495 = vpop.f32.mrb[0].mxu0
      %v4496 = vadd.f32 0.0, %v4495
      %v4497 = vpop.f32.mrb[0].mxu0
      %4498 = vmatprep.mubr.bf16.mxu0 %v4386
      %4499 = vmatmul.mubr.bf16.gmra.mrb[0].mxu0 %v4340
      %v4500 = vpop.f32.mrb[0].mxu0
      %v4501 = vadd.f32 0.0, %v4500
      %v4502 = vpop.f32.mrb[0].mxu0
      %v4503 = vpop.f32.mrb[0].mxu0
      %v4504 = vadd.f32 0.0, %v4503
      %v4505 = vpop.f32.mrb[0].mxu0
      %4506 = vmatprep.mubr.bf16.mxu0 %v4389
      %4507 = vmatmul.mubr.bf16.gmra.mrb[0].mxu0 %v4342
      %v4508 = vpop.f32.mrb[0].mxu0
      %v4509 = vadd.f32 0.0, %v4508
      %v4510 = vpop.f32.mrb[0].mxu0
      %v4511 = vpop.f32.mrb[0].mxu0
      %v4512 = vadd.f32 0.0, %v4511
      %v4513 = vpop.f32.mrb[0].mxu0
      %4514 = vmatprep.mubr.bf16.mxu0 %v4392
      %4515 = vmatmul.mubr.bf16.gmra.mrb[0].mxu0 %v4344
      %v4516 = vpop.f32.mrb[0].mxu0
      %v4517 = vadd.f32 0.0, %v4516
      %v4518 = vpop.f32.mrb[0].mxu0
      %v4519 = vpop.f32.mrb[0].mxu0
      %v4520 = vadd.f32 0.0, %v4519
      %v4521 = vpop.f32.mrb[0].mxu0
      %4522 = vdwg.mxu0
      %v4523 = vmax.f32 %v3538, %v4132
      %v4524 = vmax.f32 %v3541, %v4135
      %v4525 = vmax.f32 %v3546, %v4140
      %v4526 = vmax.f32 %v3549, %v4143
      %v4527 = vmax.f32 %v3554, %v4148
      %v4528 = vmax.f32 %v3557, %v4151
      %v4529 = vmax.f32 %v3562, %v4156
      %v4530 = vmax.f32 %v3565, %v4159
      %v4531 = vmax.f32 %v3570, %v4164
      %v4532 = vmax.f32 %v3573, %v4167
      %v4533 = vmax.f32 %v3578, %v4172
      %v4534 = vmax.f32 %v3581, %v4175
      %v4535 = vmax.f32 %v3586, %v4180
      %v4536 = vmax.f32 %v3589, %v4183
      %v4537 = vmax.f32 %v3594, %v4188
      %v4538 = vmax.f32 %v3597, %v4191
      %v4539 = vmax.f32 %v3602, %v4196
      %v4540 = vmax.f32 %v3605, %v4199
      %v4541 = vmax.f32 %v3610, %v4204
      %v4542 = vmax.f32 %v3613, %v4207
      %v4543 = vmax.f32 %v3618, %v4212
      %v4544 = vmax.f32 %v3621, %v4215
      %v4545 = vmax.f32 %v3626, %v4220
      %v4546 = vmax.f32 %v3629, %v4223
      %4547 = vset.pattern.permute.xlu0 1
      %4548 = vperm.xlu0 %4547, %v340
      %v4549 = vpop.permute.xlu0 %4548
      %4551 = vset.pattern.permute.xlu0 1
      %4552 = vperm.xlu0 %4551, %v341
      %v4553 = vpop.permute.xlu0 %4552
      %4555 = vset.pattern.permute.xlu0 1
      %4556 = vperm.xlu0 %4555, %v342
      %v4557 = vpop.permute.xlu0 %4556
      %4559 = vset.pattern.permute.xlu0 1
      %4560 = vperm.xlu0 %4559, %v343
      %v4561 = vpop.permute.xlu0 %4560
      %4563 = vset.pattern.permute.xlu0 1
      %4564 = vperm.xlu0 %4563, %v344
      %v4565 = vpop.permute.xlu0 %4564
      %4567 = vset.pattern.permute.xlu0 1
      %4568 = vperm.xlu0 %4567, %v345
      %v4569 = vpop.permute.xlu0 %4568
      %4571 = vset.pattern.permute.xlu0 1
      %4572 = vperm.xlu0 %4571, %v346
      %v4573 = vpop.permute.xlu0 %4572
      %4575 = vset.pattern.permute.xlu0 1
      %4576 = vperm.xlu0 %4575, %v347
      %v4577 = vpop.permute.xlu0 %4576
      %4579 = vset.pattern.permute.xlu0 1
      %4580 = vperm.xlu0 %4579, %v348
      %v4581 = vpop.permute.xlu0 %4580
      %4583 = vset.pattern.permute.xlu0 1
      %4584 = vperm.xlu0 %4583, %v349
      %v4585 = vpop.permute.xlu0 %4584
      %4587 = vset.pattern.permute.xlu0 1
      %4588 = vperm.xlu0 %4587, %v350
      %v4589 = vpop.permute.xlu0 %4588
      %4591 = vset.pattern.permute.xlu0 1
      %4592 = vperm.xlu0 %4591, %v351
      %v4593 = vpop.permute.xlu0 %4592
      %4595 = vset.pattern.permute.xlu0 1
      %4596 = vperm.xlu0 %4595, %v352
      %v4597 = vpop.permute.xlu0 %4596
      %4599 = vset.pattern.permute.xlu0 1
      %4600 = vperm.xlu0 %4599, %v353
      %v4601 = vpop.permute.xlu0 %4600
      %4603 = vset.pattern.permute.xlu0 1
      %4604 = vperm.xlu0 %4603, %v354
      %v4605 = vpop.permute.xlu0 %4604
      %4607 = vset.pattern.permute.xlu0 1
      %4608 = vperm.xlu0 %4607, %v355
      %v4609 = vpop.permute.xlu0 %4608
      %4611 = vset.pattern.permute.xlu0 1
      %4612 = vperm.xlu0 %4611, %v356
      %v4613 = vpop.permute.xlu0 %4612
      %4615 = vset.pattern.permute.xlu0 1
      %4616 = vperm.xlu0 %4615, %v357
      %v4617 = vpop.permute.xlu0 %4616
      %4619 = vset.pattern.permute.xlu0 1
      %4620 = vperm.xlu0 %4619, %v358
      %v4621 = vpop.permute.xlu0 %4620
      %4623 = vset.pattern.permute.xlu0 1
      %4624 = vperm.xlu0 %4623, %v359
      %v4625 = vpop.permute.xlu0 %4624
      %4627 = vset.pattern.permute.xlu0 1
      %4628 = vperm.xlu0 %4627, %v360
      %v4629 = vpop.permute.xlu0 %4628
      %4631 = vset.pattern.permute.xlu0 1
      %4632 = vperm.xlu0 %4631, %v361
      %v4633 = vpop.permute.xlu0 %4632
      %4635 = vset.pattern.permute.xlu0 1
      %4636 = vperm.xlu0 %4635, %v362
      %v4637 = vpop.permute.xlu0 %4636
      %4639 = vset.pattern.permute.xlu0 1
      %4640 = vperm.xlu0 %4639, %v363
      %v4641 = vpop.permute.xlu0 %4640
      %v4643 = vadd.f32 %v4523, %v4549
      %v4644 = vadd.f32 %v4524, %v4553
      %v4645 = vadd.f32 %v4525, %v4557
      %v4646 = vadd.f32 %v4526, %v4561
      %v4647 = vadd.f32 %v4527, %v4565
      %v4648 = vadd.f32 %v4528, %v4569
      %v4649 = vadd.f32 %v4529, %v4573
      %v4650 = vadd.f32 %v4530, %v4577
      %v4651 = vadd.f32 %v4531, %v4581
      %v4652 = vadd.f32 %v4532, %v4585
      %v4653 = vadd.f32 %v4533, %v4589
      %v4654 = vadd.f32 %v4534, %v4593
      %v4655 = vadd.f32 %v4535, %v4597
      %v4656 = vadd.f32 %v4536, %v4601
      %v4657 = vadd.f32 %v4537, %v4605
      %v4658 = vadd.f32 %v4538, %v4609
      %v4659 = vadd.f32 %v4539, %v4613
      %v4660 = vadd.f32 %v4540, %v4617
      %v4661 = vadd.f32 %v4541, %v4621
      %v4662 = vadd.f32 %v4542, %v4625
      %v4663 = vadd.f32 %v4543, %v4629
      %v4664 = vadd.f32 %v4544, %v4633
      %v4665 = vadd.f32 %v4545, %v4637
      %v4666 = vadd.f32 %v4546, %v4641
      %v4667 = vmax.f32 %v4643, 0.0
      %v4668 = vmax.f32 %v4644, 0.0
      %v4669 = vmax.f32 %v4645, 0.0
      %v4670 = vmax.f32 %v4646, 0.0
      %v4671 = vmax.f32 %v4647, 0.0
      %v4672 = vmax.f32 %v4648, 0.0
      %v4673 = vmax.f32 %v4649, 0.0
      %v4674 = vmax.f32 %v4650, 0.0
      %v4675 = vmax.f32 %v4651, 0.0
      %v4676 = vmax.f32 %v4652, 0.0
      %v4677 = vmax.f32 %v4653, 0.0
      %v4678 = vmax.f32 %v4654, 0.0
      %v4679 = vmax.f32 %v4655, 0.0
      %v4680 = vmax.f32 %v4656, 0.0
      %v4681 = vmax.f32 %v4657, 0.0
      %v4682 = vmax.f32 %v4658, 0.0
      %v4683 = vmax.f32 %v4659, 0.0
      %v4684 = vmax.f32 %v4660, 0.0
      %v4685 = vmax.f32 %v4661, 0.0
      %v4686 = vmax.f32 %v4662, 0.0
      %v4687 = vmax.f32 %v4663, 0.0
      %v4688 = vmax.f32 %v4664, 0.0
      %v4689 = vmax.f32 %v4665, 0.0
      %v4690 = vmax.f32 %v4666, 0.0
      %v4691 = vpack.c.bf16 %v4668, %v4667
      %v4692 = vpack.c.bf16 %v4670, %v4669
      %v4693 = vpack.c.bf16 %v4672, %v4671
      %v4694 = vpack.c.bf16 %v4674, %v4673
      %v4695 = vpack.c.bf16 %v4676, %v4675
      %v4696 = vpack.c.bf16 %v4678, %v4677
      %v4697 = vpack.c.bf16 %v4680, %v4679
      %v4698 = vpack.c.bf16 %v4682, %v4681
      %v4699 = vpack.c.bf16 %v4684, %v4683
      %v4700 = vpack.c.bf16 %v4686, %v4685
      %v4701 = vpack.c.bf16 %v4688, %v4687
      %v4702 = vpack.c.bf16 %v4690, %v4689
      %v4703 = vmax.f32 %v3835, %v4429
      %v4704 = vmax.f32 %v3838, %v4432
      %v4705 = vmax.f32 %v3843, %v4437
      %v4706 = vmax.f32 %v3846, %v4440
      %v4707 = vmax.f32 %v3851, %v4445
      %v4708 = vmax.f32 %v3854, %v4448
      %v4709 = vmax.f32 %v3859, %v4453
      %v4710 = vmax.f32 %v3862, %v4456
      %v4711 = vmax.f32 %v3867, %v4461
      %v4712 = vmax.f32 %v3870, %v4464
      %v4713 = vmax.f32 %v3875, %v4469
      %v4714 = vmax.f32 %v3878, %v4472
      %v4715 = vmax.f32 %v3883, %v4477
      %v4716 = vmax.f32 %v3886, %v4480
      %v4717 = vmax.f32 %v3891, %v4485
      %v4718 = vmax.f32 %v3894, %v4488
      %v4719 = vmax.f32 %v3899, %v4493
      %v4720 = vmax.f32 %v3902, %v4496
      %v4721 = vmax.f32 %v3907, %v4501
      %v4722 = vmax.f32 %v3910, %v4504
      %v4723 = vmax.f32 %v3915, %v4509
      %v4724 = vmax.f32 %v3918, %v4512
      %v4725 = vmax.f32 %v3923, %v4517
      %v4726 = vmax.f32 %v3926, %v4520
      %4727 = vset.pattern.permute.xlu0 1
      %4728 = vperm.xlu0 %4727, %v364
      %v4729 = vpop.permute.xlu0 %4728
      %4731 = vset.pattern.permute.xlu0 1
      %4732 = vperm.xlu0 %4731, %v365
      %v4733 = vpop.permute.xlu0 %4732
      %4735 = vset.pattern.permute.xlu0 1
      %4736 = vperm.xlu0 %4735, %v366
      %v4737 = vpop.permute.xlu0 %4736
      %4739 = vset.pattern.permute.xlu0 1
      %4740 = vperm.xlu0 %4739, %v367
      %v4741 = vpop.permute.xlu0 %4740
      %4743 = vset.pattern.permute.xlu0 1
      %4744 = vperm.xlu0 %4743, %v368
      %v4745 = vpop.permute.xlu0 %4744
      %4747 = vset.pattern.permute.xlu0 1
      %4748 = vperm.xlu0 %4747, %v369
      %v4749 = vpop.permute.xlu0 %4748
      %4751 = vset.pattern.permute.xlu0 1
      %4752 = vperm.xlu0 %4751, %v370
      %v4753 = vpop.permute.xlu0 %4752
      %4755 = vset.pattern.permute.xlu0 1
      %4756 = vperm.xlu0 %4755, %v371
      %v4757 = vpop.permute.xlu0 %4756
      %4759 = vset.pattern.permute.xlu0 1
      %4760 = vperm.xlu0 %4759, %v372
      %v4761 = vpop.permute.xlu0 %4760
      %4763 = vset.pattern.permute.xlu0 1
      %4764 = vperm.xlu0 %4763, %v373
      %v4765 = vpop.permute.xlu0 %4764
      %4767 = vset.pattern.permute.xlu0 1
      %4768 = vperm.xlu0 %4767, %v374
      %v4769 = vpop.permute.xlu0 %4768
      %4771 = vset.pattern.permute.xlu0 1
      %4772 = vperm.xlu0 %4771, %v375
      %v4773 = vpop.permute.xlu0 %4772
      %4775 = vset.pattern.permute.xlu0 1
      %4776 = vperm.xlu0 %4775, %v376
      %v4777 = vpop.permute.xlu0 %4776
      %4779 = vset.pattern.permute.xlu0 1
      %4780 = vperm.xlu0 %4779, %v377
      %v4781 = vpop.permute.xlu0 %4780
      %4783 = vset.pattern.permute.xlu0 1
      %4784 = vperm.xlu0 %4783, %v378
      %v4785 = vpop.permute.xlu0 %4784
      %4787 = vset.pattern.permute.xlu0 1
      %4788 = vperm.xlu0 %4787, %v379
      %v4789 = vpop.permute.xlu0 %4788
      %4791 = vset.pattern.permute.xlu0 1
      %4792 = vperm.xlu0 %4791, %v380
      %v4793 = vpop.permute.xlu0 %4792
      %4795 = vset.pattern.permute.xlu0 1
      %4796 = vperm.xlu0 %4795, %v381
      %v4797 = vpop.permute.xlu0 %4796
      %4799 = vset.pattern.permute.xlu0 1
      %4800 = vperm.xlu0 %4799, %v382
      %v4801 = vpop.permute.xlu0 %4800
      %4803 = vset.pattern.permute.xlu0 1
      %4804 = vperm.xlu0 %4803, %v383
      %v4805 = vpop.permute.xlu0 %4804
      %4807 = vset.pattern.permute.xlu0 1
      %4808 = vperm.xlu0 %4807, %v384
      %v4809 = vpop.permute.xlu0 %4808
      %4811 = vset.pattern.permute.xlu0 1
      %4812 = vperm.xlu0 %4811, %v385
      %v4813 = vpop.permute.xlu0 %4812
      %4815 = vset.pattern.permute.xlu0 1
      %4816 = vperm.xlu0 %4815, %v386
      %v4817 = vpop.permute.xlu0 %4816
      %4819 = vset.pattern.permute.xlu0 1
      %4820 = vperm.xlu0 %4819, %v387
      %v4821 = vpop.permute.xlu0 %4820
      %v4823 = vadd.f32 %v4703, %v4729
      %v4824 = vadd.f32 %v4704, %v4733
      %v4825 = vadd.f32 %v4705, %v4737
      %v4826 = vadd.f32 %v4706, %v4741
      %v4827 = vadd.f32 %v4707, %v4745
      %v4828 = vadd.f32 %v4708, %v4749
      %v4829 = vadd.f32 %v4709, %v4753
      %v4830 = vadd.f32 %v4710, %v4757
      %v4831 = vadd.f32 %v4711, %v4761
      %v4832 = vadd.f32 %v4712, %v4765
      %v4833 = vadd.f32 %v4713, %v4769
      %v4834 = vadd.f32 %v4714, %v4773
      %v4835 = vadd.f32 %v4715, %v4777
      %v4836 = vadd.f32 %v4716, %v4781
      %v4837 = vadd.f32 %v4717, %v4785
      %v4838 = vadd.f32 %v4718, %v4789
      %v4839 = vadd.f32 %v4719, %v4793
      %v4840 = vadd.f32 %v4720, %v4797
      %v4841 = vadd.f32 %v4721, %v4801
      %v4842 = vadd.f32 %v4722, %v4805
      %v4843 = vadd.f32 %v4723, %v4809
      %v4844 = vadd.f32 %v4724, %v4813
      %v4845 = vadd.f32 %v4725, %v4817
      %v4846 = vadd.f32 %v4726, %v4821
      %v4847 = vmax.f32 %v4823, 0.0
      %v4848 = vmax.f32 %v4824, 0.0
      %v4849 = vmax.f32 %v4825, 0.0
      %v4850 = vmax.f32 %v4826, 0.0
      %v4851 = vmax.f32 %v4827, 0.0
      %v4852 = vmax.f32 %v4828, 0.0
      %v4853 = vmax.f32 %v4829, 0.0
      %v4854 = vmax.f32 %v4830, 0.0
      %v4855 = vmax.f32 %v4831, 0.0
      %v4856 = vmax.f32 %v4832, 0.0
      %v4857 = vmax.f32 %v4833, 0.0
      %v4858 = vmax.f32 %v4834, 0.0
      %v4859 = vmax.f32 %v4835, 0.0
      %v4860 = vmax.f32 %v4836, 0.0
      %v4861 = vmax.f32 %v4837, 0.0
      %v4862 = vmax.f32 %v4838, 0.0
      %v4863 = vmax.f32 %v4839, 0.0
      %v4864 = vmax.f32 %v4840, 0.0
      %v4865 = vmax.f32 %v4841, 0.0
      %v4866 = vmax.f32 %v4842, 0.0
      %v4867 = vmax.f32 %v4843, 0.0
      %v4868 = vmax.f32 %v4844, 0.0
      %v4869 = vmax.f32 %v4845, 0.0
      %v4870 = vmax.f32 %v4846, 0.0
      %v4871 = vpack.c.bf16 %v4848, %v4847
      %v4872 = vpack.c.bf16 %v4850, %v4849
      %v4873 = vpack.c.bf16 %v4852, %v4851
      %v4874 = vpack.c.bf16 %v4854, %v4853
      %v4875 = vpack.c.bf16 %v4856, %v4855
      %v4876 = vpack.c.bf16 %v4858, %v4857
      %v4877 = vpack.c.bf16 %v4860, %v4859
      %v4878 = vpack.c.bf16 %v4862, %v4861
      %v4879 = vpack.c.bf16 %v4864, %v4863
      %v4880 = vpack.c.bf16 %v4866, %v4865
      %v4881 = vpack.c.bf16 %v4868, %v4867
      %v4882 = vpack.c.bf16 %v4870, %v4869
      %v4883 = vld [vmem:[%s6] sm:$0xff]
      %v4884 = vld [vmem:[%s6 + $0x8] sm:$0xf]
      %v4885 = vld [vmem:[%s6 + $0xc] sm:$0xff]
      %v4886 = vld [vmem:[%s6 + $0x14] sm:$0xf]
      %v4887 = vld [vmem:[%s6 + $0x18] sm:$0xff]
      %v4888 = vld [vmem:[%s6 + $0x20] sm:$0xf]
      %v4889 = vld [vmem:[%s6 + $0x24] sm:$0xff]
      %v4890 = vld [vmem:[%s6 + $0x2c] sm:$0xf]
      %4891 = vset.pattern.permute.xlu0 2
      %4892 = vperm.xlu0 %4891, %v340
      %v4893 = vpop.permute.xlu0 %4892
      %4895 = vset.pattern.permute.xlu0 2
      %4896 = vperm.xlu0 %4895, %v341
      %v4897 = vpop.permute.xlu0 %4896
      %4899 = vset.pattern.permute.xlu0 2
      %4900 = vperm.xlu0 %4899, %v342
      %v4901 = vpop.permute.xlu0 %4900
      %4903 = vset.pattern.permute.xlu0 2
      %4904 = vperm.xlu0 %4903, %v343
      %v4905 = vpop.permute.xlu0 %4904
      %v4915 = vunpack.c.l.b16 %v4883
      %v4916 = vunpack.c.h.b16 %v4883
      %v4917 = vunpack.c.l.b16 %v4884
      %v4918 = vunpack.c.l.b16 %v4885
      %v4919 = vunpack.c.h.b16 %v4885
      %v4920 = vunpack.c.l.b16 %v4886
      %v4921 = vunpack.c.l.b16 %v4887
      %v4922 = vunpack.c.h.b16 %v4887
      %v4923 = vunpack.c.l.b16 %v4888
      %v4924 = vunpack.c.l.b16 %v4889
      %v4925 = vunpack.c.h.b16 %v4889
      %v4926 = vunpack.c.l.b16 %v4890
      %v4927 = vpack.c.b16 %v4918, %v4915
      %v4928 = vpack.c.b16 %v4919, %v4916
      %v4929 = vpack.c.b16 %v4920, %v4917
      %v4930 = vpack.c.b16 %v4924, %v4921
      %v4931 = vpack.c.b16 %v4925, %v4922
      %v4932 = vpack.c.b16 %v4926, %v4923
      %4939 = vmatprep.subr.bf16.mxu0 0
      %4940 = vmatpush1.bf16.msra.mxu0 %v4691
      %4941 = vmatprep.subr.bf16.mxu0 0
      %4942 = vmatpush1.bf16.msra.mxu0 %v4692
      %4943 = vmatprep.subr.bf16.mxu0 0
      %4944 = vmatpush1.bf16.msra.mxu0 %v4693
      %4945 = vmatprep.subr.bf16.mxu0 0
      %4946 = vmatpush1.bf16.msra.mxu0 %v4694
      %4947 = vmatprep.subr.bf16.mxu0 0
      %4948 = vmatpush1.bf16.msra.mxu0 %v4695
      %4949 = vmatprep.subr.bf16.mxu0 0
      %4950 = vmatpush1.bf16.msra.mxu0 %v4696
      %4951 = vmatprep.subr.bf16.mxu0 0
      %4952 = vmatpush1.bf16.msra.mxu0 %v4697
      %4953 = vmatprep.subr.bf16.mxu0 0
      %4954 = vmatpush1.bf16.msra.mxu0 %v4698
      %4955 = vmatprep.subr.bf16.mxu0 0
      %4956 = vmatpush1.bf16.msra.mxu0 %v4699
      %4957 = vmatprep.subr.bf16.mxu0 0
      %4958 = vmatpush1.bf16.msra.mxu0 %v4700
      %4959 = vmatprep.subr.bf16.mxu0 0
      %4960 = vmatpush1.bf16.msra.mxu0 %v4701
      %4961 = vmatprep.subr.bf16.mxu0 0
      %4962 = vmatpush1.bf16.msra.mxu0 %v4702
      %4963 = vmatprep.subr.bf16.mxu0 0
      %4964 = vmatpush1.bf16.msra.mxu0 %v4871
      %4965 = vmatprep.subr.bf16.mxu0 0
      %4966 = vmatpush1.bf16.msra.mxu0 %v4872
      %4967 = vmatprep.subr.bf16.mxu0 0
      %4968 = vmatpush1.bf16.msra.mxu0 %v4873
      %4969 = vmatprep.subr.bf16.mxu0 0
      %4970 = vmatpush1.bf16.msra.mxu0 %v4874
      %4971 = vmatprep.mubr.bf16.mxu0 %v4928
      %4972 = vmatmul.mubr.bf16.gmra.mrb[0].mxu0 %v4927
      %v4973 = vpop.f32.mrb[0].mxu0
      %v4974 = vadd.f32 %v4893, %v4973
      %v4975 = vpop.f32.mrb[0].mxu0
      %v4976 = vpop.f32.mrb[0].mxu0
      %v4977 = vadd.f32 %v4897, %v4976
      %v4978 = vpop.f32.mrb[0].mxu0
      %4979 = vmatprep.mubr.bf16.mxu0 %v4931
      %4980 = vmatmul.mubr.bf16.gmra.mrb[0].mxu0 %v4930
      %v4981 = vpop.f32.mrb[0].mxu0
      %v4982 = vadd.f32 %v4901, %v4981
      %v4983 = vpop.f32.mrb[0].mxu0
      %v4984 = vpop.f32.mrb[0].mxu0
      %v4985 = vadd.f32 %v4905, %v4984
      %v4986 = vpop.f32.mrb[0].mxu0
      %4987 = vdwg.mxu0
      %4988 = vmatprep.subr.bf16.mxu0 0
      %4989 = vmatpush1.bf16.msra.mxu0 %v4875
      %4990 = vmatprep.subr.bf16.mxu0 0
      %4991 = vmatpush1.bf16.msra.mxu0 %v4876
      %4992 = vmatprep.subr.bf16.mxu0 0
      %4993 = vmatpush1.bf16.msra.mxu0 %v4877
      %4994 = vmatprep.subr.bf16.mxu0 0
      %4995 = vmatpush1.bf16.msra.mxu0 %v4878
      %4996 = vmatprep.subr.bf16.mxu0 0
      %4997 = vmatpush1.bf16.msra.mxu0 %v4879
      %4998 = vmatprep.subr.bf16.mxu0 0
      %4999 = vmatpush1.bf16.msra.mxu0 %v4880
      %5000 = vmatprep.subr.bf16.mxu0 0
      %5001 = vmatpush1.bf16.msra.mxu0 %v4881
      %5002 = vmatprep.subr.bf16.mxu0 0
      %5003 = vmatpush1.bf16.msra.mxu0 %v4882
      %5004 = vmatprep.subr.bf16.mxu0 0
      %5005 = vmatpush1.bf16.msra.mxu0 0
      %5006 = vmatprep.subr.bf16.mxu0 0
      %5007 = vmatpush1.bf16.msra.mxu0 0
      %5008 = vmatprep.subr.bf16.mxu0 0
      %5009 = vmatpush1.bf16.msra.mxu0 0
      %5010 = vmatprep.subr.bf16.mxu0 0
      %5011 = vmatpush1.bf16.msra.mxu0 0
      %5012 = vmatprep.subr.bf16.mxu0 0
      %5013 = vmatpush1.bf16.msra.mxu0 0
      %5014 = vmatprep.subr.bf16.mxu0 0
      %5015 = vmatpush1.bf16.msra.mxu0 0
      %5016 = vmatprep.subr.bf16.mxu0 0
      %5017 = vmatpush1.bf16.msra.mxu0 0
      %5018 = vmatprep.subr.bf16.mxu0 0
      %5019 = vmatpush1.bf16.msra.mxu0 0
      %5020 = vmatprep.mubr.bf16.mxu0 0
      %5021 = vmatmul.mubr.bf16.gmra.mrb[0].mxu0 %v4929
      %v5022 = vpop.f32.mrb[0].mxu0
      %v5023 = vadd.f32 %v4974, %v5022
      %v5024 = vpop.f32.mrb[0].mxu0
      %v5025 = vpop.f32.mrb[0].mxu0
      %v5026 = vadd.f32 %v4977, %v5025
      %v5027 = vpop.f32.mrb[0].mxu0
      %5028 = vmatprep.mubr.bf16.mxu0 0
      %5029 = vmatmul.mubr.bf16.gmra.mrb[0].mxu0 %v4932
      %v5030 = vpop.f32.mrb[0].mxu0
      %v5031 = vadd.f32 %v4982, %v5030
      %v5032 = vpop.f32.mrb[0].mxu0
      %v5033 = vpop.f32.mrb[0].mxu0
      %v5034 = vadd.f32 %v4985, %v5033
      %v5035 = vpop.f32.mrb[0].mxu0
      %5036 = vdwg.mxu0
      %v5037 = vmax.f32 %v5023, 0.0
      %v5038 = vmax.f32 %v5026, 0.0
      %v5039 = vmax.f32 %v5031, 0.0
      %v5040 = vmax.f32 %v5034, 0.0
      %5041 = vset.pattern.permute.xlu0 3
      %5042 = vperm.xlu0 %5041, %v340
      %v5043 = vpop.permute.xlu0 %5042
      %5045 = vset.pattern.permute.xlu0 3
      %5046 = vperm.xlu0 %5045, %v341
      %v5047 = vpop.permute.xlu0 %5046
      %5049 = vset.pattern.permute.xlu0 3
      %5050 = vperm.xlu0 %5049, %v342
      %v5051 = vpop.permute.xlu0 %5050
      %5053 = vset.pattern.permute.xlu0 3
      %5054 = vperm.xlu0 %5053, %v343
      %v5055 = vpop.permute.xlu0 %5054
      %v5057 = vmul.f32 %v5037, %v5043
      %v5058 = vmul.f32 %v5038, %v5047
      %v5059 = vmul.f32 %v5039, %v5051
      %v5060 = vmul.f32 %v5040, %v5055
      %v5061 = vadd.f32 %v5057, %v5058
      %v5062 = vadd.f32 %v5061, %v5059
      %v5063 = vadd.f32 %v5062, %v5060
      %v5064 = vrot.slane %v5063, 4
      %v5065 = vadd.f32 %v5063, %v5064
      %v5066 = vrot.slane %v5065, 2
      %v5067 = vadd.f32 %v5065, %v5066
      %v5068 = vrot.slane %v5067, 1
      %v5069 = vadd.f32 %v5067, %v5068
      %5071 = vset.pattern.permute.xlu0 3
      %5072 = vperm.xlu0 %5071, %v444
      %v5073 = vpop.permute.xlu0 %5072
      %v5075 = vadd.f32 %v5069, %v5073
      %v5076 = vmax.f32 %v5075, 0.0
      %5077 = vst [vmem:[%s306] sm:$0x1] %v5076
      %p5078 = scmp.lt.s32.totalorder %s19, 1
      %s5079 = scalar_select %p5078, %s19, 1
      %s5080 = scalar_lea.vmem %s8, %s5079
      // Predicated region
      $region53: #{cnn_forward.1} parent=51 // pred_check
        %p5081 = pneg %p210
      $region54: #{cnn_forward.1} parent=51 // pred_check_branch
        %5083 = sbr.rel (%p5081) target = $region56
      $region55: #{cnn_forward.1} parent=51 // pred_region
        _
      $region56: #{cnn_forward.1} parent=51 // pred_fallthru
        _
    $region52: #{cnn_forward.1} parent=5 // pred_fallthru
      _
    %p5084 = scmp.le.s32.totalorder 2, %s14
    // Predicated region
    $region57: #{cnn_forward.1} parent=5 // pred_check
      %p5085 = pneg %p5084
    $region58: #{cnn_forward.1} parent=5 // pred_check_branch
      %5087 = sbr.rel (%p5085) target = $region60
    $region59: #{cnn_forward.1} parent=5 // pred_region
      %s5088 = ssub.s32 %s14, 2
      // Predicated region
      $region61: #{cnn_forward.1} parent=59 // pred_check
        %p5089 = pneg %p216
      $region62: #{cnn_forward.1} parent=59 // pred_check_branch
        %5091 = sbr.rel (%p5089) target = $region64
      $region63: #{cnn_forward.1} parent=59 // pred_region
        %p5092 = scmp.lt.s32.totalorder %s20, 1
        %s5093 = scalar_select %p5092, %s20, 1
        %s5094 = scalar_lea.vmem %s8, %s5093
      $region64: #{cnn_forward.1} parent=59 // pred_fallthru
        _
    $region60: #{cnn_forward.1} parent=5 // pred_fallthru
      _
  $region6: #{cnn_forward.1} parent=0 // loop_footer
    %s18 = sadd.s32 1, %s14
  $region7: #{cnn_forward.1} parent=0 // loop_footer_branch
    %13 = sbr.rel target = $region3
  $region8: #{cnn_forward.1} parent=0 // loop_exit
    _

</llo_original>
